<compile_context>
chip_gen: v7x
topology: tpu7x:2x2x1
jax: 0.10.0
libtpu: 0.0.40
codegen_flags: <defaults>
</compile_context>

<pallas_src>
import jax
import jax.numpy as jnp
from jax.experimental import pallas as pl
from jax.experimental.pallas import tpu as pltpu

_LANE = 128  # lane width / MXU-friendly row-tile quantum


# -----------------------------------------------------------------------------
# Pallas kernel: fused 3-layer MLP  (Linear+ReLU, Linear+ReLU, Linear[N=1])
# -----------------------------------------------------------------------------
def _full_pose_disc_kernel(x_ref, w1_ref, b1_ref, w2_ref, b2_ref,
                           w3_ref, b3_ref, o_ref):
    # Layer 0: bf16 MXU matmul, f32 accumulation; bias + ReLU in f32 (VPU).
    # (Dropout layers are identity in eval mode.)
    h = jnp.dot(x_ref[...], w1_ref[...], preferred_element_type=jnp.float32)
    h = jnp.maximum(h + b1_ref[...], 0.0)

    # Layer 1: bf16 MXU matmul, f32 accumulation; bias + ReLU in f32 (VPU).
    h = jnp.dot(h.astype(jnp.bfloat16), w2_ref[...],
                preferred_element_type=jnp.float32)
    h = jnp.maximum(h + b2_ref[...], 0.0)

    # Layer 2 (out_features == 1): keep it OFF the MXU.  A (tile, H2) @ (H2, 1)
    # matmul would cost a full vmatmul pass for a single useful column; a VPU
    # multiply + XLU lane reduction uses units with slack instead.
    # w3_ref is the (1, H2) weight row (PyTorch layout); b3 is an SMEM scalar.
    o = jnp.sum(h * w3_ref[...], axis=-1) + b3_ref[0]          # (tile,) f32
    # Lane-dense store: write the logits as a (1, tile) row (avoids masked
    # vst.msk partial stores of a (tile, 1) column).  The sublane->lane
    # relayout of the reduction result lands on the XLU, which has slack.
    o_ref[...] = o.reshape(1, -1).astype(o_ref.dtype)


# -----------------------------------------------------------------------------
# Wrapper: padding, tiling, bf16 pre-cast, pallas_call plumbing
# -----------------------------------------------------------------------------
def full_pose_discriminator(x, params, *, batch_tile=2048, core_parallel=False):
    """x: (B, fc_layers[0]), f32 or bf16 (bf16 avoids an extra HBM pass).

    params: w1:(Din,H1), w2:(H1,H2) (already transposed from PyTorch (out,in))
    and w3:(1,H2) (PyTorch layout, used as a row), biases b1:(1,H1), b2:(1,H2),
    b3:(1,1).  Set core_parallel=True on v7x to shard the batch grid axis
    across both TensorCores.
    """
    B, Din = x.shape

    w1 = params["w1"].astype(jnp.bfloat16)
    w2 = params["w2"].astype(jnp.bfloat16)
    b1 = params["b1"].astype(jnp.float32)
    b2 = params["b2"].astype(jnp.float32)
    w3 = params["w3"].astype(jnp.float32)          # (1, H2) row, f32 (VPU math)
    b3 = params["b3"].reshape(-1).astype(jnp.float32)   # (1,) SMEM scalar

    H1 = w1.shape[1]
    H2 = w2.shape[1]

    # Row tile: a multiple of 128 (full MXU sublane utilization, and satisfies
    # the (8,128) BlockSpec rule for any user-supplied batch_tile).  No forced
    # multi-step split: on single-TC chips the grid is a sequential loop and
    # per-step overhead dominates this tiny MLP; whole padded batch in one tile
    # when it fits batch_tile.
    batch_tile = max(_LANE, (int(batch_tile) // _LANE) * _LANE)
    b_pad128 = pl.cdiv(B, _LANE) * _LANE
    tile = min(batch_tile, b_pad128)
    Bp = pl.cdiv(B, tile) * tile
    num_tiles = Bp // tile

    # Cast/pad only when needed (callers can hand us bf16 directly).
    xp = x if x.dtype == jnp.bfloat16 else x.astype(jnp.bfloat16)
    if Bp != B:
        xp = jnp.pad(xp, ((0, Bp - B), (0, 0)))

    # Deepen x's pipelining when the grid is long enough to benefit; weights
    # and biases keep constant index_maps (VMEM-resident, DMA'd once).
    if num_tiles >= 3:
        x_spec = pl.BlockSpec((tile, Din), lambda i: (i, 0),
                              pipeline_mode=pl.Buffered(3))
    else:
        x_spec = pl.BlockSpec((tile, Din), lambda i: (i, 0))

    in_specs = [
        x_spec,                                               # x (streamed, bf16)
        pl.BlockSpec((Din, H1), lambda i: (0, 0)),            # w1 (resident, bf16)
        pl.BlockSpec((1, H1), lambda i: (0, 0)),              # b1 (resident, f32)
        pl.BlockSpec((H1, H2), lambda i: (0, 0)),             # w2 (resident, bf16)
        pl.BlockSpec((1, H2), lambda i: (0, 0)),              # b2 (resident, f32)
        pl.BlockSpec((1, H2), lambda i: (0, 0)),              # w3 row (resident, f32)
        pl.BlockSpec(memory_space=pltpu.MemorySpace.SMEM),    # b3 scalar (SMEM)
    ]
    # Lane-dense output: one (1, tile) row per grid step.
    out_specs = pl.BlockSpec((1, tile), lambda i: (0, i))

    dim_sem = (pltpu.CORE_PARALLEL,) if core_parallel else (pltpu.PARALLEL,)

    out_row = pl.pallas_call(
        _full_pose_disc_kernel,
        out_shape=jax.ShapeDtypeStruct((1, Bp), jnp.float32),
        grid_spec=pltpu.PrefetchScalarGridSpec(
            num_scalar_prefetch=0,
            grid=(num_tiles,),
            in_specs=in_specs,
            out_specs=out_specs,
        ),
        compiler_params=pltpu.CompilerParams(dimension_semantics=dim_sem),
    )(xp, w1, b1, w2, b2, w3, b3)

    # Back to the PyTorch-style (B, 1) logits.
    return out_row[0, :B].reshape(B, 1)


# -----------------------------------------------------------------------------
# Deterministic parameter init (mimics PyTorch nn.Linear default init)
# -----------------------------------------------------------------------------
def init_params(key, fc_layers):
    """w1/w2 stored as (in, out); final-layer weight stored as a (1, in) row."""
    params = {}
    n = len(fc_layers) - 1
    keys = jax.random.split(key, 2 * n)
    for i in range(n):
        fan_in, fan_out = fc_layers[i], fc_layers[i + 1]
        bound = 1.0 / (fan_in ** 0.5)
        w_t = jax.random.uniform(keys[2 * i], (fan_in, fan_out),
                                 minval=-bound, maxval=bound,
                                 dtype=jnp.float32)
        b = jax.random.uniform(keys[2 * i + 1], (1, fan_out),
                               minval=-bound, maxval=bound,
                               dtype=jnp.float32)
        if i == n - 1:
            # final layer kept in PyTorch (out=1, in) layout -> a (1, in) row
            params[f"w{i + 1}"] = w_t.T
        else:
            params[f"w{i + 1}"] = w_t
        params[f"b{i + 1}"] = b
    return params


# -----------------------------------------------------------------------------
# Pure-JAX reference with matching precision (bf16 operands, f32 accumulation)
# -----------------------------------------------------------------------------
def reference_forward(x, params):
    bf = jnp.bfloat16
    h = jnp.dot(x.astype(bf), params["w1"].astype(bf),
                preferred_element_type=jnp.float32) + params["b1"]
    h = jnp.maximum(h, 0.0)
    h = jnp.dot(h.astype(bf), params["w2"].astype(bf),
                preferred_element_type=jnp.float32) + params["b2"]
    h = jnp.maximum(h, 0.0)
    return jnp.sum(h * params["w3"], axis=-1, keepdims=True) + params["b3"]


if __name__ == "__main__":
    fc_layers = [64, 128, 128, 1]          # last layer must be 1
    use_dropout = [True, True]             # identity in eval mode
    drop_prob = [0.5, 0.5]
    use_ac_func = [True, True]

    key = jax.random.PRNGKey(0)
    k_param, k_x = jax.random.split(key)
    params = init_params(k_param, fc_layers)

    # Case 1: non-128-multiple batch -> single-tile grid with row padding and
    # the lane-dense (1, tile) output path.
    B1 = 200
    x1 = jax.random.normal(k_x, (B1, fc_layers[0]), dtype=jnp.float32)
    out1 = jax.block_until_ready(full_pose_discriminator(x1, params))
    ref1 = reference_forward(x1, params)
    assert out1.shape == (B1, 1)
    assert jnp.allclose(out1, ref1, atol=2e-3, rtol=2e-3), (
        float(jnp.max(jnp.abs(out1 - ref1))))

    # Case 2: multi-step grid (4 tiles of 128 rows) exercising the Buffered(3)
    # x pipeline and the multi-tile lane-dense output indexing.
    B2 = 512
    x2 = jax.random.normal(jax.random.PRNGKey(1), (B2, fc_layers[0]),
                           dtype=jnp.float32)
    out2 = jax.block_until_ready(
        full_pose_discriminator(x2, params, batch_tile=128))
    ref2 = reference_forward(x2, params)
    assert out2.shape == (B2, 1)
    assert jnp.allclose(out2, ref2, atol=2e-3, rtol=2e-3), (
        float(jnp.max(jnp.abs(out2 - ref2))))

    print("KERNEL_OK")
</pallas_src>

<mosaic_0001>
module attributes {stable_mosaic.version = 11 : i64} {
  func.func @_full_pose_disc_kernel(%arg0: i32, %arg1: memref<256x64xbf16, #tpu.memory_space<vmem>>, %arg2: memref<64x128xbf16, #tpu.memory_space<vmem>>, %arg3: memref<1x128xf32, #tpu.memory_space<vmem>>, %arg4: memref<128x128xbf16, #tpu.memory_space<vmem>>, %arg5: memref<1x128xf32, #tpu.memory_space<vmem>>, %arg6: memref<1x128xf32, #tpu.memory_space<vmem>>, %arg7: memref<1xf32, #tpu.memory_space<smem>>, %arg8: memref<1x256xf32, #tpu.memory_space<vmem>>) attributes {dimension_semantics = [#tpu.dimension_semantics<parallel>], iteration_bounds = array<i64: 1>, scalar_prefetch = 0 : i64, scratch_operands = 0 : i64, tpu.core_type = #tpu.core_type<tc>, window_params = [{transform_indices = @transform_0, window_bounds = array<i64: 256, 64>}, {pipeline_mode = #tpu.pipeline_mode<synchronous>, transform_indices = @transform_1, window_bounds = array<i64: 64, 128>}, {pipeline_mode = #tpu.pipeline_mode<synchronous>, transform_indices = @transform_2, window_bounds = array<i64: 1, 128>}, {pipeline_mode = #tpu.pipeline_mode<synchronous>, transform_indices = @transform_3, window_bounds = array<i64: 128, 128>}, {pipeline_mode = #tpu.pipeline_mode<synchronous>, transform_indices = @transform_4, window_bounds = array<i64: 1, 128>}, {pipeline_mode = #tpu.pipeline_mode<synchronous>, transform_indices = @transform_5, window_bounds = array<i64: 1, 128>}, {transform_indices = @transform_6, window_bounds = array<i64: 1>}, {transform_indices = @transform_7, window_bounds = array<i64: 1, 256>}]} {
    %c0 = arith.constant 0 : index
    %c0_0 = arith.constant 0 : index
    %0 = vector.load %arg1[%c0, %c0_0] : memref<256x64xbf16, #tpu.memory_space<vmem>>, vector<256x64xbf16>
    %c0_1 = arith.constant 0 : index
    %c0_2 = arith.constant 0 : index
    %1 = vector.load %arg2[%c0_1, %c0_2] : memref<64x128xbf16, #tpu.memory_space<vmem>>, vector<64x128xbf16>
    %cst = arith.constant dense<0.000000e+00> : vector<256x128xf32>
    %2 = tpu.matmul %0, %1, %cst {dimension_numbers = #tpu.dot_dimension_numbers<[1], [0], [0], [1], [0, 0, 1, 1], [], []>} : vector<256x64xbf16>, vector<64x128xbf16>, vector<256x128xf32> -> vector<256x128xf32>
    %c0_3 = arith.constant 0 : index
    %c0_4 = arith.constant 0 : index
    %3 = vector.load %arg3[%c0_3, %c0_4] : memref<1x128xf32, #tpu.memory_space<vmem>>, vector<1x128xf32>
    %4 = vector.broadcast %3 : vector<1x128xf32> to vector<256x128xf32>
    %5 = arith.addf %2, %4 : vector<256x128xf32>
    %cst_5 = arith.constant 0.000000e+00 : f32
    %6 = vector.broadcast %cst_5 : f32 to vector<256x128xf32>
    %7 = arith.maximumf %5, %6 : vector<256x128xf32>
    %8 = arith.truncf %7 : vector<256x128xf32> to vector<256x128xbf16>
    %c0_6 = arith.constant 0 : index
    %c0_7 = arith.constant 0 : index
    %9 = vector.load %arg4[%c0_6, %c0_7] : memref<128x128xbf16, #tpu.memory_space<vmem>>, vector<128x128xbf16>
    %cst_8 = arith.constant dense<0.000000e+00> : vector<256x128xf32>
    %10 = tpu.matmul %8, %9, %cst_8 {dimension_numbers = #tpu.dot_dimension_numbers<[1], [0], [0], [1], [0, 0, 1, 1], [], []>} : vector<256x128xbf16>, vector<128x128xbf16>, vector<256x128xf32> -> vector<256x128xf32>
    %c0_9 = arith.constant 0 : index
    %c0_10 = arith.constant 0 : index
    %11 = vector.load %arg5[%c0_9, %c0_10] : memref<1x128xf32, #tpu.memory_space<vmem>>, vector<1x128xf32>
    %12 = vector.broadcast %11 : vector<1x128xf32> to vector<256x128xf32>
    %13 = arith.addf %10, %12 : vector<256x128xf32>
    %cst_11 = arith.constant 0.000000e+00 : f32
    %14 = vector.broadcast %cst_11 : f32 to vector<256x128xf32>
    %15 = arith.maximumf %13, %14 : vector<256x128xf32>
    %c0_12 = arith.constant 0 : index
    %c0_13 = arith.constant 0 : index
    %16 = vector.load %arg6[%c0_12, %c0_13] : memref<1x128xf32, #tpu.memory_space<vmem>>, vector<1x128xf32>
    %17 = vector.broadcast %16 : vector<1x128xf32> to vector<256x128xf32>
    %18 = arith.mulf %15, %17 : vector<256x128xf32>
    %cst_14 = arith.constant dense<0.000000e+00> : vector<256xf32>
    %19 = vector.multi_reduction <add>, %18, %cst_14 [1] : vector<256x128xf32> to vector<256xf32>
    %c0_15 = arith.constant 0 : index
    %20 = memref.load %arg7[%c0_15] : memref<1xf32, #tpu.memory_space<smem>>
    %21 = vector.broadcast %20 : f32 to vector<256xf32>
    %22 = arith.addf %19, %21 : vector<256xf32>
    %23 = vector.shape_cast %22 : vector<256xf32> to vector<1x256xf32>
    %c0_16 = arith.constant 0 : index
    %c0_17 = arith.constant 0 : index
    %24 = vector.load %arg8[%c0_16, %c0_17] : memref<1x256xf32, #tpu.memory_space<vmem>>, vector<1x256xf32>
    tpu.vector_store %arg8[%c0_16, %c0_17], %23 {strides = array<i32>} : memref<1x256xf32, #tpu.memory_space<vmem>>, vector<1x256xf32>,
    return
  }
  func.func @transform_0(%arg0: i32) -> (i32, i32) {
    %c0_i32 = arith.constant 0 : i32
    %c0_i32_0 = arith.constant 0 : i32
    return %arg0, %c0_i32 : i32, i32
  }
  func.func @transform_1(%arg0: i32) -> (i32, i32) {
    %c0_i32 = arith.constant 0 : i32
    %c0_i32_0 = arith.constant 0 : i32
    %c0_i32_1 = arith.constant 0 : i32
    return %c0_i32, %c0_i32_0 : i32, i32
  }
  func.func @transform_2(%arg0: i32) -> (i32, i32) {
    %c0_i32 = arith.constant 0 : i32
    %c0_i32_0 = arith.constant 0 : i32
    %c0_i32_1 = arith.constant 0 : i32
    return %c0_i32, %c0_i32_0 : i32, i32
  }
  func.func @transform_3(%arg0: i32) -> (i32, i32) {
    %c0_i32 = arith.constant 0 : i32
    %c0_i32_0 = arith.constant 0 : i32
    %c0_i32_1 = arith.constant 0 : i32
    return %c0_i32, %c0_i32_0 : i32, i32
  }
  func.func @transform_4(%arg0: i32) -> (i32, i32) {
    %c0_i32 = arith.constant 0 : i32
    %c0_i32_0 = arith.constant 0 : i32
    %c0_i32_1 = arith.constant 0 : i32
    return %c0_i32, %c0_i32_0 : i32, i32
  }
  func.func @transform_5(%arg0: i32) -> (i32, i32) {
    %c0_i32 = arith.constant 0 : i32
    %c0_i32_0 = arith.constant 0 : i32
    %c0_i32_1 = arith.constant 0 : i32
    return %c0_i32, %c0_i32_0 : i32, i32
  }
  func.func @transform_6(%arg0: i32) -> i32 {
    %c0_i32 = arith.constant 0 : i32
    %c0_i32_0 = arith.constant 0 : i32
    return %c0_i32 : i32
  }
  func.func @transform_7(%arg0: i32) -> (i32, i32) {
    %c0_i32 = arith.constant 0 : i32
    %c0_i32_0 = arith.constant 0 : i32
    return %c0_i32, %arg0 : i32, i32
  }
}

</mosaic_0001>

<llo_original>
// kernel: tpu_custom_call.1
$region0: #{tpu_custom_call.1}
  #allocation0 [shape = 'u32[]', space=smem, size = 0x4, offset = 0x4, fixed_abs, tag = 'smem constant byte address 0x4 - core index']
  #allocation1 [shape = 'u32[144,128]{1,0:T(1,128)}', space=vmem, size = 0x12000, scoped, tag = 'internal scratch']
  #allocation2 [shape = 'f32[1]{0:T(128)S(6)}', space=smem, size = 0x200, scoped, tag = 'scoped memory for tpu_custom_call.1']
  %s0 = inlined_call_operand.vmem [shape: bf16[256,64], index: 0, kind: input, shape index: {}]
  %s1 = inlined_call_operand.vmem [shape: bf16[64,128], index: 1, kind: input, shape index: {}]
  %s2 = inlined_call_operand.vmem [shape: f32[1,128], index: 2, kind: input, shape index: {}]
  %s3 = inlined_call_operand.vmem [shape: bf16[128,128], index: 3, kind: input, shape index: {}]
  %s4 = inlined_call_operand.vmem [shape: f32[1,128], index: 4, kind: input, shape index: {}]
  %s5 = inlined_call_operand.vmem [shape: f32[1,128], index: 5, kind: input, shape index: {}]
  %s6 = inlined_call_operand.<no memory space> [shape: f32[1], index: 6, kind: input, shape index: {}]
  %s7 = inlined_call_operand.hbm [shape: f32[1,256], index: 7, kind: output, shape index: {}]
  %s8 = sld [smem:[#allocation0]]
  $region38: #{tpu_custom_call.1} parent=0
    _
  %s10 = ssub.s32 1, %s8
  %s11 = scalar_select 0, %s10, %s8
  %12 = sst [smem:[#allocation2]] %s6
  $region1: #{tpu_custom_call.1} parent=0
    #allocation3 [shape = 'u8[1024]{0}', space=vmem, size = 0x400, scoped, tag = 'output window, operand 0, single buffered']
    #allocation4 [shape = 's32[1]{0}', space=sflag, size = 0x4, scoped, tag = 'scoped memory for tpu_custom_call.1']
    %13 = vsyncpa [#allocation4], 0
    // Predicated region
    $region2: #{tpu_custom_call.1} parent=1 // pred_check
      _
    $region3: #{tpu_custom_call.1} parent=1 // pred_check_branch
      %15 = sbr.rel (0) target = $region5
    $region4: #{tpu_custom_call.1} parent=1 // pred_region
      _
    $region5: #{tpu_custom_call.1} parent=1 // pred_fallthru
      _
    // Predicated region
    $region6: #{tpu_custom_call.1} parent=1 // pred_check
      _
    $region7: #{tpu_custom_call.1} parent=1 // pred_check_branch
      %17 = sbr.rel (0) target = $region9
    $region8: #{tpu_custom_call.1} parent=1 // pred_region
      _
    $region9: #{tpu_custom_call.1} parent=1 // pred_fallthru
      _
    // Predicated region
    $region10: #{tpu_custom_call.1} parent=1 // pred_check
      _
    $region11: #{tpu_custom_call.1} parent=1 // pred_check_branch
      %19 = sbr.rel (0) target = $region13
    $region12: #{tpu_custom_call.1} parent=1 // pred_region
      _
    $region13: #{tpu_custom_call.1} parent=1 // pred_fallthru
      _
    // Predicated region
    $region14: #{tpu_custom_call.1} parent=1 // pred_check
      _
    $region15: #{tpu_custom_call.1} parent=1 // pred_check_branch
      %21 = sbr.rel (0) target = $region17
    $region16: #{tpu_custom_call.1} parent=1 // pred_region
      _
    $region17: #{tpu_custom_call.1} parent=1 // pred_fallthru
      _
    // Predicated region
    $region18: #{tpu_custom_call.1} parent=1 // pred_check
      _
    $region19: #{tpu_custom_call.1} parent=1 // pred_check_branch
      %23 = sbr.rel (0) target = $region21
    $region20: #{tpu_custom_call.1} parent=1 // pred_region
      _
    $region21: #{tpu_custom_call.1} parent=1 // pred_fallthru
      _
    // Predicated region
    $region22: #{tpu_custom_call.1} parent=1 // pred_check
      _
    $region23: #{tpu_custom_call.1} parent=1 // pred_check_branch
      %25 = sbr.rel (0) target = $region25
    $region24: #{tpu_custom_call.1} parent=1 // pred_region
      _
    $region25: #{tpu_custom_call.1} parent=1 // pred_fallthru
      _
    // Predicated region
    $region26: #{tpu_custom_call.1} parent=1 // pred_check
      _
    $region27: #{tpu_custom_call.1} parent=1 // pred_check_branch
      %27 = sbr.rel (0) target = $region29
    $region28: #{tpu_custom_call.1} parent=1 // pred_region
      _
    $region29: #{tpu_custom_call.1} parent=1 // pred_fallthru
      _
    %v29 = vld [vmem:[%s0] sm:$0xf]
    %v30 = vld [vmem:[%s0 + $0x4] sm:$0xf]
    %v31 = vld [vmem:[%s0 + $0x8] sm:$0xf]
    %v32 = vld [vmem:[%s0 + $0xc] sm:$0xf]
    %v33 = vld [vmem:[%s0 + $0x10] sm:$0xf]
    %v34 = vld [vmem:[%s0 + $0x14] sm:$0xf]
    %v35 = vld [vmem:[%s0 + $0x18] sm:$0xf]
    %v36 = vld [vmem:[%s0 + $0x1c] sm:$0xf]
    %v37 = vld [vmem:[%s0 + $0x20] sm:$0xf]
    %v38 = vld [vmem:[%s0 + $0x24] sm:$0xf]
    %v39 = vld [vmem:[%s0 + $0x28] sm:$0xf]
    %v40 = vld [vmem:[%s0 + $0x2c] sm:$0xf]
    %v41 = vld [vmem:[%s0 + $0x30] sm:$0xf]
    %v42 = vld [vmem:[%s0 + $0x34] sm:$0xf]
    %v43 = vld [vmem:[%s0 + $0x38] sm:$0xf]
    %v44 = vld [vmem:[%s0 + $0x3c] sm:$0xf]
    %v45 = vld [vmem:[%s0 + $0x40] sm:$0xf]
    %v46 = vld [vmem:[%s0 + $0x44] sm:$0xf]
    %v47 = vld [vmem:[%s0 + $0x48] sm:$0xf]
    %v48 = vld [vmem:[%s0 + $0x4c] sm:$0xf]
    %v49 = vld [vmem:[%s0 + $0x50] sm:$0xf]
    %v50 = vld [vmem:[%s0 + $0x54] sm:$0xf]
    %v51 = vld [vmem:[%s0 + $0x58] sm:$0xf]
    %v52 = vld [vmem:[%s0 + $0x5c] sm:$0xf]
    %v53 = vld [vmem:[%s0 + $0x60] sm:$0xf]
    %v54 = vld [vmem:[%s0 + $0x64] sm:$0xf]
    %v55 = vld [vmem:[%s0 + $0x68] sm:$0xf]
    %v56 = vld [vmem:[%s0 + $0x6c] sm:$0xf]
    %v57 = vld [vmem:[%s0 + $0x70] sm:$0xf]
    %v58 = vld [vmem:[%s0 + $0x74] sm:$0xf]
    %v59 = vld [vmem:[%s0 + $0x78] sm:$0xf]
    %v60 = vld [vmem:[%s0 + $0x7c] sm:$0xf]
    %v61 = vld [vmem:[%s1] sm:$0xf]
    %v62 = vld [vmem:[%s1 + $0x4] sm:$0xf]
    %v63 = vld [vmem:[%s1 + $0x8] sm:$0xf]
    %v64 = vld [vmem:[%s1 + $0xc] sm:$0xf]
    %v65 = vld [vmem:[%s1 + $0x10] sm:$0xf]
    %v66 = vld [vmem:[%s1 + $0x14] sm:$0xf]
    %v67 = vld [vmem:[%s1 + $0x18] sm:$0xf]
    %v68 = vld [vmem:[%s1 + $0x1c] sm:$0xf]
    %v69 = vld [vmem:[%s2] sm:$0x1]
    %v71 = vlaneseq
    %v72 = vshrl.u32 %v71, 7
    %v73 = vsub.s32 0, %v72
    %v74 = vrot.slane %v69, %v73
    %v108 = vunpack.c.l.b16 %v29
    %v109 = vunpack.c.l.b16 %v30
    %v110 = vunpack.c.l.b16 %v31
    %v111 = vunpack.c.l.b16 %v32
    %v112 = vunpack.c.l.b16 %v33
    %v113 = vunpack.c.l.b16 %v34
    %v114 = vunpack.c.l.b16 %v35
    %v115 = vunpack.c.l.b16 %v36
    %v116 = vunpack.c.l.b16 %v37
    %v117 = vunpack.c.l.b16 %v38
    %v118 = vunpack.c.l.b16 %v39
    %v119 = vunpack.c.l.b16 %v40
    %v120 = vunpack.c.l.b16 %v41
    %v121 = vunpack.c.l.b16 %v42
    %v122 = vunpack.c.l.b16 %v43
    %v123 = vunpack.c.l.b16 %v44
    %v124 = vunpack.c.l.b16 %v45
    %v125 = vunpack.c.l.b16 %v46
    %v126 = vunpack.c.l.b16 %v47
    %v127 = vunpack.c.l.b16 %v48
    %v128 = vunpack.c.l.b16 %v49
    %v129 = vunpack.c.l.b16 %v50
    %v130 = vunpack.c.l.b16 %v51
    %v131 = vunpack.c.l.b16 %v52
    %v132 = vunpack.c.l.b16 %v53
    %v133 = vunpack.c.l.b16 %v54
    %v134 = vunpack.c.l.b16 %v55
    %v135 = vunpack.c.l.b16 %v56
    %v136 = vunpack.c.l.b16 %v57
    %v137 = vunpack.c.l.b16 %v58
    %v138 = vunpack.c.l.b16 %v59
    %v139 = vunpack.c.l.b16 %v60
    %v140 = vpack.c.b16 %v109, %v108
    %v141 = vpack.c.b16 %v111, %v110
    %v142 = vpack.c.b16 %v113, %v112
    %v143 = vpack.c.b16 %v115, %v114
    %v144 = vpack.c.b16 %v117, %v116
    %v145 = vpack.c.b16 %v119, %v118
    %v146 = vpack.c.b16 %v121, %v120
    %v147 = vpack.c.b16 %v123, %v122
    %v148 = vpack.c.b16 %v125, %v124
    %v149 = vpack.c.b16 %v127, %v126
    %v150 = vpack.c.b16 %v129, %v128
    %v151 = vpack.c.b16 %v131, %v130
    %v152 = vpack.c.b16 %v133, %v132
    %v153 = vpack.c.b16 %v135, %v134
    %v154 = vpack.c.b16 %v137, %v136
    %v155 = vpack.c.b16 %v139, %v138
    %v164 = vunpack.c.l.b16 %v61
    %v165 = vunpack.c.l.b16 %v62
    %v166 = vunpack.c.l.b16 %v63
    %v167 = vunpack.c.l.b16 %v64
    %v168 = vunpack.c.l.b16 %v65
    %v169 = vunpack.c.l.b16 %v66
    %v170 = vunpack.c.l.b16 %v67
    %v171 = vunpack.c.l.b16 %v68
    %v172 = vpack.c.b16 %v165, %v164
    %v173 = vpack.c.b16 %v167, %v166
    %v174 = vpack.c.b16 %v169, %v168
    %v175 = vpack.c.b16 %v171, %v170
    %vm180 = vcmask 523264
    %v182 = vsel %vm180, %v140, 0
    %v185 = vsel %vm180, %v141, 0
    %v188 = vsel %vm180, %v142, 0
    %v191 = vsel %vm180, %v143, 0
    %v194 = vsel %vm180, %v144, 0
    %v197 = vsel %vm180, %v145, 0
    %v200 = vsel %vm180, %v146, 0
    %v203 = vsel %vm180, %v147, 0
    %v206 = vsel %vm180, %v148, 0
    %v209 = vsel %vm180, %v149, 0
    %v212 = vsel %vm180, %v150, 0
    %v215 = vsel %vm180, %v151, 0
    %v218 = vsel %vm180, %v152, 0
    %v221 = vsel %vm180, %v153, 0
    %v224 = vsel %vm180, %v154, 0
    %v227 = vsel %vm180, %v155, 0
    %229 = vmatprep.subr.bf16.mxu0 0
    %230 = vmatpush1.bf16.msra.mxu0 %v172
    %231 = vmatprep.subr.bf16.mxu0 0
    %232 = vmatpush1.bf16.msra.mxu0 %v173
    %233 = vmatprep.subr.bf16.mxu0 0
    %234 = vmatpush1.bf16.msra.mxu0 %v174
    %235 = vmatprep.subr.bf16.mxu0 0
    %236 = vmatpush1.bf16.msra.mxu0 %v175
    %237 = vmatprep.subr.bf16.mxu0 0
    %238 = vmatpush1.bf16.msra.mxu0 0
    %239 = vmatprep.subr.bf16.mxu0 0
    %240 = vmatpush1.bf16.msra.mxu0 0
    %241 = vmatprep.subr.bf16.mxu0 0
    %242 = vmatpush1.bf16.msra.mxu0 0
    %243 = vmatprep.subr.bf16.mxu0 0
    %244 = vmatpush1.bf16.msra.mxu0 0
    %245 = vmatprep.subr.bf16.mxu0 0
    %246 = vmatpush1.bf16.msra.mxu0 0
    %247 = vmatprep.subr.bf16.mxu0 0
    %248 = vmatpush1.bf16.msra.mxu0 0
    %249 = vmatprep.subr.bf16.mxu0 0
    %250 = vmatpush1.bf16.msra.mxu0 0
    %251 = vmatprep.subr.bf16.mxu0 0
    %252 = vmatpush1.bf16.msra.mxu0 0
    %253 = vmatprep.subr.bf16.mxu0 0
    %254 = vmatpush1.bf16.msra.mxu0 0
    %255 = vmatprep.subr.bf16.mxu0 0
    %256 = vmatpush1.bf16.msra.mxu0 0
    %257 = vmatprep.subr.bf16.mxu0 0
    %258 = vmatpush1.bf16.msra.mxu0 0
    %259 = vmatprep.subr.bf16.mxu0 0
    %260 = vmatpush1.bf16.msra.mxu0 0
    %261 = vmatprep.mubr.bf16.mxu0 0
    %262 = vmatmul.mubr.bf16.gmra.mrb[0].mxu0 %v182
    %v263 = vpop.f32.mrb[0].mxu0
    %v264 = vadd.f32 %v74, %v263
    %v265 = vpop.f32.mrb[0].mxu0
    %v266 = vpop.f32.mrb[0].mxu0
    %v267 = vadd.f32 %v74, %v266
    %v268 = vpop.f32.mrb[0].mxu0
    %269 = vmatprep.mubr.bf16.mxu0 0
    %270 = vmatmul.mubr.bf16.gmra.mrb[0].mxu0 %v185
    %v271 = vpop.f32.mrb[0].mxu0
    %v272 = vadd.f32 %v74, %v271
    %v273 = vpop.f32.mrb[0].mxu0
    %v274 = vpop.f32.mrb[0].mxu0
    %v275 = vadd.f32 %v74, %v274
    %v276 = vpop.f32.mrb[0].mxu0
    %277 = vmatprep.mubr.bf16.mxu0 0
    %278 = vmatmul.mubr.bf16.gmra.mrb[0].mxu0 %v188
    %v279 = vpop.f32.mrb[0].mxu0
    %v280 = vadd.f32 %v74, %v279
    %v281 = vpop.f32.mrb[0].mxu0
    %v282 = vpop.f32.mrb[0].mxu0
    %v283 = vadd.f32 %v74, %v282
    %v284 = vpop.f32.mrb[0].mxu0
    %285 = vmatprep.mubr.bf16.mxu0 0
    %286 = vmatmul.mubr.bf16.gmra.mrb[0].mxu0 %v191
    %v287 = vpop.f32.mrb[0].mxu0
    %v288 = vadd.f32 %v74, %v287
    %v289 = vpop.f32.mrb[0].mxu0
    %v290 = vpop.f32.mrb[0].mxu0
    %v291 = vadd.f32 %v74, %v290
    %v292 = vpop.f32.mrb[0].mxu0
    %293 = vmatprep.mubr.bf16.mxu0 0
    %294 = vmatmul.mubr.bf16.gmra.mrb[0].mxu0 %v194
    %v295 = vpop.f32.mrb[0].mxu0
    %v296 = vadd.f32 %v74, %v295
    %v297 = vpop.f32.mrb[0].mxu0
    %v298 = vpop.f32.mrb[0].mxu0
    %v299 = vadd.f32 %v74, %v298
    %v300 = vpop.f32.mrb[0].mxu0
    %301 = vmatprep.mubr.bf16.mxu0 0
    %302 = vmatmul.mubr.bf16.gmra.mrb[0].mxu0 %v197
    %v303 = vpop.f32.mrb[0].mxu0
    %v304 = vadd.f32 %v74, %v303
    %v305 = vpop.f32.mrb[0].mxu0
    %v306 = vpop.f32.mrb[0].mxu0
    %v307 = vadd.f32 %v74, %v306
    %v308 = vpop.f32.mrb[0].mxu0
    %309 = vmatprep.mubr.bf16.mxu0 0
    %310 = vmatmul.mubr.bf16.gmra.mrb[0].mxu0 %v200
    %v311 = vpop.f32.mrb[0].mxu0
    %v312 = vadd.f32 %v74, %v311
    %v313 = vpop.f32.mrb[0].mxu0
    %v314 = vpop.f32.mrb[0].mxu0
    %v315 = vadd.f32 %v74, %v314
    %v316 = vpop.f32.mrb[0].mxu0
    %317 = vmatprep.mubr.bf16.mxu0 0
    %318 = vmatmul.mubr.bf16.gmra.mrb[0].mxu0 %v203
    %v319 = vpop.f32.mrb[0].mxu0
    %v320 = vadd.f32 %v74, %v319
    %v321 = vpop.f32.mrb[0].mxu0
    %v322 = vpop.f32.mrb[0].mxu0
    %v323 = vadd.f32 %v74, %v322
    %v324 = vpop.f32.mrb[0].mxu0
    %325 = vmatprep.mubr.bf16.mxu0 0
    %326 = vmatmul.mubr.bf16.gmra.mrb[0].mxu0 %v206
    %v327 = vpop.f32.mrb[0].mxu0
    %v328 = vadd.f32 %v74, %v327
    %v329 = vpop.f32.mrb[0].mxu0
    %v330 = vpop.f32.mrb[0].mxu0
    %v331 = vadd.f32 %v74, %v330
    %v332 = vpop.f32.mrb[0].mxu0
    %333 = vmatprep.mubr.bf16.mxu0 0
    %334 = vmatmul.mubr.bf16.gmra.mrb[0].mxu0 %v209
    %v335 = vpop.f32.mrb[0].mxu0
    %v336 = vadd.f32 %v74, %v335
    %v337 = vpop.f32.mrb[0].mxu0
    %v338 = vpop.f32.mrb[0].mxu0
    %v339 = vadd.f32 %v74, %v338
    %v340 = vpop.f32.mrb[0].mxu0
    %341 = vmatprep.mubr.bf16.mxu0 0
    %342 = vmatmul.mubr.bf16.gmra.mrb[0].mxu0 %v212
    %v343 = vpop.f32.mrb[0].mxu0
    %v344 = vadd.f32 %v74, %v343
    %v345 = vpop.f32.mrb[0].mxu0
    %v346 = vpop.f32.mrb[0].mxu0
    %v347 = vadd.f32 %v74, %v346
    %v348 = vpop.f32.mrb[0].mxu0
    %349 = vmatprep.mubr.bf16.mxu0 0
    %350 = vmatmul.mubr.bf16.gmra.mrb[0].mxu0 %v215
    %v351 = vpop.f32.mrb[0].mxu0
    %v352 = vadd.f32 %v74, %v351
    %v353 = vpop.f32.mrb[0].mxu0
    %v354 = vpop.f32.mrb[0].mxu0
    %v355 = vadd.f32 %v74, %v354
    %v356 = vpop.f32.mrb[0].mxu0
    %357 = vmatprep.mubr.bf16.mxu0 0
    %358 = vmatmul.mubr.bf16.gmra.mrb[0].mxu0 %v218
    %v359 = vpop.f32.mrb[0].mxu0
    %v360 = vadd.f32 %v74, %v359
    %v361 = vpop.f32.mrb[0].mxu0
    %v362 = vpop.f32.mrb[0].mxu0
    %v363 = vadd.f32 %v74, %v362
    %v364 = vpop.f32.mrb[0].mxu0
    %365 = vmatprep.mubr.bf16.mxu0 0
    %366 = vmatmul.mubr.bf16.gmra.mrb[0].mxu0 %v221
    %v367 = vpop.f32.mrb[0].mxu0
    %v368 = vadd.f32 %v74, %v367
    %v369 = vpop.f32.mrb[0].mxu0
    %v370 = vpop.f32.mrb[0].mxu0
    %v371 = vadd.f32 %v74, %v370
    %v372 = vpop.f32.mrb[0].mxu0
    %373 = vmatprep.mubr.bf16.mxu0 0
    %374 = vmatmul.mubr.bf16.gmra.mrb[0].mxu0 %v224
    %v375 = vpop.f32.mrb[0].mxu0
    %v376 = vadd.f32 %v74, %v375
    %v377 = vpop.f32.mrb[0].mxu0
    %v378 = vpop.f32.mrb[0].mxu0
    %v379 = vadd.f32 %v74, %v378
    %v380 = vpop.f32.mrb[0].mxu0
    %381 = vmatprep.mubr.bf16.mxu0 0
    %382 = vmatmul.mubr.bf16.gmra.mrb[0].mxu0 %v227
    %v383 = vpop.f32.mrb[0].mxu0
    %v384 = vadd.f32 %v74, %v383
    %v385 = vpop.f32.mrb[0].mxu0
    %v386 = vpop.f32.mrb[0].mxu0
    %v387 = vadd.f32 %v74, %v386
    %v388 = vpop.f32.mrb[0].mxu0
    %389 = vdwg.mxu0
    %v390 = vmax.f32 %v264, 0.0
    %v391 = vmax.f32 %v267, 0.0
    %v392 = vmax.f32 %v272, 0.0
    %v393 = vmax.f32 %v275, 0.0
    %v394 = vmax.f32 %v280, 0.0
    %v395 = vmax.f32 %v283, 0.0
    %v396 = vmax.f32 %v288, 0.0
    %v397 = vmax.f32 %v291, 0.0
    %v398 = vmax.f32 %v296, 0.0
    %v399 = vmax.f32 %v299, 0.0
    %v400 = vmax.f32 %v304, 0.0
    %v401 = vmax.f32 %v307, 0.0
    %v402 = vmax.f32 %v312, 0.0
    %v403 = vmax.f32 %v315, 0.0
    %v404 = vmax.f32 %v320, 0.0
    %v405 = vmax.f32 %v323, 0.0
    %v406 = vmax.f32 %v328, 0.0
    %v407 = vmax.f32 %v331, 0.0
    %v408 = vmax.f32 %v336, 0.0
    %v409 = vmax.f32 %v339, 0.0
    %v410 = vmax.f32 %v344, 0.0
    %v411 = vmax.f32 %v347, 0.0
    %v412 = vmax.f32 %v352, 0.0
    %v413 = vmax.f32 %v355, 0.0
    %v414 = vmax.f32 %v360, 0.0
    %v415 = vmax.f32 %v363, 0.0
    %v416 = vmax.f32 %v368, 0.0
    %v417 = vmax.f32 %v371, 0.0
    %v418 = vmax.f32 %v376, 0.0
    %v419 = vmax.f32 %v379, 0.0
    %v420 = vmax.f32 %v384, 0.0
    %v421 = vmax.f32 %v387, 0.0
    %v422 = vpack.c.bf16 %v391, %v390
    %v423 = vpack.c.bf16 %v393, %v392
    %v424 = vpack.c.bf16 %v395, %v394
    %v425 = vpack.c.bf16 %v397, %v396
    %v426 = vpack.c.bf16 %v399, %v398
    %v427 = vpack.c.bf16 %v401, %v400
    %v428 = vpack.c.bf16 %v403, %v402
    %v429 = vpack.c.bf16 %v405, %v404
    %v430 = vpack.c.bf16 %v407, %v406
    %v431 = vpack.c.bf16 %v409, %v408
    %v432 = vpack.c.bf16 %v411, %v410
    %v433 = vpack.c.bf16 %v413, %v412
    %v434 = vpack.c.bf16 %v415, %v414
    %v435 = vpack.c.bf16 %v417, %v416
    %v436 = vpack.c.bf16 %v419, %v418
    %v437 = vpack.c.bf16 %v421, %v420
    %v438 = vld [vmem:[%s3] sm:$0xf]
    %v439 = vld [vmem:[%s3 + $0x4] sm:$0xf]
    %v440 = vld [vmem:[%s3 + $0x8] sm:$0xf]
    %v441 = vld [vmem:[%s3 + $0xc] sm:$0xf]
    %v442 = vld [vmem:[%s3 + $0x10] sm:$0xf]
    %v443 = vld [vmem:[%s3 + $0x14] sm:$0xf]
    %v444 = vld [vmem:[%s3 + $0x18] sm:$0xf]
    %v445 = vld [vmem:[%s3 + $0x1c] sm:$0xf]
    %v446 = vld [vmem:[%s3 + $0x20] sm:$0xf]
    %v447 = vld [vmem:[%s3 + $0x24] sm:$0xf]
    %v448 = vld [vmem:[%s3 + $0x28] sm:$0xf]
    %v449 = vld [vmem:[%s3 + $0x2c] sm:$0xf]
    %v450 = vld [vmem:[%s3 + $0x30] sm:$0xf]
    %v451 = vld [vmem:[%s3 + $0x34] sm:$0xf]
    %v452 = vld [vmem:[%s3 + $0x38] sm:$0xf]
    %v453 = vld [vmem:[%s3 + $0x3c] sm:$0xf]
    %v454 = vld [vmem:[%s4] sm:$0x1]
    %v456 = vlaneseq
    %v457 = vshrl.u32 %v456, 7
    %v458 = vsub.s32 0, %v457
    %v459 = vrot.slane %v454, %v458
    %v477 = vunpack.c.l.b16 %v438
    %v478 = vunpack.c.l.b16 %v439
    %v479 = vunpack.c.l.b16 %v440
    %v480 = vunpack.c.l.b16 %v441
    %v481 = vunpack.c.l.b16 %v442
    %v482 = vunpack.c.l.b16 %v443
    %v483 = vunpack.c.l.b16 %v444
    %v484 = vunpack.c.l.b16 %v445
    %v485 = vunpack.c.l.b16 %v446
    %v486 = vunpack.c.l.b16 %v447
    %v487 = vunpack.c.l.b16 %v448
    %v488 = vunpack.c.l.b16 %v449
    %v489 = vunpack.c.l.b16 %v450
    %v490 = vunpack.c.l.b16 %v451
    %v491 = vunpack.c.l.b16 %v452
    %v492 = vunpack.c.l.b16 %v453
    %v493 = vpack.c.b16 %v478, %v477
    %v494 = vpack.c.b16 %v480, %v479
    %v495 = vpack.c.b16 %v482, %v481
    %v496 = vpack.c.b16 %v484, %v483
    %v497 = vpack.c.b16 %v486, %v485
    %v498 = vpack.c.b16 %v488, %v487
    %v499 = vpack.c.b16 %v490, %v489
    %v500 = vpack.c.b16 %v492, %v491
    %509 = vmatprep.subr.bf16.mxu0 0
    %510 = vmatpush1.bf16.msra.mxu0 %v493
    %511 = vmatprep.subr.bf16.mxu0 0
    %512 = vmatpush1.bf16.msra.mxu0 %v494
    %513 = vmatprep.subr.bf16.mxu0 0
    %514 = vmatpush1.bf16.msra.mxu0 %v495
    %515 = vmatprep.subr.bf16.mxu0 0
    %516 = vmatpush1.bf16.msra.mxu0 %v496
    %517 = vmatprep.subr.bf16.mxu0 0
    %518 = vmatpush1.bf16.msra.mxu0 %v497
    %519 = vmatprep.subr.bf16.mxu0 0
    %520 = vmatpush1.bf16.msra.mxu0 %v498
    %521 = vmatprep.subr.bf16.mxu0 0
    %522 = vmatpush1.bf16.msra.mxu0 %v499
    %523 = vmatprep.subr.bf16.mxu0 0
    %524 = vmatpush1.bf16.msra.mxu0 %v500
    %525 = vmatprep.subr.bf16.mxu0 0
    %526 = vmatpush1.bf16.msra.mxu0 0
    %527 = vmatprep.subr.bf16.mxu0 0
    %528 = vmatpush1.bf16.msra.mxu0 0
    %529 = vmatprep.subr.bf16.mxu0 0
    %530 = vmatpush1.bf16.msra.mxu0 0
    %531 = vmatprep.subr.bf16.mxu0 0
    %532 = vmatpush1.bf16.msra.mxu0 0
    %533 = vmatprep.subr.bf16.mxu0 0
    %534 = vmatpush1.bf16.msra.mxu0 0
    %535 = vmatprep.subr.bf16.mxu0 0
    %536 = vmatpush1.bf16.msra.mxu0 0
    %537 = vmatprep.subr.bf16.mxu0 0
    %538 = vmatpush1.bf16.msra.mxu0 0
    %539 = vmatprep.subr.bf16.mxu0 0
    %540 = vmatpush1.bf16.msra.mxu0 0
    %541 = vmatprep.mubr.bf16.mxu0 0
    %542 = vmatmul.mubr.bf16.gmra.mrb[0].mxu0 %v422
    %v543 = vpop.f32.mrb[0].mxu0
    %v544 = vadd.f32 %v459, %v543
    %v545 = vpop.f32.mrb[0].mxu0
    %v546 = vpop.f32.mrb[0].mxu0
    %v547 = vadd.f32 %v459, %v546
    %v548 = vpop.f32.mrb[0].mxu0
    %549 = vmatprep.mubr.bf16.mxu0 0
    %550 = vmatmul.mubr.bf16.gmra.mrb[0].mxu0 %v423
    %v551 = vpop.f32.mrb[0].mxu0
    %v552 = vadd.f32 %v459, %v551
    %v553 = vpop.f32.mrb[0].mxu0
    %v554 = vpop.f32.mrb[0].mxu0
    %v555 = vadd.f32 %v459, %v554
    %v556 = vpop.f32.mrb[0].mxu0
    %557 = vmatprep.mubr.bf16.mxu0 0
    %558 = vmatmul.mubr.bf16.gmra.mrb[0].mxu0 %v424
    %v559 = vpop.f32.mrb[0].mxu0
    %v560 = vadd.f32 %v459, %v559
    %v561 = vpop.f32.mrb[0].mxu0
    %v562 = vpop.f32.mrb[0].mxu0
    %v563 = vadd.f32 %v459, %v562
    %v564 = vpop.f32.mrb[0].mxu0
    %565 = vmatprep.mubr.bf16.mxu0 0
    %566 = vmatmul.mubr.bf16.gmra.mrb[0].mxu0 %v425
    %v567 = vpop.f32.mrb[0].mxu0
    %v568 = vadd.f32 %v459, %v567
    %v569 = vpop.f32.mrb[0].mxu0
    %v570 = vpop.f32.mrb[0].mxu0
    %v571 = vadd.f32 %v459, %v570
    %v572 = vpop.f32.mrb[0].mxu0
    %573 = vmatprep.mubr.bf16.mxu0 0
    %574 = vmatmul.mubr.bf16.gmra.mrb[0].mxu0 %v426
    %v575 = vpop.f32.mrb[0].mxu0
    %v576 = vadd.f32 %v459, %v575
    %v577 = vpop.f32.mrb[0].mxu0
    %v578 = vpop.f32.mrb[0].mxu0
    %v579 = vadd.f32 %v459, %v578
    %v580 = vpop.f32.mrb[0].mxu0
    %581 = vmatprep.mubr.bf16.mxu0 0
    %582 = vmatmul.mubr.bf16.gmra.mrb[0].mxu0 %v427
    %v583 = vpop.f32.mrb[0].mxu0
    %v584 = vadd.f32 %v459, %v583
    %v585 = vpop.f32.mrb[0].mxu0
    %v586 = vpop.f32.mrb[0].mxu0
    %v587 = vadd.f32 %v459, %v586
    %v588 = vpop.f32.mrb[0].mxu0
    %589 = vmatprep.mubr.bf16.mxu0 0
    %590 = vmatmul.mubr.bf16.gmra.mrb[0].mxu0 %v428
    %v591 = vpop.f32.mrb[0].mxu0
    %v592 = vadd.f32 %v459, %v591
    %v593 = vpop.f32.mrb[0].mxu0
    %v594 = vpop.f32.mrb[0].mxu0
    %v595 = vadd.f32 %v459, %v594
    %v596 = vpop.f32.mrb[0].mxu0
    %597 = vmatprep.mubr.bf16.mxu0 0
    %598 = vmatmul.mubr.bf16.gmra.mrb[0].mxu0 %v429
    %v599 = vpop.f32.mrb[0].mxu0
    %v600 = vadd.f32 %v459, %v599
    %v601 = vpop.f32.mrb[0].mxu0
    %v602 = vpop.f32.mrb[0].mxu0
    %v603 = vadd.f32 %v459, %v602
    %v604 = vpop.f32.mrb[0].mxu0
    %605 = vmatprep.mubr.bf16.mxu0 0
    %606 = vmatmul.mubr.bf16.gmra.mrb[0].mxu0 %v430
    %v607 = vpop.f32.mrb[0].mxu0
    %v608 = vadd.f32 %v459, %v607
    %v609 = vpop.f32.mrb[0].mxu0
    %v610 = vpop.f32.mrb[0].mxu0
    %v611 = vadd.f32 %v459, %v610
    %v612 = vpop.f32.mrb[0].mxu0
    %613 = vmatprep.mubr.bf16.mxu0 0
    %614 = vmatmul.mubr.bf16.gmra.mrb[0].mxu0 %v431
    %v615 = vpop.f32.mrb[0].mxu0
    %v616 = vadd.f32 %v459, %v615
    %v617 = vpop.f32.mrb[0].mxu0
    %v618 = vpop.f32.mrb[0].mxu0
    %v619 = vadd.f32 %v459, %v618
    %v620 = vpop.f32.mrb[0].mxu0
    %621 = vmatprep.mubr.bf16.mxu0 0
    %622 = vmatmul.mubr.bf16.gmra.mrb[0].mxu0 %v432
    %v623 = vpop.f32.mrb[0].mxu0
    %v624 = vadd.f32 %v459, %v623
    %v625 = vpop.f32.mrb[0].mxu0
    %v626 = vpop.f32.mrb[0].mxu0
    %v627 = vadd.f32 %v459, %v626
    %v628 = vpop.f32.mrb[0].mxu0
    %629 = vmatprep.mubr.bf16.mxu0 0
    %630 = vmatmul.mubr.bf16.gmra.mrb[0].mxu0 %v433
    %v631 = vpop.f32.mrb[0].mxu0
    %v632 = vadd.f32 %v459, %v631
    %v633 = vpop.f32.mrb[0].mxu0
    %v634 = vpop.f32.mrb[0].mxu0
    %v635 = vadd.f32 %v459, %v634
    %v636 = vpop.f32.mrb[0].mxu0
    %637 = vmatprep.mubr.bf16.mxu0 0
    %638 = vmatmul.mubr.bf16.gmra.mrb[0].mxu0 %v434
    %v639 = vpop.f32.mrb[0].mxu0
    %v640 = vadd.f32 %v459, %v639
    %v641 = vpop.f32.mrb[0].mxu0
    %v642 = vpop.f32.mrb[0].mxu0
    %v643 = vadd.f32 %v459, %v642
    %v644 = vpop.f32.mrb[0].mxu0
    %645 = vmatprep.mubr.bf16.mxu0 0
    %646 = vmatmul.mubr.bf16.gmra.mrb[0].mxu0 %v435
    %v647 = vpop.f32.mrb[0].mxu0
    %v648 = vadd.f32 %v459, %v647
    %v649 = vpop.f32.mrb[0].mxu0
    %v650 = vpop.f32.mrb[0].mxu0
    %v651 = vadd.f32 %v459, %v650
    %v652 = vpop.f32.mrb[0].mxu0
    %653 = vmatprep.mubr.bf16.mxu0 0
    %654 = vmatmul.mubr.bf16.gmra.mrb[0].mxu0 %v436
    %v655 = vpop.f32.mrb[0].mxu0
    %v656 = vadd.f32 %v459, %v655
    %v657 = vpop.f32.mrb[0].mxu0
    %v658 = vpop.f32.mrb[0].mxu0
    %v659 = vadd.f32 %v459, %v658
    %v660 = vpop.f32.mrb[0].mxu0
    %661 = vmatprep.mubr.bf16.mxu0 0
    %662 = vmatmul.mubr.bf16.gmra.mrb[0].mxu0 %v437
    %v663 = vpop.f32.mrb[0].mxu0
    %v664 = vadd.f32 %v459, %v663
    %v665 = vpop.f32.mrb[0].mxu0
    %v666 = vpop.f32.mrb[0].mxu0
    %v667 = vadd.f32 %v459, %v666
    %v668 = vpop.f32.mrb[0].mxu0
    %669 = vdwg.mxu0
    %v670 = vmax.f32 %v544, 0.0
    %v671 = vmax.f32 %v547, 0.0
    %v672 = vmax.f32 %v552, 0.0
    %v673 = vmax.f32 %v555, 0.0
    %v674 = vmax.f32 %v560, 0.0
    %v675 = vmax.f32 %v563, 0.0
    %v676 = vmax.f32 %v568, 0.0
    %v677 = vmax.f32 %v571, 0.0
    %v678 = vmax.f32 %v576, 0.0
    %v679 = vmax.f32 %v579, 0.0
    %v680 = vmax.f32 %v584, 0.0
    %v681 = vmax.f32 %v587, 0.0
    %v682 = vmax.f32 %v592, 0.0
    %v683 = vmax.f32 %v595, 0.0
    %v684 = vmax.f32 %v600, 0.0
    %v685 = vmax.f32 %v603, 0.0
    %v686 = vmax.f32 %v608, 0.0
    %v687 = vmax.f32 %v611, 0.0
    %v688 = vmax.f32 %v616, 0.0
    %v689 = vmax.f32 %v619, 0.0
    %v690 = vmax.f32 %v624, 0.0
    %v691 = vmax.f32 %v627, 0.0
    %v692 = vmax.f32 %v632, 0.0
    %v693 = vmax.f32 %v635, 0.0
    %v694 = vmax.f32 %v640, 0.0
    %v695 = vmax.f32 %v643, 0.0
    %v696 = vmax.f32 %v648, 0.0
    %v697 = vmax.f32 %v651, 0.0
    %v698 = vmax.f32 %v656, 0.0
    %v699 = vmax.f32 %v659, 0.0
    %v700 = vmax.f32 %v664, 0.0
    %v701 = vmax.f32 %v667, 0.0
    %v702 = vld [vmem:[%s5] sm:$0x1]
    %v704 = vlaneseq
    %v705 = vshrl.u32 %v704, 7
    %v706 = vsub.s32 0, %v705
    %v707 = vrot.slane %v702, %v706
    %v709 = vmul.f32 %v670, %v707
    %v710 = vmul.f32 %v671, %v707
    %v711 = vmul.f32 %v672, %v707
    %v712 = vmul.f32 %v673, %v707
    %v713 = vmul.f32 %v674, %v707
    %v714 = vmul.f32 %v675, %v707
    %v715 = vmul.f32 %v676, %v707
    %v716 = vmul.f32 %v677, %v707
    %v717 = vmul.f32 %v678, %v707
    %v718 = vmul.f32 %v679, %v707
    %v719 = vmul.f32 %v680, %v707
    %v720 = vmul.f32 %v681, %v707
    %v721 = vmul.f32 %v682, %v707
    %v722 = vmul.f32 %v683, %v707
    %v723 = vmul.f32 %v684, %v707
    %v724 = vmul.f32 %v685, %v707
    %v725 = vmul.f32 %v686, %v707
    %v726 = vmul.f32 %v687, %v707
    %v727 = vmul.f32 %v688, %v707
    %v728 = vmul.f32 %v689, %v707
    %v729 = vmul.f32 %v690, %v707
    %v730 = vmul.f32 %v691, %v707
    %v731 = vmul.f32 %v692, %v707
    %v732 = vmul.f32 %v693, %v707
    %v733 = vmul.f32 %v694, %v707
    %v734 = vmul.f32 %v695, %v707
    %v735 = vmul.f32 %v696, %v707
    %v736 = vmul.f32 %v697, %v707
    %v737 = vmul.f32 %v698, %v707
    %v738 = vmul.f32 %v699, %v707
    %v739 = vmul.f32 %v700, %v707
    %v740 = vmul.f32 %v701, %v707
    %741 = vadd.xlane.f32.xlu0 %v709
    %v742 = vpop.xlane.xlu0 %741
    %743 = vadd.xlane.f32.xlu0 %v710
    %v744 = vpop.xlane.xlu0 %743
    %745 = vadd.xlane.f32.xlu0 %v711
    %v746 = vpop.xlane.xlu0 %745
    %747 = vadd.xlane.f32.xlu0 %v712
    %v748 = vpop.xlane.xlu0 %747
    %749 = vadd.xlane.f32.xlu0 %v713
    %v750 = vpop.xlane.xlu0 %749
    %751 = vadd.xlane.f32.xlu0 %v714
    %v752 = vpop.xlane.xlu0 %751
    %753 = vadd.xlane.f32.xlu0 %v715
    %v754 = vpop.xlane.xlu0 %753
    %755 = vadd.xlane.f32.xlu0 %v716
    %v756 = vpop.xlane.xlu0 %755
    %757 = vadd.xlane.f32.xlu0 %v717
    %v758 = vpop.xlane.xlu0 %757
    %759 = vadd.xlane.f32.xlu0 %v718
    %v760 = vpop.xlane.xlu0 %759
    %761 = vadd.xlane.f32.xlu0 %v719
    %v762 = vpop.xlane.xlu0 %761
    %763 = vadd.xlane.f32.xlu0 %v720
    %v764 = vpop.xlane.xlu0 %763
    %765 = vadd.xlane.f32.xlu0 %v721
    %v766 = vpop.xlane.xlu0 %765
    %767 = vadd.xlane.f32.xlu0 %v722
    %v768 = vpop.xlane.xlu0 %767
    %769 = vadd.xlane.f32.xlu0 %v723
    %v770 = vpop.xlane.xlu0 %769
    %771 = vadd.xlane.f32.xlu0 %v724
    %v772 = vpop.xlane.xlu0 %771
    %773 = vadd.xlane.f32.xlu0 %v725
    %v774 = vpop.xlane.xlu0 %773
    %775 = vadd.xlane.f32.xlu0 %v726
    %v776 = vpop.xlane.xlu0 %775
    %777 = vadd.xlane.f32.xlu0 %v727
    %v778 = vpop.xlane.xlu0 %777
    %779 = vadd.xlane.f32.xlu0 %v728
    %v780 = vpop.xlane.xlu0 %779
    %781 = vadd.xlane.f32.xlu0 %v729
    %v782 = vpop.xlane.xlu0 %781
    %783 = vadd.xlane.f32.xlu0 %v730
    %v784 = vpop.xlane.xlu0 %783
    %785 = vadd.xlane.f32.xlu0 %v731
    %v786 = vpop.xlane.xlu0 %785
    %787 = vadd.xlane.f32.xlu0 %v732
    %v788 = vpop.xlane.xlu0 %787
    %789 = vadd.xlane.f32.xlu0 %v733
    %v790 = vpop.xlane.xlu0 %789
    %791 = vadd.xlane.f32.xlu0 %v734
    %v792 = vpop.xlane.xlu0 %791
    %793 = vadd.xlane.f32.xlu0 %v735
    %v794 = vpop.xlane.xlu0 %793
    %795 = vadd.xlane.f32.xlu0 %v736
    %v796 = vpop.xlane.xlu0 %795
    %797 = vadd.xlane.f32.xlu0 %v737
    %v798 = vpop.xlane.xlu0 %797
    %799 = vadd.xlane.f32.xlu0 %v738
    %v800 = vpop.xlane.xlu0 %799
    %801 = vadd.xlane.f32.xlu0 %v739
    %v802 = vpop.xlane.xlu0 %801
    %803 = vadd.xlane.f32.xlu0 %v740
    %v804 = vpop.xlane.xlu0 %803
    %s805 = sld [smem:[#allocation2]]
    %v806 = vstv %s805
    %v807 = vadd.f32 %v742, %v806
    %v808 = vadd.f32 %v744, %v806
    %v809 = vadd.f32 %v746, %v806
    %v810 = vadd.f32 %v748, %v806
    %v811 = vadd.f32 %v750, %v806
    %v812 = vadd.f32 %v752, %v806
    %v813 = vadd.f32 %v754, %v806
    %v814 = vadd.f32 %v756, %v806
    %v815 = vadd.f32 %v758, %v806
    %v816 = vadd.f32 %v760, %v806
    %v817 = vadd.f32 %v762, %v806
    %v818 = vadd.f32 %v764, %v806
    %v819 = vadd.f32 %v766, %v806
    %v820 = vadd.f32 %v768, %v806
    %v821 = vadd.f32 %v770, %v806
    %v822 = vadd.f32 %v772, %v806
    %v823 = vadd.f32 %v774, %v806
    %v824 = vadd.f32 %v776, %v806
    %v825 = vadd.f32 %v778, %v806
    %v826 = vadd.f32 %v780, %v806
    %v827 = vadd.f32 %v782, %v806
    %v828 = vadd.f32 %v784, %v806
    %v829 = vadd.f32 %v786, %v806
    %v830 = vadd.f32 %v788, %v806
    %v831 = vadd.f32 %v790, %v806
    %v832 = vadd.f32 %v792, %v806
    %v833 = vadd.f32 %v794, %v806
    %v834 = vadd.f32 %v796, %v806
    %v835 = vadd.f32 %v798, %v806
    %v836 = vadd.f32 %v800, %v806
    %v837 = vadd.f32 %v802, %v806
    %v838 = vadd.f32 %v804, %v806
    %v871 = vlaneseq
    %v872 = vshrl.u32 %v871, 7
    %v873 = vsub.s32 0, %v872
    %v874 = vrot.slane %v807, %v873
    %v875 = vlaneseq
    %v876 = vshrl.u32 %v875, 7
    %v877 = vsub.s32 1, %v876
    %v878 = vrot.slane %v807, %v877
    %v879 = vlaneseq
    %v880 = vshrl.u32 %v879, 7
    %v881 = vsub.s32 2, %v880
    %v882 = vrot.slane %v807, %v881
    %v883 = vlaneseq
    %v884 = vshrl.u32 %v883, 7
    %v885 = vsub.s32 3, %v884
    %v886 = vrot.slane %v807, %v885
    %v887 = vlaneseq
    %v888 = vshrl.u32 %v887, 7
    %v889 = vsub.s32 4, %v888
    %v890 = vrot.slane %v807, %v889
    %v891 = vlaneseq
    %v892 = vshrl.u32 %v891, 7
    %v893 = vsub.s32 5, %v892
    %v894 = vrot.slane %v807, %v893
    %v895 = vlaneseq
    %v896 = vshrl.u32 %v895, 7
    %v897 = vsub.s32 6, %v896
    %v898 = vrot.slane %v807, %v897
    %v899 = vlaneseq
    %v900 = vshrl.u32 %v899, 7
    %v901 = vsub.s32 7, %v900
    %v902 = vrot.slane %v807, %v901
    %v903 = vlaneseq
    %v904 = vshrl.u32 %v903, 7
    %v905 = vsub.s32 0, %v904
    %v906 = vrot.slane %v808, %v905
    %v907 = vlaneseq
    %v908 = vshrl.u32 %v907, 7
    %v909 = vsub.s32 1, %v908
    %v910 = vrot.slane %v808, %v909
    %v911 = vlaneseq
    %v912 = vshrl.u32 %v911, 7
    %v913 = vsub.s32 2, %v912
    %v914 = vrot.slane %v808, %v913
    %v915 = vlaneseq
    %v916 = vshrl.u32 %v915, 7
    %v917 = vsub.s32 3, %v916
    %v918 = vrot.slane %v808, %v917
    %v919 = vlaneseq
    %v920 = vshrl.u32 %v919, 7
    %v921 = vsub.s32 4, %v920
    %v922 = vrot.slane %v808, %v921
    %v923 = vlaneseq
    %v924 = vshrl.u32 %v923, 7
    %v925 = vsub.s32 5, %v924
    %v926 = vrot.slane %v808, %v925
    %v927 = vlaneseq
    %v928 = vshrl.u32 %v927, 7
    %v929 = vsub.s32 6, %v928
    %v930 = vrot.slane %v808, %v929
    %v931 = vlaneseq
    %v932 = vshrl.u32 %v931, 7
    %v933 = vsub.s32 7, %v932
    %v934 = vrot.slane %v808, %v933
    %v935 = vlaneseq
    %v936 = vshrl.u32 %v935, 7
    %v937 = vsub.s32 0, %v936
    %v938 = vrot.slane %v809, %v937
    %v939 = vlaneseq
    %v940 = vshrl.u32 %v939, 7
    %v941 = vsub.s32 1, %v940
    %v942 = vrot.slane %v809, %v941
    %v943 = vlaneseq
    %v944 = vshrl.u32 %v943, 7
    %v945 = vsub.s32 2, %v944
    %v946 = vrot.slane %v809, %v945
    %v947 = vlaneseq
    %v948 = vshrl.u32 %v947, 7
    %v949 = vsub.s32 3, %v948
    %v950 = vrot.slane %v809, %v949
    %v951 = vlaneseq
    %v952 = vshrl.u32 %v951, 7
    %v953 = vsub.s32 4, %v952
    %v954 = vrot.slane %v809, %v953
    %v955 = vlaneseq
    %v956 = vshrl.u32 %v955, 7
    %v957 = vsub.s32 5, %v956
    %v958 = vrot.slane %v809, %v957
    %v959 = vlaneseq
    %v960 = vshrl.u32 %v959, 7
    %v961 = vsub.s32 6, %v960
    %v962 = vrot.slane %v809, %v961
    %v963 = vlaneseq
    %v964 = vshrl.u32 %v963, 7
    %v965 = vsub.s32 7, %v964
    %v966 = vrot.slane %v809, %v965
    %v967 = vlaneseq
    %v968 = vshrl.u32 %v967, 7
    %v969 = vsub.s32 0, %v968
    %v970 = vrot.slane %v810, %v969
    %v971 = vlaneseq
    %v972 = vshrl.u32 %v971, 7
    %v973 = vsub.s32 1, %v972
    %v974 = vrot.slane %v810, %v973
    %v975 = vlaneseq
    %v976 = vshrl.u32 %v975, 7
    %v977 = vsub.s32 2, %v976
    %v978 = vrot.slane %v810, %v977
    %v979 = vlaneseq
    %v980 = vshrl.u32 %v979, 7
    %v981 = vsub.s32 3, %v980
    %v982 = vrot.slane %v810, %v981
    %v983 = vlaneseq
    %v984 = vshrl.u32 %v983, 7
    %v985 = vsub.s32 4, %v984
    %v986 = vrot.slane %v810, %v985
    %v987 = vlaneseq
    %v988 = vshrl.u32 %v987, 7
    %v989 = vsub.s32 5, %v988
    %v990 = vrot.slane %v810, %v989
    %v991 = vlaneseq
    %v992 = vshrl.u32 %v991, 7
    %v993 = vsub.s32 6, %v992
    %v994 = vrot.slane %v810, %v993
    %v995 = vlaneseq
    %v996 = vshrl.u32 %v995, 7
    %v997 = vsub.s32 7, %v996
    %v998 = vrot.slane %v810, %v997
    %v999 = vlaneseq
    %v1000 = vshrl.u32 %v999, 7
    %v1001 = vsub.s32 0, %v1000
    %v1002 = vrot.slane %v811, %v1001
    %v1003 = vlaneseq
    %v1004 = vshrl.u32 %v1003, 7
    %v1005 = vsub.s32 1, %v1004
    %v1006 = vrot.slane %v811, %v1005
    %v1007 = vlaneseq
    %v1008 = vshrl.u32 %v1007, 7
    %v1009 = vsub.s32 2, %v1008
    %v1010 = vrot.slane %v811, %v1009
    %v1011 = vlaneseq
    %v1012 = vshrl.u32 %v1011, 7
    %v1013 = vsub.s32 3, %v1012
    %v1014 = vrot.slane %v811, %v1013
    %v1015 = vlaneseq
    %v1016 = vshrl.u32 %v1015, 7
    %v1017 = vsub.s32 4, %v1016
    %v1018 = vrot.slane %v811, %v1017
    %v1019 = vlaneseq
    %v1020 = vshrl.u32 %v1019, 7
    %v1021 = vsub.s32 5, %v1020
    %v1022 = vrot.slane %v811, %v1021
    %v1023 = vlaneseq
    %v1024 = vshrl.u32 %v1023, 7
    %v1025 = vsub.s32 6, %v1024
    %v1026 = vrot.slane %v811, %v1025
    %v1027 = vlaneseq
    %v1028 = vshrl.u32 %v1027, 7
    %v1029 = vsub.s32 7, %v1028
    %v1030 = vrot.slane %v811, %v1029
    %v1031 = vlaneseq
    %v1032 = vshrl.u32 %v1031, 7
    %v1033 = vsub.s32 0, %v1032
    %v1034 = vrot.slane %v812, %v1033
    %v1035 = vlaneseq
    %v1036 = vshrl.u32 %v1035, 7
    %v1037 = vsub.s32 1, %v1036
    %v1038 = vrot.slane %v812, %v1037
    %v1039 = vlaneseq
    %v1040 = vshrl.u32 %v1039, 7
    %v1041 = vsub.s32 2, %v1040
    %v1042 = vrot.slane %v812, %v1041
    %v1043 = vlaneseq
    %v1044 = vshrl.u32 %v1043, 7
    %v1045 = vsub.s32 3, %v1044
    %v1046 = vrot.slane %v812, %v1045
    %v1047 = vlaneseq
    %v1048 = vshrl.u32 %v1047, 7
    %v1049 = vsub.s32 4, %v1048
    %v1050 = vrot.slane %v812, %v1049
    %v1051 = vlaneseq
    %v1052 = vshrl.u32 %v1051, 7
    %v1053 = vsub.s32 5, %v1052
    %v1054 = vrot.slane %v812, %v1053
    %v1055 = vlaneseq
    %v1056 = vshrl.u32 %v1055, 7
    %v1057 = vsub.s32 6, %v1056
    %v1058 = vrot.slane %v812, %v1057
    %v1059 = vlaneseq
    %v1060 = vshrl.u32 %v1059, 7
    %v1061 = vsub.s32 7, %v1060
    %v1062 = vrot.slane %v812, %v1061
    %v1063 = vlaneseq
    %v1064 = vshrl.u32 %v1063, 7
    %v1065 = vsub.s32 0, %v1064
    %v1066 = vrot.slane %v813, %v1065
    %v1067 = vlaneseq
    %v1068 = vshrl.u32 %v1067, 7
    %v1069 = vsub.s32 1, %v1068
    %v1070 = vrot.slane %v813, %v1069
    %v1071 = vlaneseq
    %v1072 = vshrl.u32 %v1071, 7
    %v1073 = vsub.s32 2, %v1072
    %v1074 = vrot.slane %v813, %v1073
    %v1075 = vlaneseq
    %v1076 = vshrl.u32 %v1075, 7
    %v1077 = vsub.s32 3, %v1076
    %v1078 = vrot.slane %v813, %v1077
    %v1079 = vlaneseq
    %v1080 = vshrl.u32 %v1079, 7
    %v1081 = vsub.s32 4, %v1080
    %v1082 = vrot.slane %v813, %v1081
    %v1083 = vlaneseq
    %v1084 = vshrl.u32 %v1083, 7
    %v1085 = vsub.s32 5, %v1084
    %v1086 = vrot.slane %v813, %v1085
    %v1087 = vlaneseq
    %v1088 = vshrl.u32 %v1087, 7
    %v1089 = vsub.s32 6, %v1088
    %v1090 = vrot.slane %v813, %v1089
    %v1091 = vlaneseq
    %v1092 = vshrl.u32 %v1091, 7
    %v1093 = vsub.s32 7, %v1092
    %v1094 = vrot.slane %v813, %v1093
    %v1095 = vlaneseq
    %v1096 = vshrl.u32 %v1095, 7
    %v1097 = vsub.s32 0, %v1096
    %v1098 = vrot.slane %v814, %v1097
    %v1099 = vlaneseq
    %v1100 = vshrl.u32 %v1099, 7
    %v1101 = vsub.s32 1, %v1100
    %v1102 = vrot.slane %v814, %v1101
    %v1103 = vlaneseq
    %v1104 = vshrl.u32 %v1103, 7
    %v1105 = vsub.s32 2, %v1104
    %v1106 = vrot.slane %v814, %v1105
    %v1107 = vlaneseq
    %v1108 = vshrl.u32 %v1107, 7
    %v1109 = vsub.s32 3, %v1108
    %v1110 = vrot.slane %v814, %v1109
    %v1111 = vlaneseq
    %v1112 = vshrl.u32 %v1111, 7
    %v1113 = vsub.s32 4, %v1112
    %v1114 = vrot.slane %v814, %v1113
    %v1115 = vlaneseq
    %v1116 = vshrl.u32 %v1115, 7
    %v1117 = vsub.s32 5, %v1116
    %v1118 = vrot.slane %v814, %v1117
    %v1119 = vlaneseq
    %v1120 = vshrl.u32 %v1119, 7
    %v1121 = vsub.s32 6, %v1120
    %v1122 = vrot.slane %v814, %v1121
    %v1123 = vlaneseq
    %v1124 = vshrl.u32 %v1123, 7
    %v1125 = vsub.s32 7, %v1124
    %v1126 = vrot.slane %v814, %v1125
    %v1127 = vlaneseq
    %v1128 = vshrl.u32 %v1127, 7
    %v1129 = vsub.s32 0, %v1128
    %v1130 = vrot.slane %v815, %v1129
    %v1131 = vlaneseq
    %v1132 = vshrl.u32 %v1131, 7
    %v1133 = vsub.s32 1, %v1132
    %v1134 = vrot.slane %v815, %v1133
    %v1135 = vlaneseq
    %v1136 = vshrl.u32 %v1135, 7
    %v1137 = vsub.s32 2, %v1136
    %v1138 = vrot.slane %v815, %v1137
    %v1139 = vlaneseq
    %v1140 = vshrl.u32 %v1139, 7
    %v1141 = vsub.s32 3, %v1140
    %v1142 = vrot.slane %v815, %v1141
    %v1143 = vlaneseq
    %v1144 = vshrl.u32 %v1143, 7
    %v1145 = vsub.s32 4, %v1144
    %v1146 = vrot.slane %v815, %v1145
    %v1147 = vlaneseq
    %v1148 = vshrl.u32 %v1147, 7
    %v1149 = vsub.s32 5, %v1148
    %v1150 = vrot.slane %v815, %v1149
    %v1151 = vlaneseq
    %v1152 = vshrl.u32 %v1151, 7
    %v1153 = vsub.s32 6, %v1152
    %v1154 = vrot.slane %v815, %v1153
    %v1155 = vlaneseq
    %v1156 = vshrl.u32 %v1155, 7
    %v1157 = vsub.s32 7, %v1156
    %v1158 = vrot.slane %v815, %v1157
    %v1159 = vlaneseq
    %v1160 = vshrl.u32 %v1159, 7
    %v1161 = vsub.s32 0, %v1160
    %v1162 = vrot.slane %v816, %v1161
    %v1163 = vlaneseq
    %v1164 = vshrl.u32 %v1163, 7
    %v1165 = vsub.s32 1, %v1164
    %v1166 = vrot.slane %v816, %v1165
    %v1167 = vlaneseq
    %v1168 = vshrl.u32 %v1167, 7
    %v1169 = vsub.s32 2, %v1168
    %v1170 = vrot.slane %v816, %v1169
    %v1171 = vlaneseq
    %v1172 = vshrl.u32 %v1171, 7
    %v1173 = vsub.s32 3, %v1172
    %v1174 = vrot.slane %v816, %v1173
    %v1175 = vlaneseq
    %v1176 = vshrl.u32 %v1175, 7
    %v1177 = vsub.s32 4, %v1176
    %v1178 = vrot.slane %v816, %v1177
    %v1179 = vlaneseq
    %v1180 = vshrl.u32 %v1179, 7
    %v1181 = vsub.s32 5, %v1180
    %v1182 = vrot.slane %v816, %v1181
    %v1183 = vlaneseq
    %v1184 = vshrl.u32 %v1183, 7
    %v1185 = vsub.s32 6, %v1184
    %v1186 = vrot.slane %v816, %v1185
    %v1187 = vlaneseq
    %v1188 = vshrl.u32 %v1187, 7
    %v1189 = vsub.s32 7, %v1188
    %v1190 = vrot.slane %v816, %v1189
    %v1191 = vlaneseq
    %v1192 = vshrl.u32 %v1191, 7
    %v1193 = vsub.s32 0, %v1192
    %v1194 = vrot.slane %v817, %v1193
    %v1195 = vlaneseq
    %v1196 = vshrl.u32 %v1195, 7
    %v1197 = vsub.s32 1, %v1196
    %v1198 = vrot.slane %v817, %v1197
    %v1199 = vlaneseq
    %v1200 = vshrl.u32 %v1199, 7
    %v1201 = vsub.s32 2, %v1200
    %v1202 = vrot.slane %v817, %v1201
    %v1203 = vlaneseq
    %v1204 = vshrl.u32 %v1203, 7
    %v1205 = vsub.s32 3, %v1204
    %v1206 = vrot.slane %v817, %v1205
    %v1207 = vlaneseq
    %v1208 = vshrl.u32 %v1207, 7
    %v1209 = vsub.s32 4, %v1208
    %v1210 = vrot.slane %v817, %v1209
    %v1211 = vlaneseq
    %v1212 = vshrl.u32 %v1211, 7
    %v1213 = vsub.s32 5, %v1212
    %v1214 = vrot.slane %v817, %v1213
    %v1215 = vlaneseq
    %v1216 = vshrl.u32 %v1215, 7
    %v1217 = vsub.s32 6, %v1216
    %v1218 = vrot.slane %v817, %v1217
    %v1219 = vlaneseq
    %v1220 = vshrl.u32 %v1219, 7
    %v1221 = vsub.s32 7, %v1220
    %v1222 = vrot.slane %v817, %v1221
    %v1223 = vlaneseq
    %v1224 = vshrl.u32 %v1223, 7
    %v1225 = vsub.s32 0, %v1224
    %v1226 = vrot.slane %v818, %v1225
    %v1227 = vlaneseq
    %v1228 = vshrl.u32 %v1227, 7
    %v1229 = vsub.s32 1, %v1228
    %v1230 = vrot.slane %v818, %v1229
    %v1231 = vlaneseq
    %v1232 = vshrl.u32 %v1231, 7
    %v1233 = vsub.s32 2, %v1232
    %v1234 = vrot.slane %v818, %v1233
    %v1235 = vlaneseq
    %v1236 = vshrl.u32 %v1235, 7
    %v1237 = vsub.s32 3, %v1236
    %v1238 = vrot.slane %v818, %v1237
    %v1239 = vlaneseq
    %v1240 = vshrl.u32 %v1239, 7
    %v1241 = vsub.s32 4, %v1240
    %v1242 = vrot.slane %v818, %v1241
    %v1243 = vlaneseq
    %v1244 = vshrl.u32 %v1243, 7
    %v1245 = vsub.s32 5, %v1244
    %v1246 = vrot.slane %v818, %v1245
    %v1247 = vlaneseq
    %v1248 = vshrl.u32 %v1247, 7
    %v1249 = vsub.s32 6, %v1248
    %v1250 = vrot.slane %v818, %v1249
    %v1251 = vlaneseq
    %v1252 = vshrl.u32 %v1251, 7
    %v1253 = vsub.s32 7, %v1252
    %v1254 = vrot.slane %v818, %v1253
    %v1255 = vlaneseq
    %v1256 = vshrl.u32 %v1255, 7
    %v1257 = vsub.s32 0, %v1256
    %v1258 = vrot.slane %v819, %v1257
    %v1259 = vlaneseq
    %v1260 = vshrl.u32 %v1259, 7
    %v1261 = vsub.s32 1, %v1260
    %v1262 = vrot.slane %v819, %v1261
    %v1263 = vlaneseq
    %v1264 = vshrl.u32 %v1263, 7
    %v1265 = vsub.s32 2, %v1264
    %v1266 = vrot.slane %v819, %v1265
    %v1267 = vlaneseq
    %v1268 = vshrl.u32 %v1267, 7
    %v1269 = vsub.s32 3, %v1268
    %v1270 = vrot.slane %v819, %v1269
    %v1271 = vlaneseq
    %v1272 = vshrl.u32 %v1271, 7
    %v1273 = vsub.s32 4, %v1272
    %v1274 = vrot.slane %v819, %v1273
    %v1275 = vlaneseq
    %v1276 = vshrl.u32 %v1275, 7
    %v1277 = vsub.s32 5, %v1276
    %v1278 = vrot.slane %v819, %v1277
    %v1279 = vlaneseq
    %v1280 = vshrl.u32 %v1279, 7
    %v1281 = vsub.s32 6, %v1280
    %v1282 = vrot.slane %v819, %v1281
    %v1283 = vlaneseq
    %v1284 = vshrl.u32 %v1283, 7
    %v1285 = vsub.s32 7, %v1284
    %v1286 = vrot.slane %v819, %v1285
    %v1287 = vlaneseq
    %v1288 = vshrl.u32 %v1287, 7
    %v1289 = vsub.s32 0, %v1288
    %v1290 = vrot.slane %v820, %v1289
    %v1291 = vlaneseq
    %v1292 = vshrl.u32 %v1291, 7
    %v1293 = vsub.s32 1, %v1292
    %v1294 = vrot.slane %v820, %v1293
    %v1295 = vlaneseq
    %v1296 = vshrl.u32 %v1295, 7
    %v1297 = vsub.s32 2, %v1296
    %v1298 = vrot.slane %v820, %v1297
    %v1299 = vlaneseq
    %v1300 = vshrl.u32 %v1299, 7
    %v1301 = vsub.s32 3, %v1300
    %v1302 = vrot.slane %v820, %v1301
    %v1303 = vlaneseq
    %v1304 = vshrl.u32 %v1303, 7
    %v1305 = vsub.s32 4, %v1304
    %v1306 = vrot.slane %v820, %v1305
    %v1307 = vlaneseq
    %v1308 = vshrl.u32 %v1307, 7
    %v1309 = vsub.s32 5, %v1308
    %v1310 = vrot.slane %v820, %v1309
    %v1311 = vlaneseq
    %v1312 = vshrl.u32 %v1311, 7
    %v1313 = vsub.s32 6, %v1312
    %v1314 = vrot.slane %v820, %v1313
    %v1315 = vlaneseq
    %v1316 = vshrl.u32 %v1315, 7
    %v1317 = vsub.s32 7, %v1316
    %v1318 = vrot.slane %v820, %v1317
    %v1319 = vlaneseq
    %v1320 = vshrl.u32 %v1319, 7
    %v1321 = vsub.s32 0, %v1320
    %v1322 = vrot.slane %v821, %v1321
    %v1323 = vlaneseq
    %v1324 = vshrl.u32 %v1323, 7
    %v1325 = vsub.s32 1, %v1324
    %v1326 = vrot.slane %v821, %v1325
    %v1327 = vlaneseq
    %v1328 = vshrl.u32 %v1327, 7
    %v1329 = vsub.s32 2, %v1328
    %v1330 = vrot.slane %v821, %v1329
    %v1331 = vlaneseq
    %v1332 = vshrl.u32 %v1331, 7
    %v1333 = vsub.s32 3, %v1332
    %v1334 = vrot.slane %v821, %v1333
    %v1335 = vlaneseq
    %v1336 = vshrl.u32 %v1335, 7
    %v1337 = vsub.s32 4, %v1336
    %v1338 = vrot.slane %v821, %v1337
    %v1339 = vlaneseq
    %v1340 = vshrl.u32 %v1339, 7
    %v1341 = vsub.s32 5, %v1340
    %v1342 = vrot.slane %v821, %v1341
    %v1343 = vlaneseq
    %v1344 = vshrl.u32 %v1343, 7
    %v1345 = vsub.s32 6, %v1344
    %v1346 = vrot.slane %v821, %v1345
    %v1347 = vlaneseq
    %v1348 = vshrl.u32 %v1347, 7
    %v1349 = vsub.s32 7, %v1348
    %v1350 = vrot.slane %v821, %v1349
    %v1351 = vlaneseq
    %v1352 = vshrl.u32 %v1351, 7
    %v1353 = vsub.s32 0, %v1352
    %v1354 = vrot.slane %v822, %v1353
    %v1355 = vlaneseq
    %v1356 = vshrl.u32 %v1355, 7
    %v1357 = vsub.s32 1, %v1356
    %v1358 = vrot.slane %v822, %v1357
    %v1359 = vlaneseq
    %v1360 = vshrl.u32 %v1359, 7
    %v1361 = vsub.s32 2, %v1360
    %v1362 = vrot.slane %v822, %v1361
    %v1363 = vlaneseq
    %v1364 = vshrl.u32 %v1363, 7
    %v1365 = vsub.s32 3, %v1364
    %v1366 = vrot.slane %v822, %v1365
    %v1367 = vlaneseq
    %v1368 = vshrl.u32 %v1367, 7
    %v1369 = vsub.s32 4, %v1368
    %v1370 = vrot.slane %v822, %v1369
    %v1371 = vlaneseq
    %v1372 = vshrl.u32 %v1371, 7
    %v1373 = vsub.s32 5, %v1372
    %v1374 = vrot.slane %v822, %v1373
    %v1375 = vlaneseq
    %v1376 = vshrl.u32 %v1375, 7
    %v1377 = vsub.s32 6, %v1376
    %v1378 = vrot.slane %v822, %v1377
    %v1379 = vlaneseq
    %v1380 = vshrl.u32 %v1379, 7
    %v1381 = vsub.s32 7, %v1380
    %v1382 = vrot.slane %v822, %v1381
    %v1383 = vlaneseq
    %v1384 = vshrl.u32 %v1383, 7
    %v1385 = vsub.s32 0, %v1384
    %v1386 = vrot.slane %v823, %v1385
    %v1387 = vlaneseq
    %v1388 = vshrl.u32 %v1387, 7
    %v1389 = vsub.s32 1, %v1388
    %v1390 = vrot.slane %v823, %v1389
    %v1391 = vlaneseq
    %v1392 = vshrl.u32 %v1391, 7
    %v1393 = vsub.s32 2, %v1392
    %v1394 = vrot.slane %v823, %v1393
    %v1395 = vlaneseq
    %v1396 = vshrl.u32 %v1395, 7
    %v1397 = vsub.s32 3, %v1396
    %v1398 = vrot.slane %v823, %v1397
    %v1399 = vlaneseq
    %v1400 = vshrl.u32 %v1399, 7
    %v1401 = vsub.s32 4, %v1400
    %v1402 = vrot.slane %v823, %v1401
    %v1403 = vlaneseq
    %v1404 = vshrl.u32 %v1403, 7
    %v1405 = vsub.s32 5, %v1404
    %v1406 = vrot.slane %v823, %v1405
    %v1407 = vlaneseq
    %v1408 = vshrl.u32 %v1407, 7
    %v1409 = vsub.s32 6, %v1408
    %v1410 = vrot.slane %v823, %v1409
    %v1411 = vlaneseq
    %v1412 = vshrl.u32 %v1411, 7
    %v1413 = vsub.s32 7, %v1412
    %v1414 = vrot.slane %v823, %v1413
    %v1415 = vlaneseq
    %v1416 = vshrl.u32 %v1415, 7
    %v1417 = vsub.s32 0, %v1416
    %v1418 = vrot.slane %v824, %v1417
    %v1419 = vlaneseq
    %v1420 = vshrl.u32 %v1419, 7
    %v1421 = vsub.s32 1, %v1420
    %v1422 = vrot.slane %v824, %v1421
    %v1423 = vlaneseq
    %v1424 = vshrl.u32 %v1423, 7
    %v1425 = vsub.s32 2, %v1424
    %v1426 = vrot.slane %v824, %v1425
    %v1427 = vlaneseq
    %v1428 = vshrl.u32 %v1427, 7
    %v1429 = vsub.s32 3, %v1428
    %v1430 = vrot.slane %v824, %v1429
    %v1431 = vlaneseq
    %v1432 = vshrl.u32 %v1431, 7
    %v1433 = vsub.s32 4, %v1432
    %v1434 = vrot.slane %v824, %v1433
    %v1435 = vlaneseq
    %v1436 = vshrl.u32 %v1435, 7
    %v1437 = vsub.s32 5, %v1436
    %v1438 = vrot.slane %v824, %v1437
    %v1439 = vlaneseq
    %v1440 = vshrl.u32 %v1439, 7
    %v1441 = vsub.s32 6, %v1440
    %v1442 = vrot.slane %v824, %v1441
    %v1443 = vlaneseq
    %v1444 = vshrl.u32 %v1443, 7
    %v1445 = vsub.s32 7, %v1444
    %v1446 = vrot.slane %v824, %v1445
    %v1447 = vlaneseq
    %v1448 = vshrl.u32 %v1447, 7
    %v1449 = vsub.s32 0, %v1448
    %v1450 = vrot.slane %v825, %v1449
    %v1451 = vlaneseq
    %v1452 = vshrl.u32 %v1451, 7
    %v1453 = vsub.s32 1, %v1452
    %v1454 = vrot.slane %v825, %v1453
    %v1455 = vlaneseq
    %v1456 = vshrl.u32 %v1455, 7
    %v1457 = vsub.s32 2, %v1456
    %v1458 = vrot.slane %v825, %v1457
    %v1459 = vlaneseq
    %v1460 = vshrl.u32 %v1459, 7
    %v1461 = vsub.s32 3, %v1460
    %v1462 = vrot.slane %v825, %v1461
    %v1463 = vlaneseq
    %v1464 = vshrl.u32 %v1463, 7
    %v1465 = vsub.s32 4, %v1464
    %v1466 = vrot.slane %v825, %v1465
    %v1467 = vlaneseq
    %v1468 = vshrl.u32 %v1467, 7
    %v1469 = vsub.s32 5, %v1468
    %v1470 = vrot.slane %v825, %v1469
    %v1471 = vlaneseq
    %v1472 = vshrl.u32 %v1471, 7
    %v1473 = vsub.s32 6, %v1472
    %v1474 = vrot.slane %v825, %v1473
    %v1475 = vlaneseq
    %v1476 = vshrl.u32 %v1475, 7
    %v1477 = vsub.s32 7, %v1476
    %v1478 = vrot.slane %v825, %v1477
    %v1479 = vlaneseq
    %v1480 = vshrl.u32 %v1479, 7
    %v1481 = vsub.s32 0, %v1480
    %v1482 = vrot.slane %v826, %v1481
    %v1483 = vlaneseq
    %v1484 = vshrl.u32 %v1483, 7
    %v1485 = vsub.s32 1, %v1484
    %v1486 = vrot.slane %v826, %v1485
    %v1487 = vlaneseq
    %v1488 = vshrl.u32 %v1487, 7
    %v1489 = vsub.s32 2, %v1488
    %v1490 = vrot.slane %v826, %v1489
    %v1491 = vlaneseq
    %v1492 = vshrl.u32 %v1491, 7
    %v1493 = vsub.s32 3, %v1492
    %v1494 = vrot.slane %v826, %v1493
    %v1495 = vlaneseq
    %v1496 = vshrl.u32 %v1495, 7
    %v1497 = vsub.s32 4, %v1496
    %v1498 = vrot.slane %v826, %v1497
    %v1499 = vlaneseq
    %v1500 = vshrl.u32 %v1499, 7
    %v1501 = vsub.s32 5, %v1500
    %v1502 = vrot.slane %v826, %v1501
    %v1503 = vlaneseq
    %v1504 = vshrl.u32 %v1503, 7
    %v1505 = vsub.s32 6, %v1504
    %v1506 = vrot.slane %v826, %v1505
    %v1507 = vlaneseq
    %v1508 = vshrl.u32 %v1507, 7
    %v1509 = vsub.s32 7, %v1508
    %v1510 = vrot.slane %v826, %v1509
    %v1511 = vlaneseq
    %v1512 = vshrl.u32 %v1511, 7
    %v1513 = vsub.s32 0, %v1512
    %v1514 = vrot.slane %v827, %v1513
    %v1515 = vlaneseq
    %v1516 = vshrl.u32 %v1515, 7
    %v1517 = vsub.s32 1, %v1516
    %v1518 = vrot.slane %v827, %v1517
    %v1519 = vlaneseq
    %v1520 = vshrl.u32 %v1519, 7
    %v1521 = vsub.s32 2, %v1520
    %v1522 = vrot.slane %v827, %v1521
    %v1523 = vlaneseq
    %v1524 = vshrl.u32 %v1523, 7
    %v1525 = vsub.s32 3, %v1524
    %v1526 = vrot.slane %v827, %v1525
    %v1527 = vlaneseq
    %v1528 = vshrl.u32 %v1527, 7
    %v1529 = vsub.s32 4, %v1528
    %v1530 = vrot.slane %v827, %v1529
    %v1531 = vlaneseq
    %v1532 = vshrl.u32 %v1531, 7
    %v1533 = vsub.s32 5, %v1532
    %v1534 = vrot.slane %v827, %v1533
    %v1535 = vlaneseq
    %v1536 = vshrl.u32 %v1535, 7
    %v1537 = vsub.s32 6, %v1536
    %v1538 = vrot.slane %v827, %v1537
    %v1539 = vlaneseq
    %v1540 = vshrl.u32 %v1539, 7
    %v1541 = vsub.s32 7, %v1540
    %v1542 = vrot.slane %v827, %v1541
    %v1543 = vlaneseq
    %v1544 = vshrl.u32 %v1543, 7
    %v1545 = vsub.s32 0, %v1544
    %v1546 = vrot.slane %v828, %v1545
    %v1547 = vlaneseq
    %v1548 = vshrl.u32 %v1547, 7
    %v1549 = vsub.s32 1, %v1548
    %v1550 = vrot.slane %v828, %v1549
    %v1551 = vlaneseq
    %v1552 = vshrl.u32 %v1551, 7
    %v1553 = vsub.s32 2, %v1552
    %v1554 = vrot.slane %v828, %v1553
    %v1555 = vlaneseq
    %v1556 = vshrl.u32 %v1555, 7
    %v1557 = vsub.s32 3, %v1556
    %v1558 = vrot.slane %v828, %v1557
    %v1559 = vlaneseq
    %v1560 = vshrl.u32 %v1559, 7
    %v1561 = vsub.s32 4, %v1560
    %v1562 = vrot.slane %v828, %v1561
    %v1563 = vlaneseq
    %v1564 = vshrl.u32 %v1563, 7
    %v1565 = vsub.s32 5, %v1564
    %v1566 = vrot.slane %v828, %v1565
    %v1567 = vlaneseq
    %v1568 = vshrl.u32 %v1567, 7
    %v1569 = vsub.s32 6, %v1568
    %v1570 = vrot.slane %v828, %v1569
    %v1571 = vlaneseq
    %v1572 = vshrl.u32 %v1571, 7
    %v1573 = vsub.s32 7, %v1572
    %v1574 = vrot.slane %v828, %v1573
    %v1575 = vlaneseq
    %v1576 = vshrl.u32 %v1575, 7
    %v1577 = vsub.s32 0, %v1576
    %v1578 = vrot.slane %v829, %v1577
    %v1579 = vlaneseq
    %v1580 = vshrl.u32 %v1579, 7
    %v1581 = vsub.s32 1, %v1580
    %v1582 = vrot.slane %v829, %v1581
    %v1583 = vlaneseq
    %v1584 = vshrl.u32 %v1583, 7
    %v1585 = vsub.s32 2, %v1584
    %v1586 = vrot.slane %v829, %v1585
    %v1587 = vlaneseq
    %v1588 = vshrl.u32 %v1587, 7
    %v1589 = vsub.s32 3, %v1588
    %v1590 = vrot.slane %v829, %v1589
    %v1591 = vlaneseq
    %v1592 = vshrl.u32 %v1591, 7
    %v1593 = vsub.s32 4, %v1592
    %v1594 = vrot.slane %v829, %v1593
    %v1595 = vlaneseq
    %v1596 = vshrl.u32 %v1595, 7
    %v1597 = vsub.s32 5, %v1596
    %v1598 = vrot.slane %v829, %v1597
    %v1599 = vlaneseq
    %v1600 = vshrl.u32 %v1599, 7
    %v1601 = vsub.s32 6, %v1600
    %v1602 = vrot.slane %v829, %v1601
    %v1603 = vlaneseq
    %v1604 = vshrl.u32 %v1603, 7
    %v1605 = vsub.s32 7, %v1604
    %v1606 = vrot.slane %v829, %v1605
    %v1607 = vlaneseq
    %v1608 = vshrl.u32 %v1607, 7
    %v1609 = vsub.s32 0, %v1608
    %v1610 = vrot.slane %v830, %v1609
    %v1611 = vlaneseq
    %v1612 = vshrl.u32 %v1611, 7
    %v1613 = vsub.s32 1, %v1612
    %v1614 = vrot.slane %v830, %v1613
    %v1615 = vlaneseq
    %v1616 = vshrl.u32 %v1615, 7
    %v1617 = vsub.s32 2, %v1616
    %v1618 = vrot.slane %v830, %v1617
    %v1619 = vlaneseq
    %v1620 = vshrl.u32 %v1619, 7
    %v1621 = vsub.s32 3, %v1620
    %v1622 = vrot.slane %v830, %v1621
    %v1623 = vlaneseq
    %v1624 = vshrl.u32 %v1623, 7
    %v1625 = vsub.s32 4, %v1624
    %v1626 = vrot.slane %v830, %v1625
    %v1627 = vlaneseq
    %v1628 = vshrl.u32 %v1627, 7
    %v1629 = vsub.s32 5, %v1628
    %v1630 = vrot.slane %v830, %v1629
    %v1631 = vlaneseq
    %v1632 = vshrl.u32 %v1631, 7
    %v1633 = vsub.s32 6, %v1632
    %v1634 = vrot.slane %v830, %v1633
    %v1635 = vlaneseq
    %v1636 = vshrl.u32 %v1635, 7
    %v1637 = vsub.s32 7, %v1636
    %v1638 = vrot.slane %v830, %v1637
    %v1639 = vlaneseq
    %v1640 = vshrl.u32 %v1639, 7
    %v1641 = vsub.s32 0, %v1640
    %v1642 = vrot.slane %v831, %v1641
    %v1643 = vlaneseq
    %v1644 = vshrl.u32 %v1643, 7
    %v1645 = vsub.s32 1, %v1644
    %v1646 = vrot.slane %v831, %v1645
    %v1647 = vlaneseq
    %v1648 = vshrl.u32 %v1647, 7
    %v1649 = vsub.s32 2, %v1648
    %v1650 = vrot.slane %v831, %v1649
    %v1651 = vlaneseq
    %v1652 = vshrl.u32 %v1651, 7
    %v1653 = vsub.s32 3, %v1652
    %v1654 = vrot.slane %v831, %v1653
    %v1655 = vlaneseq
    %v1656 = vshrl.u32 %v1655, 7
    %v1657 = vsub.s32 4, %v1656
    %v1658 = vrot.slane %v831, %v1657
    %v1659 = vlaneseq
    %v1660 = vshrl.u32 %v1659, 7
    %v1661 = vsub.s32 5, %v1660
    %v1662 = vrot.slane %v831, %v1661
    %v1663 = vlaneseq
    %v1664 = vshrl.u32 %v1663, 7
    %v1665 = vsub.s32 6, %v1664
    %v1666 = vrot.slane %v831, %v1665
    %v1667 = vlaneseq
    %v1668 = vshrl.u32 %v1667, 7
    %v1669 = vsub.s32 7, %v1668
    %v1670 = vrot.slane %v831, %v1669
    %v1671 = vlaneseq
    %v1672 = vshrl.u32 %v1671, 7
    %v1673 = vsub.s32 0, %v1672
    %v1674 = vrot.slane %v832, %v1673
    %v1675 = vlaneseq
    %v1676 = vshrl.u32 %v1675, 7
    %v1677 = vsub.s32 1, %v1676
    %v1678 = vrot.slane %v832, %v1677
    %v1679 = vlaneseq
    %v1680 = vshrl.u32 %v1679, 7
    %v1681 = vsub.s32 2, %v1680
    %v1682 = vrot.slane %v832, %v1681
    %v1683 = vlaneseq
    %v1684 = vshrl.u32 %v1683, 7
    %v1685 = vsub.s32 3, %v1684
    %v1686 = vrot.slane %v832, %v1685
    %v1687 = vlaneseq
    %v1688 = vshrl.u32 %v1687, 7
    %v1689 = vsub.s32 4, %v1688
    %v1690 = vrot.slane %v832, %v1689
    %v1691 = vlaneseq
    %v1692 = vshrl.u32 %v1691, 7
    %v1693 = vsub.s32 5, %v1692
    %v1694 = vrot.slane %v832, %v1693
    %v1695 = vlaneseq
    %v1696 = vshrl.u32 %v1695, 7
    %v1697 = vsub.s32 6, %v1696
    %v1698 = vrot.slane %v832, %v1697
    %v1699 = vlaneseq
    %v1700 = vshrl.u32 %v1699, 7
    %v1701 = vsub.s32 7, %v1700
    %v1702 = vrot.slane %v832, %v1701
    %v1703 = vlaneseq
    %v1704 = vshrl.u32 %v1703, 7
    %v1705 = vsub.s32 0, %v1704
    %v1706 = vrot.slane %v833, %v1705
    %v1707 = vlaneseq
    %v1708 = vshrl.u32 %v1707, 7
    %v1709 = vsub.s32 1, %v1708
    %v1710 = vrot.slane %v833, %v1709
    %v1711 = vlaneseq
    %v1712 = vshrl.u32 %v1711, 7
    %v1713 = vsub.s32 2, %v1712
    %v1714 = vrot.slane %v833, %v1713
    %v1715 = vlaneseq
    %v1716 = vshrl.u32 %v1715, 7
    %v1717 = vsub.s32 3, %v1716
    %v1718 = vrot.slane %v833, %v1717
    %v1719 = vlaneseq
    %v1720 = vshrl.u32 %v1719, 7
    %v1721 = vsub.s32 4, %v1720
    %v1722 = vrot.slane %v833, %v1721
    %v1723 = vlaneseq
    %v1724 = vshrl.u32 %v1723, 7
    %v1725 = vsub.s32 5, %v1724
    %v1726 = vrot.slane %v833, %v1725
    %v1727 = vlaneseq
    %v1728 = vshrl.u32 %v1727, 7
    %v1729 = vsub.s32 6, %v1728
    %v1730 = vrot.slane %v833, %v1729
    %v1731 = vlaneseq
    %v1732 = vshrl.u32 %v1731, 7
    %v1733 = vsub.s32 7, %v1732
    %v1734 = vrot.slane %v833, %v1733
    %v1735 = vlaneseq
    %v1736 = vshrl.u32 %v1735, 7
    %v1737 = vsub.s32 0, %v1736
    %v1738 = vrot.slane %v834, %v1737
    %v1739 = vlaneseq
    %v1740 = vshrl.u32 %v1739, 7
    %v1741 = vsub.s32 1, %v1740
    %v1742 = vrot.slane %v834, %v1741
    %v1743 = vlaneseq
    %v1744 = vshrl.u32 %v1743, 7
    %v1745 = vsub.s32 2, %v1744
    %v1746 = vrot.slane %v834, %v1745
    %v1747 = vlaneseq
    %v1748 = vshrl.u32 %v1747, 7
    %v1749 = vsub.s32 3, %v1748
    %v1750 = vrot.slane %v834, %v1749
    %v1751 = vlaneseq
    %v1752 = vshrl.u32 %v1751, 7
    %v1753 = vsub.s32 4, %v1752
    %v1754 = vrot.slane %v834, %v1753
    %v1755 = vlaneseq
    %v1756 = vshrl.u32 %v1755, 7
    %v1757 = vsub.s32 5, %v1756
    %v1758 = vrot.slane %v834, %v1757
    %v1759 = vlaneseq
    %v1760 = vshrl.u32 %v1759, 7
    %v1761 = vsub.s32 6, %v1760
    %v1762 = vrot.slane %v834, %v1761
    %v1763 = vlaneseq
    %v1764 = vshrl.u32 %v1763, 7
    %v1765 = vsub.s32 7, %v1764
    %v1766 = vrot.slane %v834, %v1765
    %v1767 = vlaneseq
    %v1768 = vshrl.u32 %v1767, 7
    %v1769 = vsub.s32 0, %v1768
    %v1770 = vrot.slane %v835, %v1769
    %v1771 = vlaneseq
    %v1772 = vshrl.u32 %v1771, 7
    %v1773 = vsub.s32 1, %v1772
    %v1774 = vrot.slane %v835, %v1773
    %v1775 = vlaneseq
    %v1776 = vshrl.u32 %v1775, 7
    %v1777 = vsub.s32 2, %v1776
    %v1778 = vrot.slane %v835, %v1777
    %v1779 = vlaneseq
    %v1780 = vshrl.u32 %v1779, 7
    %v1781 = vsub.s32 3, %v1780
    %v1782 = vrot.slane %v835, %v1781
    %v1783 = vlaneseq
    %v1784 = vshrl.u32 %v1783, 7
    %v1785 = vsub.s32 4, %v1784
    %v1786 = vrot.slane %v835, %v1785
    %v1787 = vlaneseq
    %v1788 = vshrl.u32 %v1787, 7
    %v1789 = vsub.s32 5, %v1788
    %v1790 = vrot.slane %v835, %v1789
    %v1791 = vlaneseq
    %v1792 = vshrl.u32 %v1791, 7
    %v1793 = vsub.s32 6, %v1792
    %v1794 = vrot.slane %v835, %v1793
    %v1795 = vlaneseq
    %v1796 = vshrl.u32 %v1795, 7
    %v1797 = vsub.s32 7, %v1796
    %v1798 = vrot.slane %v835, %v1797
    %v1799 = vlaneseq
    %v1800 = vshrl.u32 %v1799, 7
    %v1801 = vsub.s32 0, %v1800
    %v1802 = vrot.slane %v836, %v1801
    %v1803 = vlaneseq
    %v1804 = vshrl.u32 %v1803, 7
    %v1805 = vsub.s32 1, %v1804
    %v1806 = vrot.slane %v836, %v1805
    %v1807 = vlaneseq
    %v1808 = vshrl.u32 %v1807, 7
    %v1809 = vsub.s32 2, %v1808
    %v1810 = vrot.slane %v836, %v1809
    %v1811 = vlaneseq
    %v1812 = vshrl.u32 %v1811, 7
    %v1813 = vsub.s32 3, %v1812
    %v1814 = vrot.slane %v836, %v1813
    %v1815 = vlaneseq
    %v1816 = vshrl.u32 %v1815, 7
    %v1817 = vsub.s32 4, %v1816
    %v1818 = vrot.slane %v836, %v1817
    %v1819 = vlaneseq
    %v1820 = vshrl.u32 %v1819, 7
    %v1821 = vsub.s32 5, %v1820
    %v1822 = vrot.slane %v836, %v1821
    %v1823 = vlaneseq
    %v1824 = vshrl.u32 %v1823, 7
    %v1825 = vsub.s32 6, %v1824
    %v1826 = vrot.slane %v836, %v1825
    %v1827 = vlaneseq
    %v1828 = vshrl.u32 %v1827, 7
    %v1829 = vsub.s32 7, %v1828
    %v1830 = vrot.slane %v836, %v1829
    %v1831 = vlaneseq
    %v1832 = vshrl.u32 %v1831, 7
    %v1833 = vsub.s32 0, %v1832
    %v1834 = vrot.slane %v837, %v1833
    %v1835 = vlaneseq
    %v1836 = vshrl.u32 %v1835, 7
    %v1837 = vsub.s32 1, %v1836
    %v1838 = vrot.slane %v837, %v1837
    %v1839 = vlaneseq
    %v1840 = vshrl.u32 %v1839, 7
    %v1841 = vsub.s32 2, %v1840
    %v1842 = vrot.slane %v837, %v1841
    %v1843 = vlaneseq
    %v1844 = vshrl.u32 %v1843, 7
    %v1845 = vsub.s32 3, %v1844
    %v1846 = vrot.slane %v837, %v1845
    %v1847 = vlaneseq
    %v1848 = vshrl.u32 %v1847, 7
    %v1849 = vsub.s32 4, %v1848
    %v1850 = vrot.slane %v837, %v1849
    %v1851 = vlaneseq
    %v1852 = vshrl.u32 %v1851, 7
    %v1853 = vsub.s32 5, %v1852
    %v1854 = vrot.slane %v837, %v1853
    %v1855 = vlaneseq
    %v1856 = vshrl.u32 %v1855, 7
    %v1857 = vsub.s32 6, %v1856
    %v1858 = vrot.slane %v837, %v1857
    %v1859 = vlaneseq
    %v1860 = vshrl.u32 %v1859, 7
    %v1861 = vsub.s32 7, %v1860
    %v1862 = vrot.slane %v837, %v1861
    %v1863 = vlaneseq
    %v1864 = vshrl.u32 %v1863, 7
    %v1865 = vsub.s32 0, %v1864
    %v1866 = vrot.slane %v838, %v1865
    %v1867 = vlaneseq
    %v1868 = vshrl.u32 %v1867, 7
    %v1869 = vsub.s32 1, %v1868
    %v1870 = vrot.slane %v838, %v1869
    %v1871 = vlaneseq
    %v1872 = vshrl.u32 %v1871, 7
    %v1873 = vsub.s32 2, %v1872
    %v1874 = vrot.slane %v838, %v1873
    %v1875 = vlaneseq
    %v1876 = vshrl.u32 %v1875, 7
    %v1877 = vsub.s32 3, %v1876
    %v1878 = vrot.slane %v838, %v1877
    %v1879 = vlaneseq
    %v1880 = vshrl.u32 %v1879, 7
    %v1881 = vsub.s32 4, %v1880
    %v1882 = vrot.slane %v838, %v1881
    %v1883 = vlaneseq
    %v1884 = vshrl.u32 %v1883, 7
    %v1885 = vsub.s32 5, %v1884
    %v1886 = vrot.slane %v838, %v1885
    %v1887 = vlaneseq
    %v1888 = vshrl.u32 %v1887, 7
    %v1889 = vsub.s32 6, %v1888
    %v1890 = vrot.slane %v838, %v1889
    %v1891 = vlaneseq
    %v1892 = vshrl.u32 %v1891, 7
    %v1893 = vsub.s32 7, %v1892
    %v1894 = vrot.slane %v838, %v1893
    %v1895 = vcombine.low %v874, %v878
    %v1896 = vcombine.low %v882, %v886
    %v1897 = vcombine.low %v890, %v894
    %v1898 = vcombine.low %v898, %v902
    %v1900 = vunpack.c.l.s4 1966171168
    %v1901 = vunpack.c.0.s8 %v1900
    %v1902 = vlaneseq
    %v1903 = vshrl.u32 %v1902, 7
    %v1904 = vsub.s32 %v1901, %v1903
    %v1905 = vrot.slane %v1895, %v1904
    %v1907 = vunpack.c.l.s4 1966171168
    %v1908 = vunpack.c.0.s8 %v1907
    %v1909 = vlaneseq
    %v1910 = vshrl.u32 %v1909, 7
    %v1911 = vsub.s32 %v1908, %v1910
    %v1912 = vrot.slane %v1896, %v1911
    %v1914 = vunpack.c.l.s4 1966171168
    %v1915 = vunpack.c.0.s8 %v1914
    %v1916 = vlaneseq
    %v1917 = vshrl.u32 %v1916, 7
    %v1918 = vsub.s32 %v1915, %v1917
    %v1919 = vrot.slane %v1897, %v1918
    %v1921 = vunpack.c.l.s4 1966171168
    %v1922 = vunpack.c.0.s8 %v1921
    %v1923 = vlaneseq
    %v1924 = vshrl.u32 %v1923, 7
    %v1925 = vsub.s32 %v1922, %v1924
    %v1926 = vrot.slane %v1898, %v1925
    %v1927 = vcombine.low %v1905, %v1912
    %v1928 = vcombine.low %v1919, %v1926
    %v1930 = vunpack.c.l.s4 1966171168
    %v1931 = vunpack.c.0.s8 %v1930
    %v1932 = vlaneseq
    %v1933 = vshrl.u32 %v1932, 7
    %v1934 = vsub.s32 %v1931, %v1933
    %v1935 = vrot.slane %v1927, %v1934
    %v1937 = vunpack.c.l.s4 1966171168
    %v1938 = vunpack.c.0.s8 %v1937
    %v1939 = vlaneseq
    %v1940 = vshrl.u32 %v1939, 7
    %v1941 = vsub.s32 %v1938, %v1940
    %v1942 = vrot.slane %v1928, %v1941
    %v1943 = vcombine.low %v1935, %v1942
    %v1944 = vcombine.low %v906, %v910
    %v1945 = vcombine.low %v914, %v918
    %v1946 = vcombine.low %v922, %v926
    %v1947 = vcombine.low %v930, %v934
    %v1949 = vunpack.c.l.s4 1966171168
    %v1950 = vunpack.c.0.s8 %v1949
    %v1951 = vlaneseq
    %v1952 = vshrl.u32 %v1951, 7
    %v1953 = vsub.s32 %v1950, %v1952
    %v1954 = vrot.slane %v1944, %v1953
    %v1956 = vunpack.c.l.s4 1966171168
    %v1957 = vunpack.c.0.s8 %v1956
    %v1958 = vlaneseq
    %v1959 = vshrl.u32 %v1958, 7
    %v1960 = vsub.s32 %v1957, %v1959
    %v1961 = vrot.slane %v1945, %v1960
    %v1963 = vunpack.c.l.s4 1966171168
    %v1964 = vunpack.c.0.s8 %v1963
    %v1965 = vlaneseq
    %v1966 = vshrl.u32 %v1965, 7
    %v1967 = vsub.s32 %v1964, %v1966
    %v1968 = vrot.slane %v1946, %v1967
    %v1970 = vunpack.c.l.s4 1966171168
    %v1971 = vunpack.c.0.s8 %v1970
    %v1972 = vlaneseq
    %v1973 = vshrl.u32 %v1972, 7
    %v1974 = vsub.s32 %v1971, %v1973
    %v1975 = vrot.slane %v1947, %v1974
    %v1976 = vcombine.low %v1954, %v1961
    %v1977 = vcombine.low %v1968, %v1975
    %v1979 = vunpack.c.l.s4 1966171168
    %v1980 = vunpack.c.0.s8 %v1979
    %v1981 = vlaneseq
    %v1982 = vshrl.u32 %v1981, 7
    %v1983 = vsub.s32 %v1980, %v1982
    %v1984 = vrot.slane %v1976, %v1983
    %v1986 = vunpack.c.l.s4 1966171168
    %v1987 = vunpack.c.0.s8 %v1986
    %v1988 = vlaneseq
    %v1989 = vshrl.u32 %v1988, 7
    %v1990 = vsub.s32 %v1987, %v1989
    %v1991 = vrot.slane %v1977, %v1990
    %v1992 = vcombine.low %v1984, %v1991
    %v1993 = vcombine.low %v938, %v942
    %v1994 = vcombine.low %v946, %v950
    %v1995 = vcombine.low %v954, %v958
    %v1996 = vcombine.low %v962, %v966
    %v1998 = vunpack.c.l.s4 1966171168
    %v1999 = vunpack.c.0.s8 %v1998
    %v2000 = vlaneseq
    %v2001 = vshrl.u32 %v2000, 7
    %v2002 = vsub.s32 %v1999, %v2001
    %v2003 = vrot.slane %v1993, %v2002
    %v2005 = vunpack.c.l.s4 1966171168
    %v2006 = vunpack.c.0.s8 %v2005
    %v2007 = vlaneseq
    %v2008 = vshrl.u32 %v2007, 7
    %v2009 = vsub.s32 %v2006, %v2008
    %v2010 = vrot.slane %v1994, %v2009
    %v2012 = vunpack.c.l.s4 1966171168
    %v2013 = vunpack.c.0.s8 %v2012
    %v2014 = vlaneseq
    %v2015 = vshrl.u32 %v2014, 7
    %v2016 = vsub.s32 %v2013, %v2015
    %v2017 = vrot.slane %v1995, %v2016
    %v2019 = vunpack.c.l.s4 1966171168
    %v2020 = vunpack.c.0.s8 %v2019
    %v2021 = vlaneseq
    %v2022 = vshrl.u32 %v2021, 7
    %v2023 = vsub.s32 %v2020, %v2022
    %v2024 = vrot.slane %v1996, %v2023
    %v2025 = vcombine.low %v2003, %v2010
    %v2026 = vcombine.low %v2017, %v2024
    %v2028 = vunpack.c.l.s4 1966171168
    %v2029 = vunpack.c.0.s8 %v2028
    %v2030 = vlaneseq
    %v2031 = vshrl.u32 %v2030, 7
    %v2032 = vsub.s32 %v2029, %v2031
    %v2033 = vrot.slane %v2025, %v2032
    %v2035 = vunpack.c.l.s4 1966171168
    %v2036 = vunpack.c.0.s8 %v2035
    %v2037 = vlaneseq
    %v2038 = vshrl.u32 %v2037, 7
    %v2039 = vsub.s32 %v2036, %v2038
    %v2040 = vrot.slane %v2026, %v2039
    %v2041 = vcombine.low %v2033, %v2040
    %v2042 = vcombine.low %v970, %v974
    %v2043 = vcombine.low %v978, %v982
    %v2044 = vcombine.low %v986, %v990
    %v2045 = vcombine.low %v994, %v998
    %v2047 = vunpack.c.l.s4 1966171168
    %v2048 = vunpack.c.0.s8 %v2047
    %v2049 = vlaneseq
    %v2050 = vshrl.u32 %v2049, 7
    %v2051 = vsub.s32 %v2048, %v2050
    %v2052 = vrot.slane %v2042, %v2051
    %v2054 = vunpack.c.l.s4 1966171168
    %v2055 = vunpack.c.0.s8 %v2054
    %v2056 = vlaneseq
    %v2057 = vshrl.u32 %v2056, 7
    %v2058 = vsub.s32 %v2055, %v2057
    %v2059 = vrot.slane %v2043, %v2058
    %v2061 = vunpack.c.l.s4 1966171168
    %v2062 = vunpack.c.0.s8 %v2061
    %v2063 = vlaneseq
    %v2064 = vshrl.u32 %v2063, 7
    %v2065 = vsub.s32 %v2062, %v2064
    %v2066 = vrot.slane %v2044, %v2065
    %v2068 = vunpack.c.l.s4 1966171168
    %v2069 = vunpack.c.0.s8 %v2068
    %v2070 = vlaneseq
    %v2071 = vshrl.u32 %v2070, 7
    %v2072 = vsub.s32 %v2069, %v2071
    %v2073 = vrot.slane %v2045, %v2072
    %v2074 = vcombine.low %v2052, %v2059
    %v2075 = vcombine.low %v2066, %v2073
    %v2077 = vunpack.c.l.s4 1966171168
    %v2078 = vunpack.c.0.s8 %v2077
    %v2079 = vlaneseq
    %v2080 = vshrl.u32 %v2079, 7
    %v2081 = vsub.s32 %v2078, %v2080
    %v2082 = vrot.slane %v2074, %v2081
    %v2084 = vunpack.c.l.s4 1966171168
    %v2085 = vunpack.c.0.s8 %v2084
    %v2086 = vlaneseq
    %v2087 = vshrl.u32 %v2086, 7
    %v2088 = vsub.s32 %v2085, %v2087
    %v2089 = vrot.slane %v2075, %v2088
    %v2090 = vcombine.low %v2082, %v2089
    %v2091 = vcombine.low %v1002, %v1006
    %v2092 = vcombine.low %v1010, %v1014
    %v2093 = vcombine.low %v1018, %v1022
    %v2094 = vcombine.low %v1026, %v1030
    %v2096 = vunpack.c.l.s4 1966171168
    %v2097 = vunpack.c.0.s8 %v2096
    %v2098 = vlaneseq
    %v2099 = vshrl.u32 %v2098, 7
    %v2100 = vsub.s32 %v2097, %v2099
    %v2101 = vrot.slane %v2091, %v2100
    %v2103 = vunpack.c.l.s4 1966171168
    %v2104 = vunpack.c.0.s8 %v2103
    %v2105 = vlaneseq
    %v2106 = vshrl.u32 %v2105, 7
    %v2107 = vsub.s32 %v2104, %v2106
    %v2108 = vrot.slane %v2092, %v2107
    %v2110 = vunpack.c.l.s4 1966171168
    %v2111 = vunpack.c.0.s8 %v2110
    %v2112 = vlaneseq
    %v2113 = vshrl.u32 %v2112, 7
    %v2114 = vsub.s32 %v2111, %v2113
    %v2115 = vrot.slane %v2093, %v2114
    %v2117 = vunpack.c.l.s4 1966171168
    %v2118 = vunpack.c.0.s8 %v2117
    %v2119 = vlaneseq
    %v2120 = vshrl.u32 %v2119, 7
    %v2121 = vsub.s32 %v2118, %v2120
    %v2122 = vrot.slane %v2094, %v2121
    %v2123 = vcombine.low %v2101, %v2108
    %v2124 = vcombine.low %v2115, %v2122
    %v2126 = vunpack.c.l.s4 1966171168
    %v2127 = vunpack.c.0.s8 %v2126
    %v2128 = vlaneseq
    %v2129 = vshrl.u32 %v2128, 7
    %v2130 = vsub.s32 %v2127, %v2129
    %v2131 = vrot.slane %v2123, %v2130
    %v2133 = vunpack.c.l.s4 1966171168
    %v2134 = vunpack.c.0.s8 %v2133
    %v2135 = vlaneseq
    %v2136 = vshrl.u32 %v2135, 7
    %v2137 = vsub.s32 %v2134, %v2136
    %v2138 = vrot.slane %v2124, %v2137
    %v2139 = vcombine.low %v2131, %v2138
    %v2140 = vcombine.low %v1034, %v1038
    %v2141 = vcombine.low %v1042, %v1046
    %v2142 = vcombine.low %v1050, %v1054
    %v2143 = vcombine.low %v1058, %v1062
    %v2145 = vunpack.c.l.s4 1966171168
    %v2146 = vunpack.c.0.s8 %v2145
    %v2147 = vlaneseq
    %v2148 = vshrl.u32 %v2147, 7
    %v2149 = vsub.s32 %v2146, %v2148
    %v2150 = vrot.slane %v2140, %v2149
    %v2152 = vunpack.c.l.s4 1966171168
    %v2153 = vunpack.c.0.s8 %v2152
    %v2154 = vlaneseq
    %v2155 = vshrl.u32 %v2154, 7
    %v2156 = vsub.s32 %v2153, %v2155
    %v2157 = vrot.slane %v2141, %v2156
    %v2159 = vunpack.c.l.s4 1966171168
    %v2160 = vunpack.c.0.s8 %v2159
    %v2161 = vlaneseq
    %v2162 = vshrl.u32 %v2161, 7
    %v2163 = vsub.s32 %v2160, %v2162
    %v2164 = vrot.slane %v2142, %v2163
    %v2166 = vunpack.c.l.s4 1966171168
    %v2167 = vunpack.c.0.s8 %v2166
    %v2168 = vlaneseq
    %v2169 = vshrl.u32 %v2168, 7
    %v2170 = vsub.s32 %v2167, %v2169
    %v2171 = vrot.slane %v2143, %v2170
    %v2172 = vcombine.low %v2150, %v2157
    %v2173 = vcombine.low %v2164, %v2171
    %v2175 = vunpack.c.l.s4 1966171168
    %v2176 = vunpack.c.0.s8 %v2175
    %v2177 = vlaneseq
    %v2178 = vshrl.u32 %v2177, 7
    %v2179 = vsub.s32 %v2176, %v2178
    %v2180 = vrot.slane %v2172, %v2179
    %v2182 = vunpack.c.l.s4 1966171168
    %v2183 = vunpack.c.0.s8 %v2182
    %v2184 = vlaneseq
    %v2185 = vshrl.u32 %v2184, 7
    %v2186 = vsub.s32 %v2183, %v2185
    %v2187 = vrot.slane %v2173, %v2186
    %v2188 = vcombine.low %v2180, %v2187
    %v2189 = vcombine.low %v1066, %v1070
    %v2190 = vcombine.low %v1074, %v1078
    %v2191 = vcombine.low %v1082, %v1086
    %v2192 = vcombine.low %v1090, %v1094
    %v2194 = vunpack.c.l.s4 1966171168
    %v2195 = vunpack.c.0.s8 %v2194
    %v2196 = vlaneseq
    %v2197 = vshrl.u32 %v2196, 7
    %v2198 = vsub.s32 %v2195, %v2197
    %v2199 = vrot.slane %v2189, %v2198
    %v2201 = vunpack.c.l.s4 1966171168
    %v2202 = vunpack.c.0.s8 %v2201
    %v2203 = vlaneseq
    %v2204 = vshrl.u32 %v2203, 7
    %v2205 = vsub.s32 %v2202, %v2204
    %v2206 = vrot.slane %v2190, %v2205
    %v2208 = vunpack.c.l.s4 1966171168
    %v2209 = vunpack.c.0.s8 %v2208
    %v2210 = vlaneseq
    %v2211 = vshrl.u32 %v2210, 7
    %v2212 = vsub.s32 %v2209, %v2211
    %v2213 = vrot.slane %v2191, %v2212
    %v2215 = vunpack.c.l.s4 1966171168
    %v2216 = vunpack.c.0.s8 %v2215
    %v2217 = vlaneseq
    %v2218 = vshrl.u32 %v2217, 7
    %v2219 = vsub.s32 %v2216, %v2218
    %v2220 = vrot.slane %v2192, %v2219
    %v2221 = vcombine.low %v2199, %v2206
    %v2222 = vcombine.low %v2213, %v2220
    %v2224 = vunpack.c.l.s4 1966171168
    %v2225 = vunpack.c.0.s8 %v2224
    %v2226 = vlaneseq
    %v2227 = vshrl.u32 %v2226, 7
    %v2228 = vsub.s32 %v2225, %v2227
    %v2229 = vrot.slane %v2221, %v2228
    %v2231 = vunpack.c.l.s4 1966171168
    %v2232 = vunpack.c.0.s8 %v2231
    %v2233 = vlaneseq
    %v2234 = vshrl.u32 %v2233, 7
    %v2235 = vsub.s32 %v2232, %v2234
    %v2236 = vrot.slane %v2222, %v2235
    %v2237 = vcombine.low %v2229, %v2236
    %v2238 = vcombine.low %v1098, %v1102
    %v2239 = vcombine.low %v1106, %v1110
    %v2240 = vcombine.low %v1114, %v1118
    %v2241 = vcombine.low %v1122, %v1126
    %v2243 = vunpack.c.l.s4 1966171168
    %v2244 = vunpack.c.0.s8 %v2243
    %v2245 = vlaneseq
    %v2246 = vshrl.u32 %v2245, 7
    %v2247 = vsub.s32 %v2244, %v2246
    %v2248 = vrot.slane %v2238, %v2247
    %v2250 = vunpack.c.l.s4 1966171168
    %v2251 = vunpack.c.0.s8 %v2250
    %v2252 = vlaneseq
    %v2253 = vshrl.u32 %v2252, 7
    %v2254 = vsub.s32 %v2251, %v2253
    %v2255 = vrot.slane %v2239, %v2254
    %v2257 = vunpack.c.l.s4 1966171168
    %v2258 = vunpack.c.0.s8 %v2257
    %v2259 = vlaneseq
    %v2260 = vshrl.u32 %v2259, 7
    %v2261 = vsub.s32 %v2258, %v2260
    %v2262 = vrot.slane %v2240, %v2261
    %v2264 = vunpack.c.l.s4 1966171168
    %v2265 = vunpack.c.0.s8 %v2264
    %v2266 = vlaneseq
    %v2267 = vshrl.u32 %v2266, 7
    %v2268 = vsub.s32 %v2265, %v2267
    %v2269 = vrot.slane %v2241, %v2268
    %v2270 = vcombine.low %v2248, %v2255
    %v2271 = vcombine.low %v2262, %v2269
    %v2273 = vunpack.c.l.s4 1966171168
    %v2274 = vunpack.c.0.s8 %v2273
    %v2275 = vlaneseq
    %v2276 = vshrl.u32 %v2275, 7
    %v2277 = vsub.s32 %v2274, %v2276
    %v2278 = vrot.slane %v2270, %v2277
    %v2280 = vunpack.c.l.s4 1966171168
    %v2281 = vunpack.c.0.s8 %v2280
    %v2282 = vlaneseq
    %v2283 = vshrl.u32 %v2282, 7
    %v2284 = vsub.s32 %v2281, %v2283
    %v2285 = vrot.slane %v2271, %v2284
    %v2286 = vcombine.low %v2278, %v2285
    %v2287 = vcombine.low %v1130, %v1134
    %v2288 = vcombine.low %v1138, %v1142
    %v2289 = vcombine.low %v1146, %v1150
    %v2290 = vcombine.low %v1154, %v1158
    %v2292 = vunpack.c.l.s4 1966171168
    %v2293 = vunpack.c.0.s8 %v2292
    %v2294 = vlaneseq
    %v2295 = vshrl.u32 %v2294, 7
    %v2296 = vsub.s32 %v2293, %v2295
    %v2297 = vrot.slane %v2287, %v2296
    %v2299 = vunpack.c.l.s4 1966171168
    %v2300 = vunpack.c.0.s8 %v2299
    %v2301 = vlaneseq
    %v2302 = vshrl.u32 %v2301, 7
    %v2303 = vsub.s32 %v2300, %v2302
    %v2304 = vrot.slane %v2288, %v2303
    %v2306 = vunpack.c.l.s4 1966171168
    %v2307 = vunpack.c.0.s8 %v2306
    %v2308 = vlaneseq
    %v2309 = vshrl.u32 %v2308, 7
    %v2310 = vsub.s32 %v2307, %v2309
    %v2311 = vrot.slane %v2289, %v2310
    %v2313 = vunpack.c.l.s4 1966171168
    %v2314 = vunpack.c.0.s8 %v2313
    %v2315 = vlaneseq
    %v2316 = vshrl.u32 %v2315, 7
    %v2317 = vsub.s32 %v2314, %v2316
    %v2318 = vrot.slane %v2290, %v2317
    %v2319 = vcombine.low %v2297, %v2304
    %v2320 = vcombine.low %v2311, %v2318
    %v2322 = vunpack.c.l.s4 1966171168
    %v2323 = vunpack.c.0.s8 %v2322
    %v2324 = vlaneseq
    %v2325 = vshrl.u32 %v2324, 7
    %v2326 = vsub.s32 %v2323, %v2325
    %v2327 = vrot.slane %v2319, %v2326
    %v2329 = vunpack.c.l.s4 1966171168
    %v2330 = vunpack.c.0.s8 %v2329
    %v2331 = vlaneseq
    %v2332 = vshrl.u32 %v2331, 7
    %v2333 = vsub.s32 %v2330, %v2332
    %v2334 = vrot.slane %v2320, %v2333
    %v2335 = vcombine.low %v2327, %v2334
    %v2336 = vcombine.low %v1162, %v1166
    %v2337 = vcombine.low %v1170, %v1174
    %v2338 = vcombine.low %v1178, %v1182
    %v2339 = vcombine.low %v1186, %v1190
    %v2341 = vunpack.c.l.s4 1966171168
    %v2342 = vunpack.c.0.s8 %v2341
    %v2343 = vlaneseq
    %v2344 = vshrl.u32 %v2343, 7
    %v2345 = vsub.s32 %v2342, %v2344
    %v2346 = vrot.slane %v2336, %v2345
    %v2348 = vunpack.c.l.s4 1966171168
    %v2349 = vunpack.c.0.s8 %v2348
    %v2350 = vlaneseq
    %v2351 = vshrl.u32 %v2350, 7
    %v2352 = vsub.s32 %v2349, %v2351
    %v2353 = vrot.slane %v2337, %v2352
    %v2355 = vunpack.c.l.s4 1966171168
    %v2356 = vunpack.c.0.s8 %v2355
    %v2357 = vlaneseq
    %v2358 = vshrl.u32 %v2357, 7
    %v2359 = vsub.s32 %v2356, %v2358
    %v2360 = vrot.slane %v2338, %v2359
    %v2362 = vunpack.c.l.s4 1966171168
    %v2363 = vunpack.c.0.s8 %v2362
    %v2364 = vlaneseq
    %v2365 = vshrl.u32 %v2364, 7
    %v2366 = vsub.s32 %v2363, %v2365
    %v2367 = vrot.slane %v2339, %v2366
    %v2368 = vcombine.low %v2346, %v2353
    %v2369 = vcombine.low %v2360, %v2367
    %v2371 = vunpack.c.l.s4 1966171168
    %v2372 = vunpack.c.0.s8 %v2371
    %v2373 = vlaneseq
    %v2374 = vshrl.u32 %v2373, 7
    %v2375 = vsub.s32 %v2372, %v2374
    %v2376 = vrot.slane %v2368, %v2375
    %v2378 = vunpack.c.l.s4 1966171168
    %v2379 = vunpack.c.0.s8 %v2378
    %v2380 = vlaneseq
    %v2381 = vshrl.u32 %v2380, 7
    %v2382 = vsub.s32 %v2379, %v2381
    %v2383 = vrot.slane %v2369, %v2382
    %v2384 = vcombine.low %v2376, %v2383
    %v2385 = vcombine.low %v1194, %v1198
    %v2386 = vcombine.low %v1202, %v1206
    %v2387 = vcombine.low %v1210, %v1214
    %v2388 = vcombine.low %v1218, %v1222
    %v2390 = vunpack.c.l.s4 1966171168
    %v2391 = vunpack.c.0.s8 %v2390
    %v2392 = vlaneseq
    %v2393 = vshrl.u32 %v2392, 7
    %v2394 = vsub.s32 %v2391, %v2393
    %v2395 = vrot.slane %v2385, %v2394
    %v2397 = vunpack.c.l.s4 1966171168
    %v2398 = vunpack.c.0.s8 %v2397
    %v2399 = vlaneseq
    %v2400 = vshrl.u32 %v2399, 7
    %v2401 = vsub.s32 %v2398, %v2400
    %v2402 = vrot.slane %v2386, %v2401
    %v2404 = vunpack.c.l.s4 1966171168
    %v2405 = vunpack.c.0.s8 %v2404
    %v2406 = vlaneseq
    %v2407 = vshrl.u32 %v2406, 7
    %v2408 = vsub.s32 %v2405, %v2407
    %v2409 = vrot.slane %v2387, %v2408
    %v2411 = vunpack.c.l.s4 1966171168
    %v2412 = vunpack.c.0.s8 %v2411
    %v2413 = vlaneseq
    %v2414 = vshrl.u32 %v2413, 7
    %v2415 = vsub.s32 %v2412, %v2414
    %v2416 = vrot.slane %v2388, %v2415
    %v2417 = vcombine.low %v2395, %v2402
    %v2418 = vcombine.low %v2409, %v2416
    %v2420 = vunpack.c.l.s4 1966171168
    %v2421 = vunpack.c.0.s8 %v2420
    %v2422 = vlaneseq
    %v2423 = vshrl.u32 %v2422, 7
    %v2424 = vsub.s32 %v2421, %v2423
    %v2425 = vrot.slane %v2417, %v2424
    %v2427 = vunpack.c.l.s4 1966171168
    %v2428 = vunpack.c.0.s8 %v2427
    %v2429 = vlaneseq
    %v2430 = vshrl.u32 %v2429, 7
    %v2431 = vsub.s32 %v2428, %v2430
    %v2432 = vrot.slane %v2418, %v2431
    %v2433 = vcombine.low %v2425, %v2432
    %v2434 = vcombine.low %v1226, %v1230
    %v2435 = vcombine.low %v1234, %v1238
    %v2436 = vcombine.low %v1242, %v1246
    %v2437 = vcombine.low %v1250, %v1254
    %v2439 = vunpack.c.l.s4 1966171168
    %v2440 = vunpack.c.0.s8 %v2439
    %v2441 = vlaneseq
    %v2442 = vshrl.u32 %v2441, 7
    %v2443 = vsub.s32 %v2440, %v2442
    %v2444 = vrot.slane %v2434, %v2443
    %v2446 = vunpack.c.l.s4 1966171168
    %v2447 = vunpack.c.0.s8 %v2446
    %v2448 = vlaneseq
    %v2449 = vshrl.u32 %v2448, 7
    %v2450 = vsub.s32 %v2447, %v2449
    %v2451 = vrot.slane %v2435, %v2450
    %v2453 = vunpack.c.l.s4 1966171168
    %v2454 = vunpack.c.0.s8 %v2453
    %v2455 = vlaneseq
    %v2456 = vshrl.u32 %v2455, 7
    %v2457 = vsub.s32 %v2454, %v2456
    %v2458 = vrot.slane %v2436, %v2457
    %v2460 = vunpack.c.l.s4 1966171168
    %v2461 = vunpack.c.0.s8 %v2460
    %v2462 = vlaneseq
    %v2463 = vshrl.u32 %v2462, 7
    %v2464 = vsub.s32 %v2461, %v2463
    %v2465 = vrot.slane %v2437, %v2464
    %v2466 = vcombine.low %v2444, %v2451
    %v2467 = vcombine.low %v2458, %v2465
    %v2469 = vunpack.c.l.s4 1966171168
    %v2470 = vunpack.c.0.s8 %v2469
    %v2471 = vlaneseq
    %v2472 = vshrl.u32 %v2471, 7
    %v2473 = vsub.s32 %v2470, %v2472
    %v2474 = vrot.slane %v2466, %v2473
    %v2476 = vunpack.c.l.s4 1966171168
    %v2477 = vunpack.c.0.s8 %v2476
    %v2478 = vlaneseq
    %v2479 = vshrl.u32 %v2478, 7
    %v2480 = vsub.s32 %v2477, %v2479
    %v2481 = vrot.slane %v2467, %v2480
    %v2482 = vcombine.low %v2474, %v2481
    %v2483 = vcombine.low %v1258, %v1262
    %v2484 = vcombine.low %v1266, %v1270
    %v2485 = vcombine.low %v1274, %v1278
    %v2486 = vcombine.low %v1282, %v1286
    %v2488 = vunpack.c.l.s4 1966171168
    %v2489 = vunpack.c.0.s8 %v2488
    %v2490 = vlaneseq
    %v2491 = vshrl.u32 %v2490, 7
    %v2492 = vsub.s32 %v2489, %v2491
    %v2493 = vrot.slane %v2483, %v2492
    %v2495 = vunpack.c.l.s4 1966171168
    %v2496 = vunpack.c.0.s8 %v2495
    %v2497 = vlaneseq
    %v2498 = vshrl.u32 %v2497, 7
    %v2499 = vsub.s32 %v2496, %v2498
    %v2500 = vrot.slane %v2484, %v2499
    %v2502 = vunpack.c.l.s4 1966171168
    %v2503 = vunpack.c.0.s8 %v2502
    %v2504 = vlaneseq
    %v2505 = vshrl.u32 %v2504, 7
    %v2506 = vsub.s32 %v2503, %v2505
    %v2507 = vrot.slane %v2485, %v2506
    %v2509 = vunpack.c.l.s4 1966171168
    %v2510 = vunpack.c.0.s8 %v2509
    %v2511 = vlaneseq
    %v2512 = vshrl.u32 %v2511, 7
    %v2513 = vsub.s32 %v2510, %v2512
    %v2514 = vrot.slane %v2486, %v2513
    %v2515 = vcombine.low %v2493, %v2500
    %v2516 = vcombine.low %v2507, %v2514
    %v2518 = vunpack.c.l.s4 1966171168
    %v2519 = vunpack.c.0.s8 %v2518
    %v2520 = vlaneseq
    %v2521 = vshrl.u32 %v2520, 7
    %v2522 = vsub.s32 %v2519, %v2521
    %v2523 = vrot.slane %v2515, %v2522
    %v2525 = vunpack.c.l.s4 1966171168
    %v2526 = vunpack.c.0.s8 %v2525
    %v2527 = vlaneseq
    %v2528 = vshrl.u32 %v2527, 7
    %v2529 = vsub.s32 %v2526, %v2528
    %v2530 = vrot.slane %v2516, %v2529
    %v2531 = vcombine.low %v2523, %v2530
    %v2532 = vcombine.low %v1290, %v1294
    %v2533 = vcombine.low %v1298, %v1302
    %v2534 = vcombine.low %v1306, %v1310
    %v2535 = vcombine.low %v1314, %v1318
    %v2537 = vunpack.c.l.s4 1966171168
    %v2538 = vunpack.c.0.s8 %v2537
    %v2539 = vlaneseq
    %v2540 = vshrl.u32 %v2539, 7
    %v2541 = vsub.s32 %v2538, %v2540
    %v2542 = vrot.slane %v2532, %v2541
    %v2544 = vunpack.c.l.s4 1966171168
    %v2545 = vunpack.c.0.s8 %v2544
    %v2546 = vlaneseq
    %v2547 = vshrl.u32 %v2546, 7
    %v2548 = vsub.s32 %v2545, %v2547
    %v2549 = vrot.slane %v2533, %v2548
    %v2551 = vunpack.c.l.s4 1966171168
    %v2552 = vunpack.c.0.s8 %v2551
    %v2553 = vlaneseq
    %v2554 = vshrl.u32 %v2553, 7
    %v2555 = vsub.s32 %v2552, %v2554
    %v2556 = vrot.slane %v2534, %v2555
    %v2558 = vunpack.c.l.s4 1966171168
    %v2559 = vunpack.c.0.s8 %v2558
    %v2560 = vlaneseq
    %v2561 = vshrl.u32 %v2560, 7
    %v2562 = vsub.s32 %v2559, %v2561
    %v2563 = vrot.slane %v2535, %v2562
    %v2564 = vcombine.low %v2542, %v2549
    %v2565 = vcombine.low %v2556, %v2563
    %v2567 = vunpack.c.l.s4 1966171168
    %v2568 = vunpack.c.0.s8 %v2567
    %v2569 = vlaneseq
    %v2570 = vshrl.u32 %v2569, 7
    %v2571 = vsub.s32 %v2568, %v2570
    %v2572 = vrot.slane %v2564, %v2571
    %v2574 = vunpack.c.l.s4 1966171168
    %v2575 = vunpack.c.0.s8 %v2574
    %v2576 = vlaneseq
    %v2577 = vshrl.u32 %v2576, 7
    %v2578 = vsub.s32 %v2575, %v2577
    %v2579 = vrot.slane %v2565, %v2578
    %v2580 = vcombine.low %v2572, %v2579
    %v2581 = vcombine.low %v1322, %v1326
    %v2582 = vcombine.low %v1330, %v1334
    %v2583 = vcombine.low %v1338, %v1342
    %v2584 = vcombine.low %v1346, %v1350
    %v2586 = vunpack.c.l.s4 1966171168
    %v2587 = vunpack.c.0.s8 %v2586
    %v2588 = vlaneseq
    %v2589 = vshrl.u32 %v2588, 7
    %v2590 = vsub.s32 %v2587, %v2589
    %v2591 = vrot.slane %v2581, %v2590
    %v2593 = vunpack.c.l.s4 1966171168
    %v2594 = vunpack.c.0.s8 %v2593
    %v2595 = vlaneseq
    %v2596 = vshrl.u32 %v2595, 7
    %v2597 = vsub.s32 %v2594, %v2596
    %v2598 = vrot.slane %v2582, %v2597
    %v2600 = vunpack.c.l.s4 1966171168
    %v2601 = vunpack.c.0.s8 %v2600
    %v2602 = vlaneseq
    %v2603 = vshrl.u32 %v2602, 7
    %v2604 = vsub.s32 %v2601, %v2603
    %v2605 = vrot.slane %v2583, %v2604
    %v2607 = vunpack.c.l.s4 1966171168
    %v2608 = vunpack.c.0.s8 %v2607
    %v2609 = vlaneseq
    %v2610 = vshrl.u32 %v2609, 7
    %v2611 = vsub.s32 %v2608, %v2610
    %v2612 = vrot.slane %v2584, %v2611
    %v2613 = vcombine.low %v2591, %v2598
    %v2614 = vcombine.low %v2605, %v2612
    %v2616 = vunpack.c.l.s4 1966171168
    %v2617 = vunpack.c.0.s8 %v2616
    %v2618 = vlaneseq
    %v2619 = vshrl.u32 %v2618, 7
    %v2620 = vsub.s32 %v2617, %v2619
    %v2621 = vrot.slane %v2613, %v2620
    %v2623 = vunpack.c.l.s4 1966171168
    %v2624 = vunpack.c.0.s8 %v2623
    %v2625 = vlaneseq
    %v2626 = vshrl.u32 %v2625, 7
    %v2627 = vsub.s32 %v2624, %v2626
    %v2628 = vrot.slane %v2614, %v2627
    %v2629 = vcombine.low %v2621, %v2628
    %v2630 = vcombine.low %v1354, %v1358
    %v2631 = vcombine.low %v1362, %v1366
    %v2632 = vcombine.low %v1370, %v1374
    %v2633 = vcombine.low %v1378, %v1382
    %v2635 = vunpack.c.l.s4 1966171168
    %v2636 = vunpack.c.0.s8 %v2635
    %v2637 = vlaneseq
    %v2638 = vshrl.u32 %v2637, 7
    %v2639 = vsub.s32 %v2636, %v2638
    %v2640 = vrot.slane %v2630, %v2639
    %v2642 = vunpack.c.l.s4 1966171168
    %v2643 = vunpack.c.0.s8 %v2642
    %v2644 = vlaneseq
    %v2645 = vshrl.u32 %v2644, 7
    %v2646 = vsub.s32 %v2643, %v2645
    %v2647 = vrot.slane %v2631, %v2646
    %v2649 = vunpack.c.l.s4 1966171168
    %v2650 = vunpack.c.0.s8 %v2649
    %v2651 = vlaneseq
    %v2652 = vshrl.u32 %v2651, 7
    %v2653 = vsub.s32 %v2650, %v2652
    %v2654 = vrot.slane %v2632, %v2653
    %v2656 = vunpack.c.l.s4 1966171168
    %v2657 = vunpack.c.0.s8 %v2656
    %v2658 = vlaneseq
    %v2659 = vshrl.u32 %v2658, 7
    %v2660 = vsub.s32 %v2657, %v2659
    %v2661 = vrot.slane %v2633, %v2660
    %v2662 = vcombine.low %v2640, %v2647
    %v2663 = vcombine.low %v2654, %v2661
    %v2665 = vunpack.c.l.s4 1966171168
    %v2666 = vunpack.c.0.s8 %v2665
    %v2667 = vlaneseq
    %v2668 = vshrl.u32 %v2667, 7
    %v2669 = vsub.s32 %v2666, %v2668
    %v2670 = vrot.slane %v2662, %v2669
    %v2672 = vunpack.c.l.s4 1966171168
    %v2673 = vunpack.c.0.s8 %v2672
    %v2674 = vlaneseq
    %v2675 = vshrl.u32 %v2674, 7
    %v2676 = vsub.s32 %v2673, %v2675
    %v2677 = vrot.slane %v2663, %v2676
    %v2678 = vcombine.low %v2670, %v2677
    %v2679 = vcombine.low %v1386, %v1390
    %v2680 = vcombine.low %v1394, %v1398
    %v2681 = vcombine.low %v1402, %v1406
    %v2682 = vcombine.low %v1410, %v1414
    %v2684 = vunpack.c.l.s4 1966171168
    %v2685 = vunpack.c.0.s8 %v2684
    %v2686 = vlaneseq
    %v2687 = vshrl.u32 %v2686, 7
    %v2688 = vsub.s32 %v2685, %v2687
    %v2689 = vrot.slane %v2679, %v2688
    %v2691 = vunpack.c.l.s4 1966171168
    %v2692 = vunpack.c.0.s8 %v2691
    %v2693 = vlaneseq
    %v2694 = vshrl.u32 %v2693, 7
    %v2695 = vsub.s32 %v2692, %v2694
    %v2696 = vrot.slane %v2680, %v2695
    %v2698 = vunpack.c.l.s4 1966171168
    %v2699 = vunpack.c.0.s8 %v2698
    %v2700 = vlaneseq
    %v2701 = vshrl.u32 %v2700, 7
    %v2702 = vsub.s32 %v2699, %v2701
    %v2703 = vrot.slane %v2681, %v2702
    %v2705 = vunpack.c.l.s4 1966171168
    %v2706 = vunpack.c.0.s8 %v2705
    %v2707 = vlaneseq
    %v2708 = vshrl.u32 %v2707, 7
    %v2709 = vsub.s32 %v2706, %v2708
    %v2710 = vrot.slane %v2682, %v2709
    %v2711 = vcombine.low %v2689, %v2696
    %v2712 = vcombine.low %v2703, %v2710
    %v2714 = vunpack.c.l.s4 1966171168
    %v2715 = vunpack.c.0.s8 %v2714
    %v2716 = vlaneseq
    %v2717 = vshrl.u32 %v2716, 7
    %v2718 = vsub.s32 %v2715, %v2717
    %v2719 = vrot.slane %v2711, %v2718
    %v2721 = vunpack.c.l.s4 1966171168
    %v2722 = vunpack.c.0.s8 %v2721
    %v2723 = vlaneseq
    %v2724 = vshrl.u32 %v2723, 7
    %v2725 = vsub.s32 %v2722, %v2724
    %v2726 = vrot.slane %v2712, %v2725
    %v2727 = vcombine.low %v2719, %v2726
    %v2728 = vcombine.low %v1418, %v1422
    %v2729 = vcombine.low %v1426, %v1430
    %v2730 = vcombine.low %v1434, %v1438
    %v2731 = vcombine.low %v1442, %v1446
    %v2733 = vunpack.c.l.s4 1966171168
    %v2734 = vunpack.c.0.s8 %v2733
    %v2735 = vlaneseq
    %v2736 = vshrl.u32 %v2735, 7
    %v2737 = vsub.s32 %v2734, %v2736
    %v2738 = vrot.slane %v2728, %v2737
    %v2740 = vunpack.c.l.s4 1966171168
    %v2741 = vunpack.c.0.s8 %v2740
    %v2742 = vlaneseq
    %v2743 = vshrl.u32 %v2742, 7
    %v2744 = vsub.s32 %v2741, %v2743
    %v2745 = vrot.slane %v2729, %v2744
    %v2747 = vunpack.c.l.s4 1966171168
    %v2748 = vunpack.c.0.s8 %v2747
    %v2749 = vlaneseq
    %v2750 = vshrl.u32 %v2749, 7
    %v2751 = vsub.s32 %v2748, %v2750
    %v2752 = vrot.slane %v2730, %v2751
    %v2754 = vunpack.c.l.s4 1966171168
    %v2755 = vunpack.c.0.s8 %v2754
    %v2756 = vlaneseq
    %v2757 = vshrl.u32 %v2756, 7
    %v2758 = vsub.s32 %v2755, %v2757
    %v2759 = vrot.slane %v2731, %v2758
    %v2760 = vcombine.low %v2738, %v2745
    %v2761 = vcombine.low %v2752, %v2759
    %v2763 = vunpack.c.l.s4 1966171168
    %v2764 = vunpack.c.0.s8 %v2763
    %v2765 = vlaneseq
    %v2766 = vshrl.u32 %v2765, 7
    %v2767 = vsub.s32 %v2764, %v2766
    %v2768 = vrot.slane %v2760, %v2767
    %v2770 = vunpack.c.l.s4 1966171168
    %v2771 = vunpack.c.0.s8 %v2770
    %v2772 = vlaneseq
    %v2773 = vshrl.u32 %v2772, 7
    %v2774 = vsub.s32 %v2771, %v2773
    %v2775 = vrot.slane %v2761, %v2774
    %v2776 = vcombine.low %v2768, %v2775
    %v2777 = vcombine.low %v1450, %v1454
    %v2778 = vcombine.low %v1458, %v1462
    %v2779 = vcombine.low %v1466, %v1470
    %v2780 = vcombine.low %v1474, %v1478
    %v2782 = vunpack.c.l.s4 1966171168
    %v2783 = vunpack.c.0.s8 %v2782
    %v2784 = vlaneseq
    %v2785 = vshrl.u32 %v2784, 7
    %v2786 = vsub.s32 %v2783, %v2785
    %v2787 = vrot.slane %v2777, %v2786
    %v2789 = vunpack.c.l.s4 1966171168
    %v2790 = vunpack.c.0.s8 %v2789
    %v2791 = vlaneseq
    %v2792 = vshrl.u32 %v2791, 7
    %v2793 = vsub.s32 %v2790, %v2792
    %v2794 = vrot.slane %v2778, %v2793
    %v2796 = vunpack.c.l.s4 1966171168
    %v2797 = vunpack.c.0.s8 %v2796
    %v2798 = vlaneseq
    %v2799 = vshrl.u32 %v2798, 7
    %v2800 = vsub.s32 %v2797, %v2799
    %v2801 = vrot.slane %v2779, %v2800
    %v2803 = vunpack.c.l.s4 1966171168
    %v2804 = vunpack.c.0.s8 %v2803
    %v2805 = vlaneseq
    %v2806 = vshrl.u32 %v2805, 7
    %v2807 = vsub.s32 %v2804, %v2806
    %v2808 = vrot.slane %v2780, %v2807
    %v2809 = vcombine.low %v2787, %v2794
    %v2810 = vcombine.low %v2801, %v2808
    %v2812 = vunpack.c.l.s4 1966171168
    %v2813 = vunpack.c.0.s8 %v2812
    %v2814 = vlaneseq
    %v2815 = vshrl.u32 %v2814, 7
    %v2816 = vsub.s32 %v2813, %v2815
    %v2817 = vrot.slane %v2809, %v2816
    %v2819 = vunpack.c.l.s4 1966171168
    %v2820 = vunpack.c.0.s8 %v2819
    %v2821 = vlaneseq
    %v2822 = vshrl.u32 %v2821, 7
    %v2823 = vsub.s32 %v2820, %v2822
    %v2824 = vrot.slane %v2810, %v2823
    %v2825 = vcombine.low %v2817, %v2824
    %v2826 = vcombine.low %v1482, %v1486
    %v2827 = vcombine.low %v1490, %v1494
    %v2828 = vcombine.low %v1498, %v1502
    %v2829 = vcombine.low %v1506, %v1510
    %v2831 = vunpack.c.l.s4 1966171168
    %v2832 = vunpack.c.0.s8 %v2831
    %v2833 = vlaneseq
    %v2834 = vshrl.u32 %v2833, 7
    %v2835 = vsub.s32 %v2832, %v2834
    %v2836 = vrot.slane %v2826, %v2835
    %v2838 = vunpack.c.l.s4 1966171168
    %v2839 = vunpack.c.0.s8 %v2838
    %v2840 = vlaneseq
    %v2841 = vshrl.u32 %v2840, 7
    %v2842 = vsub.s32 %v2839, %v2841
    %v2843 = vrot.slane %v2827, %v2842
    %v2845 = vunpack.c.l.s4 1966171168
    %v2846 = vunpack.c.0.s8 %v2845
    %v2847 = vlaneseq
    %v2848 = vshrl.u32 %v2847, 7
    %v2849 = vsub.s32 %v2846, %v2848
    %v2850 = vrot.slane %v2828, %v2849
    %v2852 = vunpack.c.l.s4 1966171168
    %v2853 = vunpack.c.0.s8 %v2852
    %v2854 = vlaneseq
    %v2855 = vshrl.u32 %v2854, 7
    %v2856 = vsub.s32 %v2853, %v2855
    %v2857 = vrot.slane %v2829, %v2856
    %v2858 = vcombine.low %v2836, %v2843
    %v2859 = vcombine.low %v2850, %v2857
    %v2861 = vunpack.c.l.s4 1966171168
    %v2862 = vunpack.c.0.s8 %v2861
    %v2863 = vlaneseq
    %v2864 = vshrl.u32 %v2863, 7
    %v2865 = vsub.s32 %v2862, %v2864
    %v2866 = vrot.slane %v2858, %v2865
    %v2868 = vunpack.c.l.s4 1966171168
    %v2869 = vunpack.c.0.s8 %v2868
    %v2870 = vlaneseq
    %v2871 = vshrl.u32 %v2870, 7
    %v2872 = vsub.s32 %v2869, %v2871
    %v2873 = vrot.slane %v2859, %v2872
    %v2874 = vcombine.low %v2866, %v2873
    %v2875 = vcombine.low %v1514, %v1518
    %v2876 = vcombine.low %v1522, %v1526
    %v2877 = vcombine.low %v1530, %v1534
    %v2878 = vcombine.low %v1538, %v1542
    %v2880 = vunpack.c.l.s4 1966171168
    %v2881 = vunpack.c.0.s8 %v2880
    %v2882 = vlaneseq
    %v2883 = vshrl.u32 %v2882, 7
    %v2884 = vsub.s32 %v2881, %v2883
    %v2885 = vrot.slane %v2875, %v2884
    %v2887 = vunpack.c.l.s4 1966171168
    %v2888 = vunpack.c.0.s8 %v2887
    %v2889 = vlaneseq
    %v2890 = vshrl.u32 %v2889, 7
    %v2891 = vsub.s32 %v2888, %v2890
    %v2892 = vrot.slane %v2876, %v2891
    %v2894 = vunpack.c.l.s4 1966171168
    %v2895 = vunpack.c.0.s8 %v2894
    %v2896 = vlaneseq
    %v2897 = vshrl.u32 %v2896, 7
    %v2898 = vsub.s32 %v2895, %v2897
    %v2899 = vrot.slane %v2877, %v2898
    %v2901 = vunpack.c.l.s4 1966171168
    %v2902 = vunpack.c.0.s8 %v2901
    %v2903 = vlaneseq
    %v2904 = vshrl.u32 %v2903, 7
    %v2905 = vsub.s32 %v2902, %v2904
    %v2906 = vrot.slane %v2878, %v2905
    %v2907 = vcombine.low %v2885, %v2892
    %v2908 = vcombine.low %v2899, %v2906
    %v2910 = vunpack.c.l.s4 1966171168
    %v2911 = vunpack.c.0.s8 %v2910
    %v2912 = vlaneseq
    %v2913 = vshrl.u32 %v2912, 7
    %v2914 = vsub.s32 %v2911, %v2913
    %v2915 = vrot.slane %v2907, %v2914
    %v2917 = vunpack.c.l.s4 1966171168
    %v2918 = vunpack.c.0.s8 %v2917
    %v2919 = vlaneseq
    %v2920 = vshrl.u32 %v2919, 7
    %v2921 = vsub.s32 %v2918, %v2920
    %v2922 = vrot.slane %v2908, %v2921
    %v2923 = vcombine.low %v2915, %v2922
    %v2924 = vcombine.low %v1546, %v1550
    %v2925 = vcombine.low %v1554, %v1558
    %v2926 = vcombine.low %v1562, %v1566
    %v2927 = vcombine.low %v1570, %v1574
    %v2929 = vunpack.c.l.s4 1966171168
    %v2930 = vunpack.c.0.s8 %v2929
    %v2931 = vlaneseq
    %v2932 = vshrl.u32 %v2931, 7
    %v2933 = vsub.s32 %v2930, %v2932
    %v2934 = vrot.slane %v2924, %v2933
    %v2936 = vunpack.c.l.s4 1966171168
    %v2937 = vunpack.c.0.s8 %v2936
    %v2938 = vlaneseq
    %v2939 = vshrl.u32 %v2938, 7
    %v2940 = vsub.s32 %v2937, %v2939
    %v2941 = vrot.slane %v2925, %v2940
    %v2943 = vunpack.c.l.s4 1966171168
    %v2944 = vunpack.c.0.s8 %v2943
    %v2945 = vlaneseq
    %v2946 = vshrl.u32 %v2945, 7
    %v2947 = vsub.s32 %v2944, %v2946
    %v2948 = vrot.slane %v2926, %v2947
    %v2950 = vunpack.c.l.s4 1966171168
    %v2951 = vunpack.c.0.s8 %v2950
    %v2952 = vlaneseq
    %v2953 = vshrl.u32 %v2952, 7
    %v2954 = vsub.s32 %v2951, %v2953
    %v2955 = vrot.slane %v2927, %v2954
    %v2956 = vcombine.low %v2934, %v2941
    %v2957 = vcombine.low %v2948, %v2955
    %v2959 = vunpack.c.l.s4 1966171168
    %v2960 = vunpack.c.0.s8 %v2959
    %v2961 = vlaneseq
    %v2962 = vshrl.u32 %v2961, 7
    %v2963 = vsub.s32 %v2960, %v2962
    %v2964 = vrot.slane %v2956, %v2963
    %v2966 = vunpack.c.l.s4 1966171168
    %v2967 = vunpack.c.0.s8 %v2966
    %v2968 = vlaneseq
    %v2969 = vshrl.u32 %v2968, 7
    %v2970 = vsub.s32 %v2967, %v2969
    %v2971 = vrot.slane %v2957, %v2970
    %v2972 = vcombine.low %v2964, %v2971
    %v2973 = vcombine.low %v1578, %v1582
    %v2974 = vcombine.low %v1586, %v1590
    %v2975 = vcombine.low %v1594, %v1598
    %v2976 = vcombine.low %v1602, %v1606
    %v2978 = vunpack.c.l.s4 1966171168
    %v2979 = vunpack.c.0.s8 %v2978
    %v2980 = vlaneseq
    %v2981 = vshrl.u32 %v2980, 7
    %v2982 = vsub.s32 %v2979, %v2981
    %v2983 = vrot.slane %v2973, %v2982
    %v2985 = vunpack.c.l.s4 1966171168
    %v2986 = vunpack.c.0.s8 %v2985
    %v2987 = vlaneseq
    %v2988 = vshrl.u32 %v2987, 7
    %v2989 = vsub.s32 %v2986, %v2988
    %v2990 = vrot.slane %v2974, %v2989
    %v2992 = vunpack.c.l.s4 1966171168
    %v2993 = vunpack.c.0.s8 %v2992
    %v2994 = vlaneseq
    %v2995 = vshrl.u32 %v2994, 7
    %v2996 = vsub.s32 %v2993, %v2995
    %v2997 = vrot.slane %v2975, %v2996
    %v2999 = vunpack.c.l.s4 1966171168
    %v3000 = vunpack.c.0.s8 %v2999
    %v3001 = vlaneseq
    %v3002 = vshrl.u32 %v3001, 7
    %v3003 = vsub.s32 %v3000, %v3002
    %v3004 = vrot.slane %v2976, %v3003
    %v3005 = vcombine.low %v2983, %v2990
    %v3006 = vcombine.low %v2997, %v3004
    %v3008 = vunpack.c.l.s4 1966171168
    %v3009 = vunpack.c.0.s8 %v3008
    %v3010 = vlaneseq
    %v3011 = vshrl.u32 %v3010, 7
    %v3012 = vsub.s32 %v3009, %v3011
    %v3013 = vrot.slane %v3005, %v3012
    %v3015 = vunpack.c.l.s4 1966171168
    %v3016 = vunpack.c.0.s8 %v3015
    %v3017 = vlaneseq
    %v3018 = vshrl.u32 %v3017, 7
    %v3019 = vsub.s32 %v3016, %v3018
    %v3020 = vrot.slane %v3006, %v3019
    %v3021 = vcombine.low %v3013, %v3020
    %v3022 = vcombine.low %v1610, %v1614
    %v3023 = vcombine.low %v1618, %v1622
    %v3024 = vcombine.low %v1626, %v1630
    %v3025 = vcombine.low %v1634, %v1638
    %v3027 = vunpack.c.l.s4 1966171168
    %v3028 = vunpack.c.0.s8 %v3027
    %v3029 = vlaneseq
    %v3030 = vshrl.u32 %v3029, 7
    %v3031 = vsub.s32 %v3028, %v3030
    %v3032 = vrot.slane %v3022, %v3031
    %v3034 = vunpack.c.l.s4 1966171168
    %v3035 = vunpack.c.0.s8 %v3034
    %v3036 = vlaneseq
    %v3037 = vshrl.u32 %v3036, 7
    %v3038 = vsub.s32 %v3035, %v3037
    %v3039 = vrot.slane %v3023, %v3038
    %v3041 = vunpack.c.l.s4 1966171168
    %v3042 = vunpack.c.0.s8 %v3041
    %v3043 = vlaneseq
    %v3044 = vshrl.u32 %v3043, 7
    %v3045 = vsub.s32 %v3042, %v3044
    %v3046 = vrot.slane %v3024, %v3045
    %v3048 = vunpack.c.l.s4 1966171168
    %v3049 = vunpack.c.0.s8 %v3048
    %v3050 = vlaneseq
    %v3051 = vshrl.u32 %v3050, 7
    %v3052 = vsub.s32 %v3049, %v3051
    %v3053 = vrot.slane %v3025, %v3052
    %v3054 = vcombine.low %v3032, %v3039
    %v3055 = vcombine.low %v3046, %v3053
    %v3057 = vunpack.c.l.s4 1966171168
    %v3058 = vunpack.c.0.s8 %v3057
    %v3059 = vlaneseq
    %v3060 = vshrl.u32 %v3059, 7
    %v3061 = vsub.s32 %v3058, %v3060
    %v3062 = vrot.slane %v3054, %v3061
    %v3064 = vunpack.c.l.s4 1966171168
    %v3065 = vunpack.c.0.s8 %v3064
    %v3066 = vlaneseq
    %v3067 = vshrl.u32 %v3066, 7
    %v3068 = vsub.s32 %v3065, %v3067
    %v3069 = vrot.slane %v3055, %v3068
    %v3070 = vcombine.low %v3062, %v3069
    %v3071 = vcombine.low %v1642, %v1646
    %v3072 = vcombine.low %v1650, %v1654
    %v3073 = vcombine.low %v1658, %v1662
    %v3074 = vcombine.low %v1666, %v1670
    %v3076 = vunpack.c.l.s4 1966171168
    %v3077 = vunpack.c.0.s8 %v3076
    %v3078 = vlaneseq
    %v3079 = vshrl.u32 %v3078, 7
    %v3080 = vsub.s32 %v3077, %v3079
    %v3081 = vrot.slane %v3071, %v3080
    %v3083 = vunpack.c.l.s4 1966171168
    %v3084 = vunpack.c.0.s8 %v3083
    %v3085 = vlaneseq
    %v3086 = vshrl.u32 %v3085, 7
    %v3087 = vsub.s32 %v3084, %v3086
    %v3088 = vrot.slane %v3072, %v3087
    %v3090 = vunpack.c.l.s4 1966171168
    %v3091 = vunpack.c.0.s8 %v3090
    %v3092 = vlaneseq
    %v3093 = vshrl.u32 %v3092, 7
    %v3094 = vsub.s32 %v3091, %v3093
    %v3095 = vrot.slane %v3073, %v3094
    %v3097 = vunpack.c.l.s4 1966171168
    %v3098 = vunpack.c.0.s8 %v3097
    %v3099 = vlaneseq
    %v3100 = vshrl.u32 %v3099, 7
    %v3101 = vsub.s32 %v3098, %v3100
    %v3102 = vrot.slane %v3074, %v3101
    %v3103 = vcombine.low %v3081, %v3088
    %v3104 = vcombine.low %v3095, %v3102
    %v3106 = vunpack.c.l.s4 1966171168
    %v3107 = vunpack.c.0.s8 %v3106
    %v3108 = vlaneseq
    %v3109 = vshrl.u32 %v3108, 7
    %v3110 = vsub.s32 %v3107, %v3109
    %v3111 = vrot.slane %v3103, %v3110
    %v3113 = vunpack.c.l.s4 1966171168
    %v3114 = vunpack.c.0.s8 %v3113
    %v3115 = vlaneseq
    %v3116 = vshrl.u32 %v3115, 7
    %v3117 = vsub.s32 %v3114, %v3116
    %v3118 = vrot.slane %v3104, %v3117
    %v3119 = vcombine.low %v3111, %v3118
    %v3120 = vcombine.low %v1674, %v1678
    %v3121 = vcombine.low %v1682, %v1686
    %v3122 = vcombine.low %v1690, %v1694
    %v3123 = vcombine.low %v1698, %v1702
    %v3125 = vunpack.c.l.s4 1966171168
    %v3126 = vunpack.c.0.s8 %v3125
    %v3127 = vlaneseq
    %v3128 = vshrl.u32 %v3127, 7
    %v3129 = vsub.s32 %v3126, %v3128
    %v3130 = vrot.slane %v3120, %v3129
    %v3132 = vunpack.c.l.s4 1966171168
    %v3133 = vunpack.c.0.s8 %v3132
    %v3134 = vlaneseq
    %v3135 = vshrl.u32 %v3134, 7
    %v3136 = vsub.s32 %v3133, %v3135
    %v3137 = vrot.slane %v3121, %v3136
    %v3139 = vunpack.c.l.s4 1966171168
    %v3140 = vunpack.c.0.s8 %v3139
    %v3141 = vlaneseq
    %v3142 = vshrl.u32 %v3141, 7
    %v3143 = vsub.s32 %v3140, %v3142
    %v3144 = vrot.slane %v3122, %v3143
    %v3146 = vunpack.c.l.s4 1966171168
    %v3147 = vunpack.c.0.s8 %v3146
    %v3148 = vlaneseq
    %v3149 = vshrl.u32 %v3148, 7
    %v3150 = vsub.s32 %v3147, %v3149
    %v3151 = vrot.slane %v3123, %v3150
    %v3152 = vcombine.low %v3130, %v3137
    %v3153 = vcombine.low %v3144, %v3151
    %v3155 = vunpack.c.l.s4 1966171168
    %v3156 = vunpack.c.0.s8 %v3155
    %v3157 = vlaneseq
    %v3158 = vshrl.u32 %v3157, 7
    %v3159 = vsub.s32 %v3156, %v3158
    %v3160 = vrot.slane %v3152, %v3159
    %v3162 = vunpack.c.l.s4 1966171168
    %v3163 = vunpack.c.0.s8 %v3162
    %v3164 = vlaneseq
    %v3165 = vshrl.u32 %v3164, 7
    %v3166 = vsub.s32 %v3163, %v3165
    %v3167 = vrot.slane %v3153, %v3166
    %v3168 = vcombine.low %v3160, %v3167
    %v3169 = vcombine.low %v1706, %v1710
    %v3170 = vcombine.low %v1714, %v1718
    %v3171 = vcombine.low %v1722, %v1726
    %v3172 = vcombine.low %v1730, %v1734
    %v3174 = vunpack.c.l.s4 1966171168
    %v3175 = vunpack.c.0.s8 %v3174
    %v3176 = vlaneseq
    %v3177 = vshrl.u32 %v3176, 7
    %v3178 = vsub.s32 %v3175, %v3177
    %v3179 = vrot.slane %v3169, %v3178
    %v3181 = vunpack.c.l.s4 1966171168
    %v3182 = vunpack.c.0.s8 %v3181
    %v3183 = vlaneseq
    %v3184 = vshrl.u32 %v3183, 7
    %v3185 = vsub.s32 %v3182, %v3184
    %v3186 = vrot.slane %v3170, %v3185
    %v3188 = vunpack.c.l.s4 1966171168
    %v3189 = vunpack.c.0.s8 %v3188
    %v3190 = vlaneseq
    %v3191 = vshrl.u32 %v3190, 7
    %v3192 = vsub.s32 %v3189, %v3191
    %v3193 = vrot.slane %v3171, %v3192
    %v3195 = vunpack.c.l.s4 1966171168
    %v3196 = vunpack.c.0.s8 %v3195
    %v3197 = vlaneseq
    %v3198 = vshrl.u32 %v3197, 7
    %v3199 = vsub.s32 %v3196, %v3198
    %v3200 = vrot.slane %v3172, %v3199
    %v3201 = vcombine.low %v3179, %v3186
    %v3202 = vcombine.low %v3193, %v3200
    %v3204 = vunpack.c.l.s4 1966171168
    %v3205 = vunpack.c.0.s8 %v3204
    %v3206 = vlaneseq
    %v3207 = vshrl.u32 %v3206, 7
    %v3208 = vsub.s32 %v3205, %v3207
    %v3209 = vrot.slane %v3201, %v3208
    %v3211 = vunpack.c.l.s4 1966171168
    %v3212 = vunpack.c.0.s8 %v3211
    %v3213 = vlaneseq
    %v3214 = vshrl.u32 %v3213, 7
    %v3215 = vsub.s32 %v3212, %v3214
    %v3216 = vrot.slane %v3202, %v3215
    %v3217 = vcombine.low %v3209, %v3216
    %v3218 = vcombine.low %v1738, %v1742
    %v3219 = vcombine.low %v1746, %v1750
    %v3220 = vcombine.low %v1754, %v1758
    %v3221 = vcombine.low %v1762, %v1766
    %v3223 = vunpack.c.l.s4 1966171168
    %v3224 = vunpack.c.0.s8 %v3223
    %v3225 = vlaneseq
    %v3226 = vshrl.u32 %v3225, 7
    %v3227 = vsub.s32 %v3224, %v3226
    %v3228 = vrot.slane %v3218, %v3227
    %v3230 = vunpack.c.l.s4 1966171168
    %v3231 = vunpack.c.0.s8 %v3230
    %v3232 = vlaneseq
    %v3233 = vshrl.u32 %v3232, 7
    %v3234 = vsub.s32 %v3231, %v3233
    %v3235 = vrot.slane %v3219, %v3234
    %v3237 = vunpack.c.l.s4 1966171168
    %v3238 = vunpack.c.0.s8 %v3237
    %v3239 = vlaneseq
    %v3240 = vshrl.u32 %v3239, 7
    %v3241 = vsub.s32 %v3238, %v3240
    %v3242 = vrot.slane %v3220, %v3241
    %v3244 = vunpack.c.l.s4 1966171168
    %v3245 = vunpack.c.0.s8 %v3244
    %v3246 = vlaneseq
    %v3247 = vshrl.u32 %v3246, 7
    %v3248 = vsub.s32 %v3245, %v3247
    %v3249 = vrot.slane %v3221, %v3248
    %v3250 = vcombine.low %v3228, %v3235
    %v3251 = vcombine.low %v3242, %v3249
    %v3253 = vunpack.c.l.s4 1966171168
    %v3254 = vunpack.c.0.s8 %v3253
    %v3255 = vlaneseq
    %v3256 = vshrl.u32 %v3255, 7
    %v3257 = vsub.s32 %v3254, %v3256
    %v3258 = vrot.slane %v3250, %v3257
    %v3260 = vunpack.c.l.s4 1966171168
    %v3261 = vunpack.c.0.s8 %v3260
    %v3262 = vlaneseq
    %v3263 = vshrl.u32 %v3262, 7
    %v3264 = vsub.s32 %v3261, %v3263
    %v3265 = vrot.slane %v3251, %v3264
    %v3266 = vcombine.low %v3258, %v3265
    %v3267 = vcombine.low %v1770, %v1774
    %v3268 = vcombine.low %v1778, %v1782
    %v3269 = vcombine.low %v1786, %v1790
    %v3270 = vcombine.low %v1794, %v1798
    %v3272 = vunpack.c.l.s4 1966171168
    %v3273 = vunpack.c.0.s8 %v3272
    %v3274 = vlaneseq
    %v3275 = vshrl.u32 %v3274, 7
    %v3276 = vsub.s32 %v3273, %v3275
    %v3277 = vrot.slane %v3267, %v3276
    %v3279 = vunpack.c.l.s4 1966171168
    %v3280 = vunpack.c.0.s8 %v3279
    %v3281 = vlaneseq
    %v3282 = vshrl.u32 %v3281, 7
    %v3283 = vsub.s32 %v3280, %v3282
    %v3284 = vrot.slane %v3268, %v3283
    %v3286 = vunpack.c.l.s4 1966171168
    %v3287 = vunpack.c.0.s8 %v3286
    %v3288 = vlaneseq
    %v3289 = vshrl.u32 %v3288, 7
    %v3290 = vsub.s32 %v3287, %v3289
    %v3291 = vrot.slane %v3269, %v3290
    %v3293 = vunpack.c.l.s4 1966171168
    %v3294 = vunpack.c.0.s8 %v3293
    %v3295 = vlaneseq
    %v3296 = vshrl.u32 %v3295, 7
    %v3297 = vsub.s32 %v3294, %v3296
    %v3298 = vrot.slane %v3270, %v3297
    %v3299 = vcombine.low %v3277, %v3284
    %v3300 = vcombine.low %v3291, %v3298
    %v3302 = vunpack.c.l.s4 1966171168
    %v3303 = vunpack.c.0.s8 %v3302
    %v3304 = vlaneseq
    %v3305 = vshrl.u32 %v3304, 7
    %v3306 = vsub.s32 %v3303, %v3305
    %v3307 = vrot.slane %v3299, %v3306
    %v3309 = vunpack.c.l.s4 1966171168
    %v3310 = vunpack.c.0.s8 %v3309
    %v3311 = vlaneseq
    %v3312 = vshrl.u32 %v3311, 7
    %v3313 = vsub.s32 %v3310, %v3312
    %v3314 = vrot.slane %v3300, %v3313
    %v3315 = vcombine.low %v3307, %v3314
    %v3316 = vcombine.low %v1802, %v1806
    %v3317 = vcombine.low %v1810, %v1814
    %v3318 = vcombine.low %v1818, %v1822
    %v3319 = vcombine.low %v1826, %v1830
    %v3321 = vunpack.c.l.s4 1966171168
    %v3322 = vunpack.c.0.s8 %v3321
    %v3323 = vlaneseq
    %v3324 = vshrl.u32 %v3323, 7
    %v3325 = vsub.s32 %v3322, %v3324
    %v3326 = vrot.slane %v3316, %v3325
    %v3328 = vunpack.c.l.s4 1966171168
    %v3329 = vunpack.c.0.s8 %v3328
    %v3330 = vlaneseq
    %v3331 = vshrl.u32 %v3330, 7
    %v3332 = vsub.s32 %v3329, %v3331
    %v3333 = vrot.slane %v3317, %v3332
    %v3335 = vunpack.c.l.s4 1966171168
    %v3336 = vunpack.c.0.s8 %v3335
    %v3337 = vlaneseq
    %v3338 = vshrl.u32 %v3337, 7
    %v3339 = vsub.s32 %v3336, %v3338
    %v3340 = vrot.slane %v3318, %v3339
    %v3342 = vunpack.c.l.s4 1966171168
    %v3343 = vunpack.c.0.s8 %v3342
    %v3344 = vlaneseq
    %v3345 = vshrl.u32 %v3344, 7
    %v3346 = vsub.s32 %v3343, %v3345
    %v3347 = vrot.slane %v3319, %v3346
    %v3348 = vcombine.low %v3326, %v3333
    %v3349 = vcombine.low %v3340, %v3347
    %v3351 = vunpack.c.l.s4 1966171168
    %v3352 = vunpack.c.0.s8 %v3351
    %v3353 = vlaneseq
    %v3354 = vshrl.u32 %v3353, 7
    %v3355 = vsub.s32 %v3352, %v3354
    %v3356 = vrot.slane %v3348, %v3355
    %v3358 = vunpack.c.l.s4 1966171168
    %v3359 = vunpack.c.0.s8 %v3358
    %v3360 = vlaneseq
    %v3361 = vshrl.u32 %v3360, 7
    %v3362 = vsub.s32 %v3359, %v3361
    %v3363 = vrot.slane %v3349, %v3362
    %v3364 = vcombine.low %v3356, %v3363
    %v3365 = vcombine.low %v1834, %v1838
    %v3366 = vcombine.low %v1842, %v1846
    %v3367 = vcombine.low %v1850, %v1854
    %v3368 = vcombine.low %v1858, %v1862
    %v3370 = vunpack.c.l.s4 1966171168
    %v3371 = vunpack.c.0.s8 %v3370
    %v3372 = vlaneseq
    %v3373 = vshrl.u32 %v3372, 7
    %v3374 = vsub.s32 %v3371, %v3373
    %v3375 = vrot.slane %v3365, %v3374
    %v3377 = vunpack.c.l.s4 1966171168
    %v3378 = vunpack.c.0.s8 %v3377
    %v3379 = vlaneseq
    %v3380 = vshrl.u32 %v3379, 7
    %v3381 = vsub.s32 %v3378, %v3380
    %v3382 = vrot.slane %v3366, %v3381
    %v3384 = vunpack.c.l.s4 1966171168
    %v3385 = vunpack.c.0.s8 %v3384
    %v3386 = vlaneseq
    %v3387 = vshrl.u32 %v3386, 7
    %v3388 = vsub.s32 %v3385, %v3387
    %v3389 = vrot.slane %v3367, %v3388
    %v3391 = vunpack.c.l.s4 1966171168
    %v3392 = vunpack.c.0.s8 %v3391
    %v3393 = vlaneseq
    %v3394 = vshrl.u32 %v3393, 7
    %v3395 = vsub.s32 %v3392, %v3394
    %v3396 = vrot.slane %v3368, %v3395
    %v3397 = vcombine.low %v3375, %v3382
    %v3398 = vcombine.low %v3389, %v3396
    %v3400 = vunpack.c.l.s4 1966171168
    %v3401 = vunpack.c.0.s8 %v3400
    %v3402 = vlaneseq
    %v3403 = vshrl.u32 %v3402, 7
    %v3404 = vsub.s32 %v3401, %v3403
    %v3405 = vrot.slane %v3397, %v3404
    %v3407 = vunpack.c.l.s4 1966171168
    %v3408 = vunpack.c.0.s8 %v3407
    %v3409 = vlaneseq
    %v3410 = vshrl.u32 %v3409, 7
    %v3411 = vsub.s32 %v3408, %v3410
    %v3412 = vrot.slane %v3398, %v3411
    %v3413 = vcombine.low %v3405, %v3412
    %v3414 = vcombine.low %v1866, %v1870
    %v3415 = vcombine.low %v1874, %v1878
    %v3416 = vcombine.low %v1882, %v1886
    %v3417 = vcombine.low %v1890, %v1894
    %v3419 = vunpack.c.l.s4 1966171168
    %v3420 = vunpack.c.0.s8 %v3419
    %v3421 = vlaneseq
    %v3422 = vshrl.u32 %v3421, 7
    %v3423 = vsub.s32 %v3420, %v3422
    %v3424 = vrot.slane %v3414, %v3423
    %v3426 = vunpack.c.l.s4 1966171168
    %v3427 = vunpack.c.0.s8 %v3426
    %v3428 = vlaneseq
    %v3429 = vshrl.u32 %v3428, 7
    %v3430 = vsub.s32 %v3427, %v3429
    %v3431 = vrot.slane %v3415, %v3430
    %v3433 = vunpack.c.l.s4 1966171168
    %v3434 = vunpack.c.0.s8 %v3433
    %v3435 = vlaneseq
    %v3436 = vshrl.u32 %v3435, 7
    %v3437 = vsub.s32 %v3434, %v3436
    %v3438 = vrot.slane %v3416, %v3437
    %v3440 = vunpack.c.l.s4 1966171168
    %v3441 = vunpack.c.0.s8 %v3440
    %v3442 = vlaneseq
    %v3443 = vshrl.u32 %v3442, 7
    %v3444 = vsub.s32 %v3441, %v3443
    %v3445 = vrot.slane %v3417, %v3444
    %v3446 = vcombine.low %v3424, %v3431
    %v3447 = vcombine.low %v3438, %v3445
    %v3449 = vunpack.c.l.s4 1966171168
    %v3450 = vunpack.c.0.s8 %v3449
    %v3451 = vlaneseq
    %v3452 = vshrl.u32 %v3451, 7
    %v3453 = vsub.s32 %v3450, %v3452
    %v3454 = vrot.slane %v3446, %v3453
    %v3456 = vunpack.c.l.s4 1966171168
    %v3457 = vunpack.c.0.s8 %v3456
    %v3458 = vlaneseq
    %v3459 = vshrl.u32 %v3458, 7
    %v3460 = vsub.s32 %v3457, %v3459
    %v3461 = vrot.slane %v3447, %v3460
    %v3462 = vcombine.low %v3454, %v3461
    %3463 = vset.pattern.permute.xlu0 0
    %3464 = vperm.xlu0 %3463, %v1943
    %v3465 = vpop.permute.xlu0 %3464
    %3466 = vset.pattern.permute.xlu0 0
    %3467 = vperm.xlu0 %3466, %v1992
    %v3468 = vpop.permute.xlu0 %3467
    %3469 = vset.pattern.permute.xlu0 0
    %3470 = vperm.xlu0 %3469, %v2041
    %v3471 = vpop.permute.xlu0 %3470
    %3472 = vset.pattern.permute.xlu0 0
    %3473 = vperm.xlu0 %3472, %v2090
    %v3474 = vpop.permute.xlu0 %3473
    %3475 = vset.pattern.permute.xlu0 0
    %3476 = vperm.xlu0 %3475, %v2139
    %v3477 = vpop.permute.xlu0 %3476
    %3478 = vset.pattern.permute.xlu0 0
    %3479 = vperm.xlu0 %3478, %v2188
    %v3480 = vpop.permute.xlu0 %3479
    %3481 = vset.pattern.permute.xlu0 0
    %3482 = vperm.xlu0 %3481, %v2237
    %v3483 = vpop.permute.xlu0 %3482
    %3484 = vset.pattern.permute.xlu0 0
    %3485 = vperm.xlu0 %3484, %v2286
    %v3486 = vpop.permute.xlu0 %3485
    %3487 = vset.pattern.permute.xlu0 0
    %3488 = vperm.xlu0 %3487, %v2335
    %v3489 = vpop.permute.xlu0 %3488
    %3490 = vset.pattern.permute.xlu0 0
    %3491 = vperm.xlu0 %3490, %v2384
    %v3492 = vpop.permute.xlu0 %3491
    %3493 = vset.pattern.permute.xlu0 0
    %3494 = vperm.xlu0 %3493, %v2433
    %v3495 = vpop.permute.xlu0 %3494
    %3496 = vset.pattern.permute.xlu0 0
    %3497 = vperm.xlu0 %3496, %v2482
    %v3498 = vpop.permute.xlu0 %3497
    %3499 = vset.pattern.permute.xlu0 0
    %3500 = vperm.xlu0 %3499, %v2531
    %v3501 = vpop.permute.xlu0 %3500
    %3502 = vset.pattern.permute.xlu0 0
    %3503 = vperm.xlu0 %3502, %v2580
    %v3504 = vpop.permute.xlu0 %3503
    %3505 = vset.pattern.permute.xlu0 0
    %3506 = vperm.xlu0 %3505, %v2629
    %v3507 = vpop.permute.xlu0 %3506
    %3508 = vset.pattern.permute.xlu0 0
    %3509 = vperm.xlu0 %3508, %v2678
    %v3510 = vpop.permute.xlu0 %3509
    %3511 = vset.pattern.permute.xlu0 0
    %3512 = vperm.xlu0 %3511, %v2727
    %v3513 = vpop.permute.xlu0 %3512
    %3514 = vset.pattern.permute.xlu0 0
    %3515 = vperm.xlu0 %3514, %v2776
    %v3516 = vpop.permute.xlu0 %3515
    %3517 = vset.pattern.permute.xlu0 0
    %3518 = vperm.xlu0 %3517, %v2825
    %v3519 = vpop.permute.xlu0 %3518
    %3520 = vset.pattern.permute.xlu0 0
    %3521 = vperm.xlu0 %3520, %v2874
    %v3522 = vpop.permute.xlu0 %3521
    %3523 = vset.pattern.permute.xlu0 0
    %3524 = vperm.xlu0 %3523, %v2923
    %v3525 = vpop.permute.xlu0 %3524
    %3526 = vset.pattern.permute.xlu0 0
    %3527 = vperm.xlu0 %3526, %v2972
    %v3528 = vpop.permute.xlu0 %3527
    %3529 = vset.pattern.permute.xlu0 0
    %3530 = vperm.xlu0 %3529, %v3021
    %v3531 = vpop.permute.xlu0 %3530
    %3532 = vset.pattern.permute.xlu0 0
    %3533 = vperm.xlu0 %3532, %v3070
    %v3534 = vpop.permute.xlu0 %3533
    %3535 = vset.pattern.permute.xlu0 0
    %3536 = vperm.xlu0 %3535, %v3119
    %v3537 = vpop.permute.xlu0 %3536
    %3538 = vset.pattern.permute.xlu0 0
    %3539 = vperm.xlu0 %3538, %v3168
    %v3540 = vpop.permute.xlu0 %3539
    %3541 = vset.pattern.permute.xlu0 0
    %3542 = vperm.xlu0 %3541, %v3217
    %v3543 = vpop.permute.xlu0 %3542
    %3544 = vset.pattern.permute.xlu0 0
    %3545 = vperm.xlu0 %3544, %v3266
    %v3546 = vpop.permute.xlu0 %3545
    %3547 = vset.pattern.permute.xlu0 0
    %3548 = vperm.xlu0 %3547, %v3315
    %v3549 = vpop.permute.xlu0 %3548
    %3550 = vset.pattern.permute.xlu0 0
    %3551 = vperm.xlu0 %3550, %v3364
    %v3552 = vpop.permute.xlu0 %3551
    %3553 = vset.pattern.permute.xlu0 0
    %3554 = vperm.xlu0 %3553, %v3413
    %v3555 = vpop.permute.xlu0 %3554
    %3556 = vset.pattern.permute.xlu0 0
    %3557 = vperm.xlu0 %3556, %v3462
    %v3558 = vpop.permute.xlu0 %3557
    %v3559 = vlaneseq
    %v3560 = vand.u32 %v3559, 127
    %v3561 = vlaneseq
    %v3562 = vshrl.u32 %v3561, 7
    %v3563 = vsub.s32 %v3560, %v3562
    %v3564 = vrot.slane %v3465, %v3563
    %v3565 = vadd.s32 %v3560, 4294967288
    %v3566 = vlaneseq
    %v3567 = vshrl.u32 %v3566, 7
    %v3568 = vsub.s32 %v3565, %v3567
    %v3569 = vrot.slane %v3468, %v3568
    %vm3570 = vcmask 130112
    %v3571 = vsel %vm3570, %v3569, %v3564
    %v3572 = vadd.s32 %v3560, 4294967280
    %v3573 = vlaneseq
    %v3574 = vshrl.u32 %v3573, 7
    %v3575 = vsub.s32 %v3572, %v3574
    %v3576 = vrot.slane %v3471, %v3575
    %vm3577 = vcmask 195712
    %v3578 = vsel %vm3577, %v3576, %v3571
    %v3579 = vadd.s32 %v3560, 4294967272
    %v3580 = vlaneseq
    %v3581 = vshrl.u32 %v3580, 7
    %v3582 = vsub.s32 %v3579, %v3581
    %v3583 = vrot.slane %v3474, %v3582
    %vm3584 = vcmask 261312
    %v3585 = vsel %vm3584, %v3583, %v3578
    %v3586 = vadd.s32 %v3560, 4294967264
    %v3587 = vlaneseq
    %v3588 = vshrl.u32 %v3587, 7
    %v3589 = vsub.s32 %v3586, %v3588
    %v3590 = vrot.slane %v3477, %v3589
    %vm3591 = vcmask 326912
    %v3592 = vsel %vm3591, %v3590, %v3585
    %v3593 = vadd.s32 %v3560, 4294967256
    %v3594 = vlaneseq
    %v3595 = vshrl.u32 %v3594, 7
    %v3596 = vsub.s32 %v3593, %v3595
    %v3597 = vrot.slane %v3480, %v3596
    %vm3598 = vcmask 392512
    %v3599 = vsel %vm3598, %v3597, %v3592
    %v3600 = vadd.s32 %v3560, 4294967248
    %v3601 = vlaneseq
    %v3602 = vshrl.u32 %v3601, 7
    %v3603 = vsub.s32 %v3600, %v3602
    %v3604 = vrot.slane %v3483, %v3603
    %vm3605 = vcmask 458112
    %v3606 = vsel %vm3605, %v3604, %v3599
    %v3607 = vadd.s32 %v3560, 4294967240
    %v3608 = vlaneseq
    %v3609 = vshrl.u32 %v3608, 7
    %v3610 = vsub.s32 %v3607, %v3609
    %v3611 = vrot.slane %v3486, %v3610
    %vm3612 = vcmask 523712
    %v3613 = vsel %vm3612, %v3611, %v3606
    %v3614 = vadd.s32 %v3560, 4294967232
    %v3615 = vlaneseq
    %v3616 = vshrl.u32 %v3615, 7
    %v3617 = vsub.s32 %v3614, %v3616
    %v3618 = vrot.slane %v3489, %v3617
    %vm3619 = vcmask 589312
    %v3620 = vsel %vm3619, %v3618, %v3613
    %v3621 = vadd.s32 %v3560, 4294967224
    %v3622 = vlaneseq
    %v3623 = vshrl.u32 %v3622, 7
    %v3624 = vsub.s32 %v3621, %v3623
    %v3625 = vrot.slane %v3492, %v3624
    %vm3626 = vcmask 654912
    %v3627 = vsel %vm3626, %v3625, %v3620
    %v3628 = vadd.s32 %v3560, 4294967216
    %v3629 = vlaneseq
    %v3630 = vshrl.u32 %v3629, 7
    %v3631 = vsub.s32 %v3628, %v3630
    %v3632 = vrot.slane %v3495, %v3631
    %vm3633 = vcmask 720512
    %v3634 = vsel %vm3633, %v3632, %v3627
    %v3635 = vadd.s32 %v3560, 4294967208
    %v3636 = vlaneseq
    %v3637 = vshrl.u32 %v3636, 7
    %v3638 = vsub.s32 %v3635, %v3637
    %v3639 = vrot.slane %v3498, %v3638
    %vm3640 = vcmask 786112
    %v3641 = vsel %vm3640, %v3639, %v3634
    %v3642 = vadd.s32 %v3560, 4294967200
    %v3643 = vlaneseq
    %v3644 = vshrl.u32 %v3643, 7
    %v3645 = vsub.s32 %v3642, %v3644
    %v3646 = vrot.slane %v3501, %v3645
    %vm3647 = vcmask 851712
    %v3648 = vsel %vm3647, %v3646, %v3641
    %v3649 = vadd.s32 %v3560, 4294967192
    %v3650 = vlaneseq
    %v3651 = vshrl.u32 %v3650, 7
    %v3652 = vsub.s32 %v3649, %v3651
    %v3653 = vrot.slane %v3504, %v3652
    %vm3654 = vcmask 917312
    %v3655 = vsel %vm3654, %v3653, %v3648
    %v3656 = vadd.s32 %v3560, 4294967184
    %v3657 = vlaneseq
    %v3658 = vshrl.u32 %v3657, 7
    %v3659 = vsub.s32 %v3656, %v3658
    %v3660 = vrot.slane %v3507, %v3659
    %vm3661 = vcmask 982912
    %v3662 = vsel %vm3661, %v3660, %v3655
    %v3663 = vadd.s32 %v3560, 4294967176
    %v3664 = vlaneseq
    %v3665 = vshrl.u32 %v3664, 7
    %v3666 = vsub.s32 %v3663, %v3665
    %v3667 = vrot.slane %v3510, %v3666
    %vm3668 = vcmask 1048512
    %v3669 = vsel %vm3668, %v3667, %v3662
    %v3670 = vlaneseq
    %v3671 = vshrl.u32 %v3670, 7
    %v3672 = vsub.s32 %v3560, %v3671
    %v3673 = vrot.slane %v3513, %v3672
    %v3674 = vlaneseq
    %v3675 = vshrl.u32 %v3674, 7
    %v3676 = vsub.s32 %v3565, %v3675
    %v3677 = vrot.slane %v3516, %v3676
    %v3678 = vsel %vm3570, %v3677, %v3673
    %v3679 = vlaneseq
    %v3680 = vshrl.u32 %v3679, 7
    %v3681 = vsub.s32 %v3572, %v3680
    %v3682 = vrot.slane %v3519, %v3681
    %v3683 = vsel %vm3577, %v3682, %v3678
    %v3684 = vlaneseq
    %v3685 = vshrl.u32 %v3684, 7
    %v3686 = vsub.s32 %v3579, %v3685
    %v3687 = vrot.slane %v3522, %v3686
    %v3688 = vsel %vm3584, %v3687, %v3683
    %v3689 = vlaneseq
    %v3690 = vshrl.u32 %v3689, 7
    %v3691 = vsub.s32 %v3586, %v3690
    %v3692 = vrot.slane %v3525, %v3691
    %v3693 = vsel %vm3591, %v3692, %v3688
    %v3694 = vlaneseq
    %v3695 = vshrl.u32 %v3694, 7
    %v3696 = vsub.s32 %v3593, %v3695
    %v3697 = vrot.slane %v3528, %v3696
    %v3698 = vsel %vm3598, %v3697, %v3693
    %v3699 = vlaneseq
    %v3700 = vshrl.u32 %v3699, 7
    %v3701 = vsub.s32 %v3600, %v3700
    %v3702 = vrot.slane %v3531, %v3701
    %v3703 = vsel %vm3605, %v3702, %v3698
    %v3704 = vlaneseq
    %v3705 = vshrl.u32 %v3704, 7
    %v3706 = vsub.s32 %v3607, %v3705
    %v3707 = vrot.slane %v3534, %v3706
    %v3708 = vsel %vm3612, %v3707, %v3703
    %v3709 = vlaneseq
    %v3710 = vshrl.u32 %v3709, 7
    %v3711 = vsub.s32 %v3614, %v3710
    %v3712 = vrot.slane %v3537, %v3711
    %v3713 = vsel %vm3619, %v3712, %v3708
    %v3714 = vlaneseq
    %v3715 = vshrl.u32 %v3714, 7
    %v3716 = vsub.s32 %v3621, %v3715
    %v3717 = vrot.slane %v3540, %v3716
    %v3718 = vsel %vm3626, %v3717, %v3713
    %v3719 = vlaneseq
    %v3720 = vshrl.u32 %v3719, 7
    %v3721 = vsub.s32 %v3628, %v3720
    %v3722 = vrot.slane %v3543, %v3721
    %v3723 = vsel %vm3633, %v3722, %v3718
    %v3724 = vlaneseq
    %v3725 = vshrl.u32 %v3724, 7
    %v3726 = vsub.s32 %v3635, %v3725
    %v3727 = vrot.slane %v3546, %v3726
    %v3728 = vsel %vm3640, %v3727, %v3723
    %v3729 = vlaneseq
    %v3730 = vshrl.u32 %v3729, 7
    %v3731 = vsub.s32 %v3642, %v3730
    %v3732 = vrot.slane %v3549, %v3731
    %v3733 = vsel %vm3647, %v3732, %v3728
    %v3734 = vlaneseq
    %v3735 = vshrl.u32 %v3734, 7
    %v3736 = vsub.s32 %v3649, %v3735
    %v3737 = vrot.slane %v3552, %v3736
    %v3738 = vsel %vm3654, %v3737, %v3733
    %v3739 = vlaneseq
    %v3740 = vshrl.u32 %v3739, 7
    %v3741 = vsub.s32 %v3656, %v3740
    %v3742 = vrot.slane %v3555, %v3741
    %v3743 = vsel %vm3661, %v3742, %v3738
    %v3744 = vlaneseq
    %v3745 = vshrl.u32 %v3744, 7
    %v3746 = vsub.s32 %v3663, %v3745
    %v3747 = vrot.slane %v3558, %v3746
    %v3748 = vsel %vm3668, %v3747, %v3743
    %v3749 = vcombine.low %v3669, %v3748
    %v3751 = vunpack.c.l.s4 1966171168
    %v3752 = vunpack.c.0.s8 %v3751
    %v3753 = vlaneseq
    %v3754 = vshrl.u32 %v3753, 7
    %v3755 = vsub.s32 %v3752, %v3754
    %v3756 = vrot.slane %v3749, %v3755
    %v3758 = vunpack.c.l.s4 1966171168
    %v3759 = vunpack.c.0.s8 %v3758
    %v3760 = vlaneseq
    %v3761 = vshrl.u32 %v3760, 7
    %v3762 = vsub.s32 %v3759, %v3761
    %v3763 = vrot.slane %v3756, %v3762
    %v3765 = vlaneseq
    %vm3766 = vcmp.ge.s32.totalorder %v3765, 0
    %vm3767 = vcmp.lt.s32.totalorder %v3765, 256
    %vm3768 = vmand %vm3766, %vm3767
    %3769 = vst.msk [vmem:[#allocation3] sm:$0x3] %vm3768, %v3763
    // Predicated region
    $region30: #{tpu_custom_call.1} parent=1 // pred_check
      _
    $region31: #{tpu_custom_call.1} parent=1 // pred_check_branch
      %3771 = sbr.rel (0) target = $region33
    $region32: #{tpu_custom_call.1} parent=1 // pred_region
      %s3773 = ssub.s32 32, 32
      %3774 = vsyncadd [#allocation4], %s3773
      %s3776 = sshll.u32 [#allocation3], 4
      %s3777 = int_to_ptr.vmem [resolvable:$true] %s3776
      %3779 = dma.vmem_to_hbm [thread:$0]  %s3777, 32, %s7, [#allocation4]
    $region33: #{tpu_custom_call.1} parent=1 // pred_fallthru
      _
    // Predicated region
    $region34: #{tpu_custom_call.1} parent=1 // pred_check
      _
    $region35: #{tpu_custom_call.1} parent=1 // pred_check_branch
      %3781 = sbr.rel (0) target = $region37
    $region36: #{tpu_custom_call.1} parent=1 // pred_region
      %3782 = dma.done [#allocation4], 32
    $region37: #{tpu_custom_call.1} parent=1 // pred_fallthru
      _
    %3783 = vsyncpa [#allocation4], 1

</llo_original>
